<compile_context>
chip_gen: v6e
topology: v6e:2x2x1
jax: 0.10.0
libtpu: 0.0.40
codegen_flags: <defaults>
</compile_context>

<pallas_src>
import jax
import jax.numpy as jnp
from jax.experimental import pallas as pl
from jax.experimental.pallas import tpu as pltpu

LANE = 128
BATCH_TILE = 8


def lstm_classifier_kernel(x_ref, w_ih_ref, w_hh_ref, b_ref,
                           w_hid_ref, b_hid_ref, w_fc_ref, b_fc_ref,
                           out_ref):
    Bt, T, D = x_ref.shape          # batch tile, time, input dim (all static)
    H = w_hh_ref.shape[0]           # hidden size (128 -> lane-aligned gates)

    # ---- Hoisted input projection: one big MXU matmul, bias folded in once.
    x_all = x_ref[...]                                     # (Bt, T, D)
    x2 = x_all.reshape(Bt * T, D)
    x_proj = jnp.dot(x2, w_ih_ref[...],
                     preferred_element_type=jnp.float32)   # (Bt*T, 4H)
    x_proj = (x_proj + b_ref[...]).reshape(Bt, T, 4 * H)   # broadcast once

    w_hh = w_hh_ref[...]                                   # (H, 4H)

    h = jnp.zeros((Bt, H), jnp.float32)
    c = jnp.zeros((Bt, H), jnp.float32)

    # ---- Recurrence: T is a static Python int -> fully unrolled.  Only the
    # h @ w_hh matmul remains on the serial critical path; gate slices are
    # 128-lane aligned (H == 128) so no cross-lane extracts are needed.
    for t in range(T):
        gates = x_proj[:, t, :] + jnp.dot(
            h, w_hh, preferred_element_type=jnp.float32)   # (Bt, 4H)
        i_g = jax.nn.sigmoid(gates[:, 0 * H:1 * H])
        f_g = jax.nn.sigmoid(gates[:, 1 * H:2 * H])
        g_g = jnp.tanh(gates[:, 2 * H:3 * H])
        o_g = jax.nn.sigmoid(gates[:, 3 * H:4 * H])
        c = f_g * c + i_g * g_g
        h = o_g * jnp.tanh(c)

    # ---- Head: hidden -> ReLU -> hidden (same weights) -> fc (lane-padded).
    w_hid = w_hid_ref[...]
    b_hid = b_hid_ref[...]
    y = jnp.maximum(
        jnp.dot(h, w_hid, preferred_element_type=jnp.float32) + b_hid, 0.0)
    y = jnp.dot(y, w_hid, preferred_element_type=jnp.float32) + b_hid
    out_ref[...] = (jnp.dot(y, w_fc_ref[...],
                            preferred_element_type=jnp.float32)
                    + b_fc_ref[...])                       # (Bt, C_pad)


def lstm_classifier(x, params, *, batch_tile=BATCH_TILE):
    """x: (B, T, D) float32 -> logits (B, num_classes) float32."""
    B, T, D = x.shape
    H = params["w_hh"].shape[0]
    C = params["w_fc"].shape[1]

    B_pad = pl.cdiv(B, batch_tile) * batch_tile            # sublane-dense rows
    C_pad = pl.cdiv(C, LANE) * LANE                        # lane-dense output

    x_p = jnp.pad(x, ((0, B_pad - B), (0, 0), (0, 0)))     # zero rows -> discarded
    w_fc_p = jnp.pad(params["w_fc"], ((0, 0), (0, C_pad - C)))
    b_fc_p = jnp.pad(params["b_fc"], ((0, 0), (0, C_pad - C)))

    def wspec(shape):  # weights resident across the batch grid
        return pl.BlockSpec(shape, lambda i: (0, 0))

    out = pl.pallas_call(
        lstm_classifier_kernel,
        out_shape=jax.ShapeDtypeStruct((B_pad, C_pad), jnp.float32),
        grid_spec=pltpu.PrefetchScalarGridSpec(
            num_scalar_prefetch=0,
            grid=(B_pad // batch_tile,),
            in_specs=[
                pl.BlockSpec((batch_tile, T, D), lambda i: (i, 0, 0)),
                wspec((D, 4 * H)),       # w_ih
                wspec((H, 4 * H)),       # w_hh
                wspec((1, 4 * H)),       # combined LSTM bias
                wspec((H, H)),           # hidden.weight.T
                wspec((1, H)),           # hidden.bias
                wspec((H, C_pad)),       # fc.weight.T (lane-padded)
                wspec((1, C_pad)),       # fc.bias (lane-padded)
            ],
            out_specs=pl.BlockSpec((batch_tile, C_pad), lambda i: (i, 0)),
        ),
        compiler_params=pltpu.CompilerParams(
            dimension_semantics=("parallel",)),
    )(x_p, params["w_ih"], params["w_hh"], params["b"],
      params["w_hid"], params["b_hid"], w_fc_p, b_fc_p)

    return out[:B, :C]


def init_params(key, input_size, hidden_size, num_classes):
    """Deterministic synthetic init (uniform, PyTorch-like scale)."""
    ks = jax.random.split(key, 8)
    H, D, C = hidden_size, input_size, num_classes
    s = 1.0 / jnp.sqrt(H)
    u = lambda k, shape: jax.random.uniform(k, shape, jnp.float32, -s, s)
    b_ih = u(ks[2], (1, 4 * H))
    b_hh = u(ks[3], (1, 4 * H))
    return {
        "w_ih": u(ks[0], (D, 4 * H)),    # = weight_ih_l0.T
        "w_hh": u(ks[1], (H, 4 * H)),    # = weight_hh_l0.T
        "b": b_ih + b_hh,                # combined LSTM bias
        "w_hid": u(ks[4], (H, H)),       # = hidden.weight.T
        "b_hid": u(ks[5], (1, H)),
        "w_fc": u(ks[6], (H, C)),        # = fc.weight.T
        "b_fc": u(ks[7], (1, C)),
    }


def reference_forward(x, p):
    """Pure-JAX reference of the same forward pass (correctness check)."""
    B, T, D = x.shape
    H = p["w_hh"].shape[0]
    h = jnp.zeros((B, H), jnp.float32)
    c = jnp.zeros((B, H), jnp.float32)
    for t in range(T):
        gates = x[:, t, :] @ p["w_ih"] + h @ p["w_hh"] + p["b"]
        i = jax.nn.sigmoid(gates[:, 0 * H:1 * H])
        f = jax.nn.sigmoid(gates[:, 1 * H:2 * H])
        g = jnp.tanh(gates[:, 2 * H:3 * H])
        o = jax.nn.sigmoid(gates[:, 3 * H:4 * H])
        c = f * c + i * g
        h = o * jnp.tanh(c)
    y = jnp.maximum(h @ p["w_hid"] + p["b_hid"], 0.0)
    y = y @ p["w_hid"] + p["b_hid"]
    return y @ p["w_fc"] + p["b_fc"]


if __name__ == "__main__":
    # Small shapes consistent with the module: hidden_size=128, num_classes=11,
    # fastText embedding dim stand-in D=64, short sequence T=8, batch B=4.
    B, T, D, H, C = 4, 8, 64, 128, 11

    key = jax.random.PRNGKey(0)
    k_x, k_p = jax.random.split(key)
    x = jax.random.normal(k_x, (B, T, D), jnp.float32)
    params = init_params(k_p, D, H, C)

    logits = lstm_classifier(x, params)
    logits = jax.block_until_ready(logits)

    ref = reference_forward(x, params)
    assert logits.shape == (B, C)
    assert jnp.allclose(logits, ref, atol=1e-3, rtol=1e-3)

    print("KERNEL_OK")
</pallas_src>

<mosaic_0001>
module attributes {stable_mosaic.version = 11 : i64} {
  func.func @lstm_classifier_kernel(%arg0: i32, %arg1: memref<8x8x64xf32, #tpu.memory_space<vmem>>, %arg2: memref<64x512xf32, #tpu.memory_space<vmem>>, %arg3: memref<128x512xf32, #tpu.memory_space<vmem>>, %arg4: memref<1x512xf32, #tpu.memory_space<vmem>>, %arg5: memref<128x128xf32, #tpu.memory_space<vmem>>, %arg6: memref<1x128xf32, #tpu.memory_space<vmem>>, %arg7: memref<128x128xf32, #tpu.memory_space<vmem>>, %arg8: memref<1x128xf32, #tpu.memory_space<vmem>>, %arg9: memref<8x128xf32, #tpu.memory_space<vmem>>) attributes {dimension_semantics = [#tpu.dimension_semantics<parallel>], iteration_bounds = array<i64: 1>, scalar_prefetch = 0 : i64, scratch_operands = 0 : i64, tpu.core_type = #tpu.core_type<tc>, window_params = [{transform_indices = @transform_0, window_bounds = array<i64: 8, 8, 64>}, {pipeline_mode = #tpu.pipeline_mode<synchronous>, transform_indices = @transform_1, window_bounds = array<i64: 64, 512>}, {pipeline_mode = #tpu.pipeline_mode<synchronous>, transform_indices = @transform_2, window_bounds = array<i64: 128, 512>}, {pipeline_mode = #tpu.pipeline_mode<synchronous>, transform_indices = @transform_3, window_bounds = array<i64: 1, 512>}, {pipeline_mode = #tpu.pipeline_mode<synchronous>, transform_indices = @transform_4, window_bounds = array<i64: 128, 128>}, {pipeline_mode = #tpu.pipeline_mode<synchronous>, transform_indices = @transform_5, window_bounds = array<i64: 1, 128>}, {pipeline_mode = #tpu.pipeline_mode<synchronous>, transform_indices = @transform_6, window_bounds = array<i64: 128, 128>}, {pipeline_mode = #tpu.pipeline_mode<synchronous>, transform_indices = @transform_7, window_bounds = array<i64: 1, 128>}, {transform_indices = @transform_8, window_bounds = array<i64: 8, 128>}]} {
    %c0 = arith.constant 0 : index
    %c0_0 = arith.constant 0 : index
    %c0_1 = arith.constant 0 : index
    %0 = vector.load %arg1[%c0, %c0_0, %c0_1] : memref<8x8x64xf32, #tpu.memory_space<vmem>>, vector<8x8x64xf32>
    %1 = vector.shape_cast %0 : vector<8x8x64xf32> to vector<64x64xf32>
    %c0_2 = arith.constant 0 : index
    %c0_3 = arith.constant 0 : index
    %2 = vector.load %arg2[%c0_2, %c0_3] : memref<64x512xf32, #tpu.memory_space<vmem>>, vector<64x512xf32>
    %cst = arith.constant dense<0.000000e+00> : vector<64x512xf32>
    %3 = tpu.matmul %1, %2, %cst {dimension_numbers = #tpu.dot_dimension_numbers<[1], [0], [0], [1], [0, 0, 1, 1], [], []>} : vector<64x64xf32>, vector<64x512xf32>, vector<64x512xf32> -> vector<64x512xf32>
    %c0_4 = arith.constant 0 : index
    %c0_5 = arith.constant 0 : index
    %4 = vector.load %arg4[%c0_4, %c0_5] : memref<1x512xf32, #tpu.memory_space<vmem>>, vector<1x512xf32>
    %5 = vector.broadcast %4 : vector<1x512xf32> to vector<64x512xf32>
    %6 = arith.addf %3, %5 : vector<64x512xf32>
    %7 = vector.shape_cast %6 : vector<64x512xf32> to vector<8x8x512xf32>
    %c0_6 = arith.constant 0 : index
    %c0_7 = arith.constant 0 : index
    %8 = vector.load %arg3[%c0_6, %c0_7] : memref<128x512xf32, #tpu.memory_space<vmem>>, vector<128x512xf32>
    %cst_8 = arith.constant 0.000000e+00 : f32
    %9 = vector.broadcast %cst_8 : f32 to vector<8x128xf32>
    %cst_9 = arith.constant 0.000000e+00 : f32
    %10 = vector.broadcast %cst_9 : f32 to vector<8x128xf32>
    %11 = vector.extract_strided_slice %7 {offsets = [0, 0, 0], sizes = [8, 1, 512], strides = [1, 1, 1]} : vector<8x8x512xf32> to vector<8x1x512xf32>
    %12 = vector.shape_cast %11 : vector<8x1x512xf32> to vector<8x512xf32>
    %cst_10 = arith.constant dense<0.000000e+00> : vector<8x512xf32>
    %13 = tpu.matmul %9, %8, %cst_10 {dimension_numbers = #tpu.dot_dimension_numbers<[1], [0], [0], [1], [0, 0, 1, 1], [], []>} : vector<8x128xf32>, vector<128x512xf32>, vector<8x512xf32> -> vector<8x512xf32>
    %14 = arith.addf %12, %13 : vector<8x512xf32>
    %15 = vector.extract_strided_slice %14 {offsets = [0, 0], sizes = [8, 128], strides = [1, 1]} : vector<8x512xf32> to vector<8x128xf32>
    %16 = arith.negf %15 : vector<8x128xf32>
    %17 = math.exp %16 : vector<8x128xf32>
    %cst_11 = arith.constant 1.000000e+00 : f32
    %18 = vector.broadcast %cst_11 : f32 to vector<8x128xf32>
    %19 = arith.addf %18, %17 : vector<8x128xf32>
    %20 = arith.divf %18, %19 : vector<8x128xf32>
    %21 = vector.extract_strided_slice %14 {offsets = [0, 128], sizes = [8, 128], strides = [1, 1]} : vector<8x512xf32> to vector<8x128xf32>
    %22 = arith.negf %21 : vector<8x128xf32>
    %23 = math.exp %22 : vector<8x128xf32>
    %cst_12 = arith.constant 1.000000e+00 : f32
    %24 = vector.broadcast %cst_12 : f32 to vector<8x128xf32>
    %25 = arith.addf %24, %23 : vector<8x128xf32>
    %26 = arith.divf %24, %25 : vector<8x128xf32>
    %27 = vector.extract_strided_slice %14 {offsets = [0, 256], sizes = [8, 128], strides = [1, 1]} : vector<8x512xf32> to vector<8x128xf32>
    %28 = math.tanh %27 : vector<8x128xf32>
    %29 = vector.extract_strided_slice %14 {offsets = [0, 384], sizes = [8, 128], strides = [1, 1]} : vector<8x512xf32> to vector<8x128xf32>
    %30 = arith.negf %29 : vector<8x128xf32>
    %31 = math.exp %30 : vector<8x128xf32>
    %cst_13 = arith.constant 1.000000e+00 : f32
    %32 = vector.broadcast %cst_13 : f32 to vector<8x128xf32>
    %33 = arith.addf %32, %31 : vector<8x128xf32>
    %34 = arith.divf %32, %33 : vector<8x128xf32>
    %35 = arith.mulf %26, %10 : vector<8x128xf32>
    %36 = arith.mulf %20, %28 : vector<8x128xf32>
    %37 = arith.addf %35, %36 : vector<8x128xf32>
    %38 = math.tanh %37 : vector<8x128xf32>
    %39 = arith.mulf %34, %38 : vector<8x128xf32>
    %40 = vector.extract_strided_slice %7 {offsets = [0, 1, 0], sizes = [8, 1, 512], strides = [1, 1, 1]} : vector<8x8x512xf32> to vector<8x1x512xf32>
    %41 = vector.shape_cast %40 : vector<8x1x512xf32> to vector<8x512xf32>
    %cst_14 = arith.constant dense<0.000000e+00> : vector<8x512xf32>
    %42 = tpu.matmul %39, %8, %cst_14 {dimension_numbers = #tpu.dot_dimension_numbers<[1], [0], [0], [1], [0, 0, 1, 1], [], []>} : vector<8x128xf32>, vector<128x512xf32>, vector<8x512xf32> -> vector<8x512xf32>
    %43 = arith.addf %41, %42 : vector<8x512xf32>
    %44 = vector.extract_strided_slice %43 {offsets = [0, 0], sizes = [8, 128], strides = [1, 1]} : vector<8x512xf32> to vector<8x128xf32>
    %45 = arith.negf %44 : vector<8x128xf32>
    %46 = math.exp %45 : vector<8x128xf32>
    %cst_15 = arith.constant 1.000000e+00 : f32
    %47 = vector.broadcast %cst_15 : f32 to vector<8x128xf32>
    %48 = arith.addf %47, %46 : vector<8x128xf32>
    %49 = arith.divf %47, %48 : vector<8x128xf32>
    %50 = vector.extract_strided_slice %43 {offsets = [0, 128], sizes = [8, 128], strides = [1, 1]} : vector<8x512xf32> to vector<8x128xf32>
    %51 = arith.negf %50 : vector<8x128xf32>
    %52 = math.exp %51 : vector<8x128xf32>
    %cst_16 = arith.constant 1.000000e+00 : f32
    %53 = vector.broadcast %cst_16 : f32 to vector<8x128xf32>
    %54 = arith.addf %53, %52 : vector<8x128xf32>
    %55 = arith.divf %53, %54 : vector<8x128xf32>
    %56 = vector.extract_strided_slice %43 {offsets = [0, 256], sizes = [8, 128], strides = [1, 1]} : vector<8x512xf32> to vector<8x128xf32>
    %57 = math.tanh %56 : vector<8x128xf32>
    %58 = vector.extract_strided_slice %43 {offsets = [0, 384], sizes = [8, 128], strides = [1, 1]} : vector<8x512xf32> to vector<8x128xf32>
    %59 = arith.negf %58 : vector<8x128xf32>
    %60 = math.exp %59 : vector<8x128xf32>
    %cst_17 = arith.constant 1.000000e+00 : f32
    %61 = vector.broadcast %cst_17 : f32 to vector<8x128xf32>
    %62 = arith.addf %61, %60 : vector<8x128xf32>
    %63 = arith.divf %61, %62 : vector<8x128xf32>
    %64 = arith.mulf %55, %37 : vector<8x128xf32>
    %65 = arith.mulf %49, %57 : vector<8x128xf32>
    %66 = arith.addf %64, %65 : vector<8x128xf32>
    %67 = math.tanh %66 : vector<8x128xf32>
    %68 = arith.mulf %63, %67 : vector<8x128xf32>
    %69 = vector.extract_strided_slice %7 {offsets = [0, 2, 0], sizes = [8, 1, 512], strides = [1, 1, 1]} : vector<8x8x512xf32> to vector<8x1x512xf32>
    %70 = vector.shape_cast %69 : vector<8x1x512xf32> to vector<8x512xf32>
    %cst_18 = arith.constant dense<0.000000e+00> : vector<8x512xf32>
    %71 = tpu.matmul %68, %8, %cst_18 {dimension_numbers = #tpu.dot_dimension_numbers<[1], [0], [0], [1], [0, 0, 1, 1], [], []>} : vector<8x128xf32>, vector<128x512xf32>, vector<8x512xf32> -> vector<8x512xf32>
    %72 = arith.addf %70, %71 : vector<8x512xf32>
    %73 = vector.extract_strided_slice %72 {offsets = [0, 0], sizes = [8, 128], strides = [1, 1]} : vector<8x512xf32> to vector<8x128xf32>
    %74 = arith.negf %73 : vector<8x128xf32>
    %75 = math.exp %74 : vector<8x128xf32>
    %cst_19 = arith.constant 1.000000e+00 : f32
    %76 = vector.broadcast %cst_19 : f32 to vector<8x128xf32>
    %77 = arith.addf %76, %75 : vector<8x128xf32>
    %78 = arith.divf %76, %77 : vector<8x128xf32>
    %79 = vector.extract_strided_slice %72 {offsets = [0, 128], sizes = [8, 128], strides = [1, 1]} : vector<8x512xf32> to vector<8x128xf32>
    %80 = arith.negf %79 : vector<8x128xf32>
    %81 = math.exp %80 : vector<8x128xf32>
    %cst_20 = arith.constant 1.000000e+00 : f32
    %82 = vector.broadcast %cst_20 : f32 to vector<8x128xf32>
    %83 = arith.addf %82, %81 : vector<8x128xf32>
    %84 = arith.divf %82, %83 : vector<8x128xf32>
    %85 = vector.extract_strided_slice %72 {offsets = [0, 256], sizes = [8, 128], strides = [1, 1]} : vector<8x512xf32> to vector<8x128xf32>
    %86 = math.tanh %85 : vector<8x128xf32>
    %87 = vector.extract_strided_slice %72 {offsets = [0, 384], sizes = [8, 128], strides = [1, 1]} : vector<8x512xf32> to vector<8x128xf32>
    %88 = arith.negf %87 : vector<8x128xf32>
    %89 = math.exp %88 : vector<8x128xf32>
    %cst_21 = arith.constant 1.000000e+00 : f32
    %90 = vector.broadcast %cst_21 : f32 to vector<8x128xf32>
    %91 = arith.addf %90, %89 : vector<8x128xf32>
    %92 = arith.divf %90, %91 : vector<8x128xf32>
    %93 = arith.mulf %84, %66 : vector<8x128xf32>
    %94 = arith.mulf %78, %86 : vector<8x128xf32>
    %95 = arith.addf %93, %94 : vector<8x128xf32>
    %96 = math.tanh %95 : vector<8x128xf32>
    %97 = arith.mulf %92, %96 : vector<8x128xf32>
    %98 = vector.extract_strided_slice %7 {offsets = [0, 3, 0], sizes = [8, 1, 512], strides = [1, 1, 1]} : vector<8x8x512xf32> to vector<8x1x512xf32>
    %99 = vector.shape_cast %98 : vector<8x1x512xf32> to vector<8x512xf32>
    %cst_22 = arith.constant dense<0.000000e+00> : vector<8x512xf32>
    %100 = tpu.matmul %97, %8, %cst_22 {dimension_numbers = #tpu.dot_dimension_numbers<[1], [0], [0], [1], [0, 0, 1, 1], [], []>} : vector<8x128xf32>, vector<128x512xf32>, vector<8x512xf32> -> vector<8x512xf32>
    %101 = arith.addf %99, %100 : vector<8x512xf32>
    %102 = vector.extract_strided_slice %101 {offsets = [0, 0], sizes = [8, 128], strides = [1, 1]} : vector<8x512xf32> to vector<8x128xf32>
    %103 = arith.negf %102 : vector<8x128xf32>
    %104 = math.exp %103 : vector<8x128xf32>
    %cst_23 = arith.constant 1.000000e+00 : f32
    %105 = vector.broadcast %cst_23 : f32 to vector<8x128xf32>
    %106 = arith.addf %105, %104 : vector<8x128xf32>
    %107 = arith.divf %105, %106 : vector<8x128xf32>
    %108 = vector.extract_strided_slice %101 {offsets = [0, 128], sizes = [8, 128], strides = [1, 1]} : vector<8x512xf32> to vector<8x128xf32>
    %109 = arith.negf %108 : vector<8x128xf32>
    %110 = math.exp %109 : vector<8x128xf32>
    %cst_24 = arith.constant 1.000000e+00 : f32
    %111 = vector.broadcast %cst_24 : f32 to vector<8x128xf32>
    %112 = arith.addf %111, %110 : vector<8x128xf32>
    %113 = arith.divf %111, %112 : vector<8x128xf32>
    %114 = vector.extract_strided_slice %101 {offsets = [0, 256], sizes = [8, 128], strides = [1, 1]} : vector<8x512xf32> to vector<8x128xf32>
    %115 = math.tanh %114 : vector<8x128xf32>
    %116 = vector.extract_strided_slice %101 {offsets = [0, 384], sizes = [8, 128], strides = [1, 1]} : vector<8x512xf32> to vector<8x128xf32>
    %117 = arith.negf %116 : vector<8x128xf32>
    %118 = math.exp %117 : vector<8x128xf32>
    %cst_25 = arith.constant 1.000000e+00 : f32
    %119 = vector.broadcast %cst_25 : f32 to vector<8x128xf32>
    %120 = arith.addf %119, %118 : vector<8x128xf32>
    %121 = arith.divf %119, %120 : vector<8x128xf32>
    %122 = arith.mulf %113, %95 : vector<8x128xf32>
    %123 = arith.mulf %107, %115 : vector<8x128xf32>
    %124 = arith.addf %122, %123 : vector<8x128xf32>
    %125 = math.tanh %124 : vector<8x128xf32>
    %126 = arith.mulf %121, %125 : vector<8x128xf32>
    %127 = vector.extract_strided_slice %7 {offsets = [0, 4, 0], sizes = [8, 1, 512], strides = [1, 1, 1]} : vector<8x8x512xf32> to vector<8x1x512xf32>
    %128 = vector.shape_cast %127 : vector<8x1x512xf32> to vector<8x512xf32>
    %cst_26 = arith.constant dense<0.000000e+00> : vector<8x512xf32>
    %129 = tpu.matmul %126, %8, %cst_26 {dimension_numbers = #tpu.dot_dimension_numbers<[1], [0], [0], [1], [0, 0, 1, 1], [], []>} : vector<8x128xf32>, vector<128x512xf32>, vector<8x512xf32> -> vector<8x512xf32>
    %130 = arith.addf %128, %129 : vector<8x512xf32>
    %131 = vector.extract_strided_slice %130 {offsets = [0, 0], sizes = [8, 128], strides = [1, 1]} : vector<8x512xf32> to vector<8x128xf32>
    %132 = arith.negf %131 : vector<8x128xf32>
    %133 = math.exp %132 : vector<8x128xf32>
    %cst_27 = arith.constant 1.000000e+00 : f32
    %134 = vector.broadcast %cst_27 : f32 to vector<8x128xf32>
    %135 = arith.addf %134, %133 : vector<8x128xf32>
    %136 = arith.divf %134, %135 : vector<8x128xf32>
    %137 = vector.extract_strided_slice %130 {offsets = [0, 128], sizes = [8, 128], strides = [1, 1]} : vector<8x512xf32> to vector<8x128xf32>
    %138 = arith.negf %137 : vector<8x128xf32>
    %139 = math.exp %138 : vector<8x128xf32>
    %cst_28 = arith.constant 1.000000e+00 : f32
    %140 = vector.broadcast %cst_28 : f32 to vector<8x128xf32>
    %141 = arith.addf %140, %139 : vector<8x128xf32>
    %142 = arith.divf %140, %141 : vector<8x128xf32>
    %143 = vector.extract_strided_slice %130 {offsets = [0, 256], sizes = [8, 128], strides = [1, 1]} : vector<8x512xf32> to vector<8x128xf32>
    %144 = math.tanh %143 : vector<8x128xf32>
    %145 = vector.extract_strided_slice %130 {offsets = [0, 384], sizes = [8, 128], strides = [1, 1]} : vector<8x512xf32> to vector<8x128xf32>
    %146 = arith.negf %145 : vector<8x128xf32>
    %147 = math.exp %146 : vector<8x128xf32>
    %cst_29 = arith.constant 1.000000e+00 : f32
    %148 = vector.broadcast %cst_29 : f32 to vector<8x128xf32>
    %149 = arith.addf %148, %147 : vector<8x128xf32>
    %150 = arith.divf %148, %149 : vector<8x128xf32>
    %151 = arith.mulf %142, %124 : vector<8x128xf32>
    %152 = arith.mulf %136, %144 : vector<8x128xf32>
    %153 = arith.addf %151, %152 : vector<8x128xf32>
    %154 = math.tanh %153 : vector<8x128xf32>
    %155 = arith.mulf %150, %154 : vector<8x128xf32>
    %156 = vector.extract_strided_slice %7 {offsets = [0, 5, 0], sizes = [8, 1, 512], strides = [1, 1, 1]} : vector<8x8x512xf32> to vector<8x1x512xf32>
    %157 = vector.shape_cast %156 : vector<8x1x512xf32> to vector<8x512xf32>
    %cst_30 = arith.constant dense<0.000000e+00> : vector<8x512xf32>
    %158 = tpu.matmul %155, %8, %cst_30 {dimension_numbers = #tpu.dot_dimension_numbers<[1], [0], [0], [1], [0, 0, 1, 1], [], []>} : vector<8x128xf32>, vector<128x512xf32>, vector<8x512xf32> -> vector<8x512xf32>
    %159 = arith.addf %157, %158 : vector<8x512xf32>
    %160 = vector.extract_strided_slice %159 {offsets = [0, 0], sizes = [8, 128], strides = [1, 1]} : vector<8x512xf32> to vector<8x128xf32>
    %161 = arith.negf %160 : vector<8x128xf32>
    %162 = math.exp %161 : vector<8x128xf32>
    %cst_31 = arith.constant 1.000000e+00 : f32
    %163 = vector.broadcast %cst_31 : f32 to vector<8x128xf32>
    %164 = arith.addf %163, %162 : vector<8x128xf32>
    %165 = arith.divf %163, %164 : vector<8x128xf32>
    %166 = vector.extract_strided_slice %159 {offsets = [0, 128], sizes = [8, 128], strides = [1, 1]} : vector<8x512xf32> to vector<8x128xf32>
    %167 = arith.negf %166 : vector<8x128xf32>
    %168 = math.exp %167 : vector<8x128xf32>
    %cst_32 = arith.constant 1.000000e+00 : f32
    %169 = vector.broadcast %cst_32 : f32 to vector<8x128xf32>
    %170 = arith.addf %169, %168 : vector<8x128xf32>
    %171 = arith.divf %169, %170 : vector<8x128xf32>
    %172 = vector.extract_strided_slice %159 {offsets = [0, 256], sizes = [8, 128], strides = [1, 1]} : vector<8x512xf32> to vector<8x128xf32>
    %173 = math.tanh %172 : vector<8x128xf32>
    %174 = vector.extract_strided_slice %159 {offsets = [0, 384], sizes = [8, 128], strides = [1, 1]} : vector<8x512xf32> to vector<8x128xf32>
    %175 = arith.negf %174 : vector<8x128xf32>
    %176 = math.exp %175 : vector<8x128xf32>
    %cst_33 = arith.constant 1.000000e+00 : f32
    %177 = vector.broadcast %cst_33 : f32 to vector<8x128xf32>
    %178 = arith.addf %177, %176 : vector<8x128xf32>
    %179 = arith.divf %177, %178 : vector<8x128xf32>
    %180 = arith.mulf %171, %153 : vector<8x128xf32>
    %181 = arith.mulf %165, %173 : vector<8x128xf32>
    %182 = arith.addf %180, %181 : vector<8x128xf32>
    %183 = math.tanh %182 : vector<8x128xf32>
    %184 = arith.mulf %179, %183 : vector<8x128xf32>
    %185 = vector.extract_strided_slice %7 {offsets = [0, 6, 0], sizes = [8, 1, 512], strides = [1, 1, 1]} : vector<8x8x512xf32> to vector<8x1x512xf32>
    %186 = vector.shape_cast %185 : vector<8x1x512xf32> to vector<8x512xf32>
    %cst_34 = arith.constant dense<0.000000e+00> : vector<8x512xf32>
    %187 = tpu.matmul %184, %8, %cst_34 {dimension_numbers = #tpu.dot_dimension_numbers<[1], [0], [0], [1], [0, 0, 1, 1], [], []>} : vector<8x128xf32>, vector<128x512xf32>, vector<8x512xf32> -> vector<8x512xf32>
    %188 = arith.addf %186, %187 : vector<8x512xf32>
    %189 = vector.extract_strided_slice %188 {offsets = [0, 0], sizes = [8, 128], strides = [1, 1]} : vector<8x512xf32> to vector<8x128xf32>
    %190 = arith.negf %189 : vector<8x128xf32>
    %191 = math.exp %190 : vector<8x128xf32>
    %cst_35 = arith.constant 1.000000e+00 : f32
    %192 = vector.broadcast %cst_35 : f32 to vector<8x128xf32>
    %193 = arith.addf %192, %191 : vector<8x128xf32>
    %194 = arith.divf %192, %193 : vector<8x128xf32>
    %195 = vector.extract_strided_slice %188 {offsets = [0, 128], sizes = [8, 128], strides = [1, 1]} : vector<8x512xf32> to vector<8x128xf32>
    %196 = arith.negf %195 : vector<8x128xf32>
    %197 = math.exp %196 : vector<8x128xf32>
    %cst_36 = arith.constant 1.000000e+00 : f32
    %198 = vector.broadcast %cst_36 : f32 to vector<8x128xf32>
    %199 = arith.addf %198, %197 : vector<8x128xf32>
    %200 = arith.divf %198, %199 : vector<8x128xf32>
    %201 = vector.extract_strided_slice %188 {offsets = [0, 256], sizes = [8, 128], strides = [1, 1]} : vector<8x512xf32> to vector<8x128xf32>
    %202 = math.tanh %201 : vector<8x128xf32>
    %203 = vector.extract_strided_slice %188 {offsets = [0, 384], sizes = [8, 128], strides = [1, 1]} : vector<8x512xf32> to vector<8x128xf32>
    %204 = arith.negf %203 : vector<8x128xf32>
    %205 = math.exp %204 : vector<8x128xf32>
    %cst_37 = arith.constant 1.000000e+00 : f32
    %206 = vector.broadcast %cst_37 : f32 to vector<8x128xf32>
    %207 = arith.addf %206, %205 : vector<8x128xf32>
    %208 = arith.divf %206, %207 : vector<8x128xf32>
    %209 = arith.mulf %200, %182 : vector<8x128xf32>
    %210 = arith.mulf %194, %202 : vector<8x128xf32>
    %211 = arith.addf %209, %210 : vector<8x128xf32>
    %212 = math.tanh %211 : vector<8x128xf32>
    %213 = arith.mulf %208, %212 : vector<8x128xf32>
    %214 = vector.extract_strided_slice %7 {offsets = [0, 7, 0], sizes = [8, 1, 512], strides = [1, 1, 1]} : vector<8x8x512xf32> to vector<8x1x512xf32>
    %215 = vector.shape_cast %214 : vector<8x1x512xf32> to vector<8x512xf32>
    %cst_38 = arith.constant dense<0.000000e+00> : vector<8x512xf32>
    %216 = tpu.matmul %213, %8, %cst_38 {dimension_numbers = #tpu.dot_dimension_numbers<[1], [0], [0], [1], [0, 0, 1, 1], [], []>} : vector<8x128xf32>, vector<128x512xf32>, vector<8x512xf32> -> vector<8x512xf32>
    %217 = arith.addf %215, %216 : vector<8x512xf32>
    %218 = vector.extract_strided_slice %217 {offsets = [0, 0], sizes = [8, 128], strides = [1, 1]} : vector<8x512xf32> to vector<8x128xf32>
    %219 = arith.negf %218 : vector<8x128xf32>
    %220 = math.exp %219 : vector<8x128xf32>
    %cst_39 = arith.constant 1.000000e+00 : f32
    %221 = vector.broadcast %cst_39 : f32 to vector<8x128xf32>
    %222 = arith.addf %221, %220 : vector<8x128xf32>
    %223 = arith.divf %221, %222 : vector<8x128xf32>
    %224 = vector.extract_strided_slice %217 {offsets = [0, 128], sizes = [8, 128], strides = [1, 1]} : vector<8x512xf32> to vector<8x128xf32>
    %225 = arith.negf %224 : vector<8x128xf32>
    %226 = math.exp %225 : vector<8x128xf32>
    %cst_40 = arith.constant 1.000000e+00 : f32
    %227 = vector.broadcast %cst_40 : f32 to vector<8x128xf32>
    %228 = arith.addf %227, %226 : vector<8x128xf32>
    %229 = arith.divf %227, %228 : vector<8x128xf32>
    %230 = vector.extract_strided_slice %217 {offsets = [0, 256], sizes = [8, 128], strides = [1, 1]} : vector<8x512xf32> to vector<8x128xf32>
    %231 = math.tanh %230 : vector<8x128xf32>
    %232 = vector.extract_strided_slice %217 {offsets = [0, 384], sizes = [8, 128], strides = [1, 1]} : vector<8x512xf32> to vector<8x128xf32>
    %233 = arith.negf %232 : vector<8x128xf32>
    %234 = math.exp %233 : vector<8x128xf32>
    %cst_41 = arith.constant 1.000000e+00 : f32
    %235 = vector.broadcast %cst_41 : f32 to vector<8x128xf32>
    %236 = arith.addf %235, %234 : vector<8x128xf32>
    %237 = arith.divf %235, %236 : vector<8x128xf32>
    %238 = arith.mulf %229, %211 : vector<8x128xf32>
    %239 = arith.mulf %223, %231 : vector<8x128xf32>
    %240 = arith.addf %238, %239 : vector<8x128xf32>
    %241 = math.tanh %240 : vector<8x128xf32>
    %242 = arith.mulf %237, %241 : vector<8x128xf32>
    %c0_42 = arith.constant 0 : index
    %c0_43 = arith.constant 0 : index
    %243 = vector.load %arg5[%c0_42, %c0_43] : memref<128x128xf32, #tpu.memory_space<vmem>>, vector<128x128xf32>
    %c0_44 = arith.constant 0 : index
    %c0_45 = arith.constant 0 : index
    %244 = vector.load %arg6[%c0_44, %c0_45] : memref<1x128xf32, #tpu.memory_space<vmem>>, vector<1x128xf32>
    %cst_46 = arith.constant dense<0.000000e+00> : vector<8x128xf32>
    %245 = tpu.matmul %242, %243, %cst_46 {dimension_numbers = #tpu.dot_dimension_numbers<[1], [0], [0], [1], [0, 0, 1, 1], [], []>} : vector<8x128xf32>, vector<128x128xf32>, vector<8x128xf32> -> vector<8x128xf32>
    %246 = vector.broadcast %244 : vector<1x128xf32> to vector<8x128xf32>
    %247 = arith.addf %245, %246 : vector<8x128xf32>
    %cst_47 = arith.constant 0.000000e+00 : f32
    %248 = vector.broadcast %cst_47 : f32 to vector<8x128xf32>
    %249 = arith.maximumf %247, %248 : vector<8x128xf32>
    %cst_48 = arith.constant dense<0.000000e+00> : vector<8x128xf32>
    %250 = tpu.matmul %249, %243, %cst_48 {dimension_numbers = #tpu.dot_dimension_numbers<[1], [0], [0], [1], [0, 0, 1, 1], [], []>} : vector<8x128xf32>, vector<128x128xf32>, vector<8x128xf32> -> vector<8x128xf32>
    %251 = vector.broadcast %244 : vector<1x128xf32> to vector<8x128xf32>
    %252 = arith.addf %250, %251 : vector<8x128xf32>
    %c0_49 = arith.constant 0 : index
    %c0_50 = arith.constant 0 : index
    %253 = vector.load %arg7[%c0_49, %c0_50] : memref<128x128xf32, #tpu.memory_space<vmem>>, vector<128x128xf32>
    %cst_51 = arith.constant dense<0.000000e+00> : vector<8x128xf32>
    %254 = tpu.matmul %252, %253, %cst_51 {dimension_numbers = #tpu.dot_dimension_numbers<[1], [0], [0], [1], [0, 0, 1, 1], [], []>} : vector<8x128xf32>, vector<128x128xf32>, vector<8x128xf32> -> vector<8x128xf32>
    %c0_52 = arith.constant 0 : index
    %c0_53 = arith.constant 0 : index
    %255 = vector.load %arg8[%c0_52, %c0_53] : memref<1x128xf32, #tpu.memory_space<vmem>>, vector<1x128xf32>
    %256 = vector.broadcast %255 : vector<1x128xf32> to vector<8x128xf32>
    %257 = arith.addf %254, %256 : vector<8x128xf32>
    %c0_54 = arith.constant 0 : index
    %c0_55 = arith.constant 0 : index
    %258 = vector.load %arg9[%c0_54, %c0_55] : memref<8x128xf32, #tpu.memory_space<vmem>>, vector<8x128xf32>
    tpu.vector_store %arg9[%c0_54, %c0_55], %257 {strides = array<i32>} : memref<8x128xf32, #tpu.memory_space<vmem>>, vector<8x128xf32>,
    return
  }
  func.func @transform_0(%arg0: i32) -> (i32, i32, i32) {
    %c0_i32 = arith.constant 0 : i32
    %c0_i32_0 = arith.constant 0 : i32
    %c0_i32_1 = arith.constant 0 : i32
    return %arg0, %c0_i32, %c0_i32_0 : i32, i32, i32
  }
  func.func @transform_1(%arg0: i32) -> (i32, i32) {
    %c0_i32 = arith.constant 0 : i32
    %c0_i32_0 = arith.constant 0 : i32
    %c0_i32_1 = arith.constant 0 : i32
    return %c0_i32, %c0_i32_0 : i32, i32
  }
  func.func @transform_2(%arg0: i32) -> (i32, i32) {
    %c0_i32 = arith.constant 0 : i32
    %c0_i32_0 = arith.constant 0 : i32
    %c0_i32_1 = arith.constant 0 : i32
    return %c0_i32, %c0_i32_0 : i32, i32
  }
  func.func @transform_3(%arg0: i32) -> (i32, i32) {
    %c0_i32 = arith.constant 0 : i32
    %c0_i32_0 = arith.constant 0 : i32
    %c0_i32_1 = arith.constant 0 : i32
    return %c0_i32, %c0_i32_0 : i32, i32
  }
  func.func @transform_4(%arg0: i32) -> (i32, i32) {
    %c0_i32 = arith.constant 0 : i32
    %c0_i32_0 = arith.constant 0 : i32
    %c0_i32_1 = arith.constant 0 : i32
    return %c0_i32, %c0_i32_0 : i32, i32
  }
  func.func @transform_5(%arg0: i32) -> (i32, i32) {
    %c0_i32 = arith.constant 0 : i32
    %c0_i32_0 = arith.constant 0 : i32
    %c0_i32_1 = arith.constant 0 : i32
    return %c0_i32, %c0_i32_0 : i32, i32
  }
  func.func @transform_6(%arg0: i32) -> (i32, i32) {
    %c0_i32 = arith.constant 0 : i32
    %c0_i32_0 = arith.constant 0 : i32
    %c0_i32_1 = arith.constant 0 : i32
    return %c0_i32, %c0_i32_0 : i32, i32
  }
  func.func @transform_7(%arg0: i32) -> (i32, i32) {
    %c0_i32 = arith.constant 0 : i32
    %c0_i32_0 = arith.constant 0 : i32
    %c0_i32_1 = arith.constant 0 : i32
    return %c0_i32, %c0_i32_0 : i32, i32
  }
  func.func @transform_8(%arg0: i32) -> (i32, i32) {
    %c0_i32 = arith.constant 0 : i32
    %c0_i32_0 = arith.constant 0 : i32
    return %arg0, %c0_i32 : i32, i32
  }
}

</mosaic_0001>

<llo_original>
// kernel: tpu_custom_call.1
$region0: #{tpu_custom_call.1}
  #allocation0 [shape = 'u32[]', space=smem, size = 0x4, offset = 0x4, fixed_abs, tag = 'smem constant byte address 0x4 - core index']
  #allocation1 [shape = 'u32[144,128]{1,0:T(1,128)}', space=vmem, size = 0x12000, scoped, tag = 'internal scratch']
  %s0 = inlined_call_operand.hbm [shape: f32[8,8,64], index: 0, kind: input, shape index: {}]
  %s1 = inlined_call_operand.hbm [shape: f32[64,512], index: 1, kind: input, shape index: {}]
  %s2 = inlined_call_operand.hbm [shape: f32[128,512], index: 2, kind: input, shape index: {}]
  %s3 = inlined_call_operand.vmem [shape: f32[1,512], index: 3, kind: input, shape index: {}]
  %s4 = inlined_call_operand.hbm [shape: f32[128,128], index: 4, kind: input, shape index: {}]
  %s5 = inlined_call_operand.vmem [shape: f32[1,128], index: 5, kind: input, shape index: {}]
  %s6 = inlined_call_operand.hbm [shape: f32[128,128], index: 6, kind: input, shape index: {}]
  %s7 = inlined_call_operand.vmem [shape: f32[1,128], index: 7, kind: input, shape index: {}]
  %s8 = inlined_call_operand.hbm [shape: f32[8,128], index: 8, kind: output, shape index: {}]
  %s9 = sld [smem:[#allocation0]]
  $region62: #{tpu_custom_call.1} parent=0
    _
  %s11 = ssub.s32 1, %s9
  %s12 = scalar_select 0, %s11, %s9
  $region1: #{tpu_custom_call.1} parent=0
    #allocation2 [shape = 'u8[32768]{0}', space=vmem, size = 0x8000, scoped, tag = 'input window, operand 0, single buffered']
    #allocation3 [shape = 's32[1]{0}', space=sflag, size = 0x4, scoped, tag = 'scoped memory for tpu_custom_call.1']
    #allocation4 [shape = 's32[1]{0}', space=sflag, size = 0x4, scoped, tag = 'scoped memory for tpu_custom_call.1']
    #allocation5 [shape = 'u8[131072]{0}', space=vmem, size = 0x20000, scoped, tag = 'input window, operand 1, single buffered']
    #allocation6 [shape = 's32[1]{0}', space=sflag, size = 0x4, scoped, tag = 'scoped memory for tpu_custom_call.1']
    #allocation7 [shape = 'u8[262144]{0}', space=vmem, size = 0x40000, scoped, tag = 'input window, operand 2, single buffered']
    #allocation8 [shape = 'u8[65536]{0}', space=vmem, size = 0x10000, scoped, tag = 'input window, operand 4, single buffered']
    #allocation9 [shape = 's32[1]{0}', space=sflag, size = 0x4, scoped, tag = 'scoped memory for tpu_custom_call.1']
    #allocation10 [shape = 'u8[65536]{0}', space=vmem, size = 0x10000, scoped, tag = 'input window, operand 6, single buffered']
    #allocation11 [shape = 'u8[4096]{0}', space=vmem, size = 0x1000, scoped, tag = 'output window, operand 0, single buffered']
    %13 = vsyncpa [#allocation3], 0
    %14 = vsyncpa [#allocation6], 0
    %15 = vsyncpa [#allocation9], 0
    %16 = vsyncpa [#allocation4], 0
    // Predicated region
    $region2: #{tpu_custom_call.1} parent=1 // pred_check
      _
    $region3: #{tpu_custom_call.1} parent=1 // pred_check_branch
      %18 = sbr.rel (0) target = $region5
    $region4: #{tpu_custom_call.1} parent=1 // pred_region
      %s20 = ssub.s32 1024, 1024
      %21 = vsyncadd [#allocation3], %s20
      %s22 = sshll.u32 [#allocation2], 4
      %s23 = int_to_ptr.vmem [resolvable:$true] %s22
      %28 = dma.hbm_to_vmem [thread:$0]  %s0, 1024, %s23, [#allocation3], 128, 128, 8
    $region5: #{tpu_custom_call.1} parent=1 // pred_fallthru
      _
    // Predicated region
    $region6: #{tpu_custom_call.1} parent=1 // pred_check
      _
    $region7: #{tpu_custom_call.1} parent=1 // pred_check_branch
      %30 = sbr.rel (0) target = $region9
    $region8: #{tpu_custom_call.1} parent=1 // pred_region
      %s32 = ssub.s32 4096, 4096
      %33 = vsyncadd [#allocation6], %s32
      %s34 = sshll.u32 [#allocation5], 4
      %s35 = int_to_ptr.vmem [resolvable:$true] %s34
      %40 = dma.hbm_to_vmem [thread:$0]  %s1, 4096, %s35, [#allocation6], 512, 512, 32
    $region9: #{tpu_custom_call.1} parent=1 // pred_fallthru
      _
    // Predicated region
    $region10: #{tpu_custom_call.1} parent=1 // pred_check
      _
    $region11: #{tpu_custom_call.1} parent=1 // pred_check_branch
      %42 = sbr.rel (0) target = $region13
    $region12: #{tpu_custom_call.1} parent=1 // pred_region
      %s44 = ssub.s32 8192, 8192
      %45 = vsyncadd [#allocation6], %s44
      %s46 = sshll.u32 [#allocation7], 4
      %s47 = int_to_ptr.vmem [resolvable:$true] %s46
      %52 = dma.hbm_to_vmem [thread:$0]  %s2, 8192, %s47, [#allocation6], 512, 512, 32
    $region13: #{tpu_custom_call.1} parent=1 // pred_fallthru
      _
    // Predicated region
    $region14: #{tpu_custom_call.1} parent=1 // pred_check
      _
    $region15: #{tpu_custom_call.1} parent=1 // pred_check_branch
      %54 = sbr.rel (0) target = $region17
    $region16: #{tpu_custom_call.1} parent=1 // pred_region
      _
    $region17: #{tpu_custom_call.1} parent=1 // pred_fallthru
      _
    // Predicated region
    $region18: #{tpu_custom_call.1} parent=1 // pred_check
      _
    $region19: #{tpu_custom_call.1} parent=1 // pred_check_branch
      %56 = sbr.rel (0) target = $region21
    $region20: #{tpu_custom_call.1} parent=1 // pred_region
      %s58 = ssub.s32 2048, 2048
      %59 = vsyncadd [#allocation9], %s58
      %s60 = sshll.u32 [#allocation8], 4
      %s61 = int_to_ptr.vmem [resolvable:$true] %s60
      %66 = dma.hbm_to_vmem [thread:$0]  %s4, 2048, %s61, [#allocation9], 128, 128, 8
    $region21: #{tpu_custom_call.1} parent=1 // pred_fallthru
      _
    // Predicated region
    $region22: #{tpu_custom_call.1} parent=1 // pred_check
      _
    $region23: #{tpu_custom_call.1} parent=1 // pred_check_branch
      %68 = sbr.rel (0) target = $region25
    $region24: #{tpu_custom_call.1} parent=1 // pred_region
      _
    $region25: #{tpu_custom_call.1} parent=1 // pred_fallthru
      _
    // Predicated region
    $region26: #{tpu_custom_call.1} parent=1 // pred_check
      _
    $region27: #{tpu_custom_call.1} parent=1 // pred_check_branch
      %70 = sbr.rel (0) target = $region29
    $region28: #{tpu_custom_call.1} parent=1 // pred_region
      %s72 = ssub.s32 2048, 2048
      %73 = vsyncadd [#allocation9], %s72
      %s74 = sshll.u32 [#allocation10], 4
      %s75 = int_to_ptr.vmem [resolvable:$true] %s74
      %80 = dma.hbm_to_vmem [thread:$0]  %s6, 2048, %s75, [#allocation9], 128, 128, 8
    $region29: #{tpu_custom_call.1} parent=1 // pred_fallthru
      _
    // Predicated region
    $region30: #{tpu_custom_call.1} parent=1 // pred_check
      _
    $region31: #{tpu_custom_call.1} parent=1 // pred_check_branch
      %82 = sbr.rel (0) target = $region33
    $region32: #{tpu_custom_call.1} parent=1 // pred_region
      _
    $region33: #{tpu_custom_call.1} parent=1 // pred_fallthru
      _
    // Predicated region
    $region34: #{tpu_custom_call.1} parent=1 // pred_check
      _
    $region35: #{tpu_custom_call.1} parent=1 // pred_check_branch
      %84 = sbr.rel (0) target = $region37
    $region36: #{tpu_custom_call.1} parent=1 // pred_region
      %85 = dma.done [#allocation3], 1024
    $region37: #{tpu_custom_call.1} parent=1 // pred_fallthru
      _
    // Predicated region
    $region38: #{tpu_custom_call.1} parent=1 // pred_check
      _
    $region39: #{tpu_custom_call.1} parent=1 // pred_check_branch
      %87 = sbr.rel (0) target = $region41
    $region40: #{tpu_custom_call.1} parent=1 // pred_region
      %88 = dma.done [#allocation6], 4096
    $region41: #{tpu_custom_call.1} parent=1 // pred_fallthru
      _
    // Predicated region
    $region42: #{tpu_custom_call.1} parent=1 // pred_check
      _
    $region43: #{tpu_custom_call.1} parent=1 // pred_check_branch
      %90 = sbr.rel (0) target = $region45
    $region44: #{tpu_custom_call.1} parent=1 // pred_region
      %91 = dma.done [#allocation6], 8192
    $region45: #{tpu_custom_call.1} parent=1 // pred_fallthru
      _
    // Predicated region
    $region46: #{tpu_custom_call.1} parent=1 // pred_check
      _
    $region47: #{tpu_custom_call.1} parent=1 // pred_check_branch
      %93 = sbr.rel (0) target = $region49
    $region48: #{tpu_custom_call.1} parent=1 // pred_region
      %94 = dma.done [#allocation9], 2048
    $region49: #{tpu_custom_call.1} parent=1 // pred_fallthru
      _
    // Predicated region
    $region50: #{tpu_custom_call.1} parent=1 // pred_check
      _
    $region51: #{tpu_custom_call.1} parent=1 // pred_check_branch
      %96 = sbr.rel (0) target = $region53
    $region52: #{tpu_custom_call.1} parent=1 // pred_region
      %97 = dma.done [#allocation9], 2048
    $region53: #{tpu_custom_call.1} parent=1 // pred_fallthru
      _
    %v98 = vld [vmem:[#allocation2] sm:$0xff]
    %v99 = vld [vmem:[#allocation2 + $0x8] sm:$0xff]
    %v100 = vld [vmem:[#allocation2 + $0x10] sm:$0xff]
    %v101 = vld [vmem:[#allocation2 + $0x18] sm:$0xff]
    %v102 = vld [vmem:[#allocation2 + $0x20] sm:$0xff]
    %v103 = vld [vmem:[#allocation2 + $0x28] sm:$0xff]
    %v104 = vld [vmem:[#allocation2 + $0x30] sm:$0xff]
    %v105 = vld [vmem:[#allocation2 + $0x38] sm:$0xff]
    %v106 = vld [vmem:[#allocation5] sm:$0xff]
    %v107 = vld [vmem:[#allocation5 + $0x8] sm:$0xff]
    %v108 = vld [vmem:[#allocation5 + $0x10] sm:$0xff]
    %v109 = vld [vmem:[#allocation5 + $0x18] sm:$0xff]
    %v110 = vld [vmem:[#allocation5 + $0x20] sm:$0xff]
    %v111 = vld [vmem:[#allocation5 + $0x28] sm:$0xff]
    %v112 = vld [vmem:[#allocation5 + $0x30] sm:$0xff]
    %v113 = vld [vmem:[#allocation5 + $0x38] sm:$0xff]
    %v114 = vld [vmem:[#allocation5 + $0x40] sm:$0xff]
    %v115 = vld [vmem:[#allocation5 + $0x48] sm:$0xff]
    %v116 = vld [vmem:[#allocation5 + $0x50] sm:$0xff]
    %v117 = vld [vmem:[#allocation5 + $0x58] sm:$0xff]
    %v118 = vld [vmem:[#allocation5 + $0x60] sm:$0xff]
    %v119 = vld [vmem:[#allocation5 + $0x68] sm:$0xff]
    %v120 = vld [vmem:[#allocation5 + $0x70] sm:$0xff]
    %v121 = vld [vmem:[#allocation5 + $0x78] sm:$0xff]
    %v122 = vld [vmem:[#allocation5 + $0x80] sm:$0xff]
    %v123 = vld [vmem:[#allocation5 + $0x88] sm:$0xff]
    %v124 = vld [vmem:[#allocation5 + $0x90] sm:$0xff]
    %v125 = vld [vmem:[#allocation5 + $0x98] sm:$0xff]
    %v126 = vld [vmem:[#allocation5 + $0xa0] sm:$0xff]
    %v127 = vld [vmem:[#allocation5 + $0xa8] sm:$0xff]
    %v128 = vld [vmem:[#allocation5 + $0xb0] sm:$0xff]
    %v129 = vld [vmem:[#allocation5 + $0xb8] sm:$0xff]
    %v130 = vld [vmem:[#allocation5 + $0xc0] sm:$0xff]
    %v131 = vld [vmem:[#allocation5 + $0xc8] sm:$0xff]
    %v132 = vld [vmem:[#allocation5 + $0xd0] sm:$0xff]
    %v133 = vld [vmem:[#allocation5 + $0xd8] sm:$0xff]
    %v134 = vld [vmem:[#allocation5 + $0xe0] sm:$0xff]
    %v135 = vld [vmem:[#allocation5 + $0xe8] sm:$0xff]
    %v136 = vld [vmem:[#allocation5 + $0xf0] sm:$0xff]
    %v137 = vld [vmem:[#allocation5 + $0xf8] sm:$0xff]
    %v138 = vld [vmem:[%s3] sm:$0xf]
    %v140 = vlaneseq
    %v141 = vshrl.u32 %v140, 7
    %v142 = vsub.s32 0, %v141
    %v143 = vrot.slane %v138, %v142
    %v144 = vlaneseq
    %v145 = vshrl.u32 %v144, 7
    %v146 = vsub.s32 1, %v145
    %v147 = vrot.slane %v138, %v146
    %v148 = vlaneseq
    %v149 = vshrl.u32 %v148, 7
    %v150 = vsub.s32 2, %v149
    %v151 = vrot.slane %v138, %v150
    %v152 = vlaneseq
    %v153 = vshrl.u32 %v152, 7
    %v154 = vsub.s32 3, %v153
    %v155 = vrot.slane %v138, %v154
    %vm160 = vcmask 523264
    %v162 = vsel %vm160, %v98, 0
    %v165 = vsel %vm160, %v99, 0
    %v168 = vsel %vm160, %v100, 0
    %v171 = vsel %vm160, %v101, 0
    %v174 = vsel %vm160, %v102, 0
    %v177 = vsel %vm160, %v103, 0
    %v180 = vsel %vm160, %v104, 0
    %v183 = vsel %vm160, %v105, 0
    %185 = vmatprep.subr.mxu0 0.0
    %186 = vmatpush1.msra.mxu0 0.0
    %187 = vmatprep.subr.mxu0 0.0
    %188 = vmatpush1.msra.mxu0 0.0
    %189 = vmatprep.subr.mxu0 0.0
    %190 = vmatpush1.msra.mxu0 0.0
    %191 = vmatprep.subr.mxu0 0.0
    %192 = vmatpush1.msra.mxu0 0.0
    %193 = vmatprep.subr.mxu0 0.0
    %194 = vmatpush1.msra.mxu0 0.0
    %195 = vmatprep.subr.mxu0 0.0
    %196 = vmatpush1.msra.mxu0 0.0
    %197 = vmatprep.subr.mxu0 0.0
    %198 = vmatpush1.msra.mxu0 0.0
    %199 = vmatprep.subr.mxu0 0.0
    %200 = vmatpush1.msra.mxu0 0.0
    %201 = vmatprep.subr.mxu0 %v135
    %202 = vmatpush1.msra.mxu0 %v134
    %203 = vmatprep.subr.mxu0 %v131
    %204 = vmatpush1.msra.mxu0 %v130
    %205 = vmatprep.subr.mxu0 %v127
    %206 = vmatpush1.msra.mxu0 %v126
    %207 = vmatprep.subr.mxu0 %v123
    %208 = vmatpush1.msra.mxu0 %v122
    %209 = vmatprep.subr.mxu0 %v119
    %210 = vmatpush1.msra.mxu0 %v118
    %211 = vmatprep.subr.mxu0 %v115
    %212 = vmatpush1.msra.mxu0 %v114
    %213 = vmatprep.subr.mxu0 %v111
    %214 = vmatpush1.msra.mxu0 %v110
    %215 = vmatprep.subr.mxu0 %v107
    %216 = vmatpush1.msra.mxu0 %v106
    %217 = vmatprep.subr.mxu0 0.0
    %218 = vmatpush2.msra.mxu0 0.0
    %219 = vmatprep.subr.mxu0 0.0
    %220 = vmatpush2.msra.mxu0 0.0
    %221 = vmatprep.subr.mxu0 0.0
    %222 = vmatpush2.msra.mxu0 0.0
    %223 = vmatprep.subr.mxu0 0.0
    %224 = vmatpush2.msra.mxu0 0.0
    %225 = vmatprep.subr.mxu0 0.0
    %226 = vmatpush2.msra.mxu0 0.0
    %227 = vmatprep.subr.mxu0 0.0
    %228 = vmatpush2.msra.mxu0 0.0
    %229 = vmatprep.subr.mxu0 0.0
    %230 = vmatpush2.msra.mxu0 0.0
    %231 = vmatprep.subr.mxu0 0.0
    %232 = vmatpush2.msra.mxu0 0.0
    %233 = vmatprep.subr.mxu0 0.0
    %234 = vmatpush2.msra.mxu0 0.0
    %235 = vmatprep.subr.mxu0 0.0
    %236 = vmatpush2.msra.mxu0 0.0
    %237 = vmatprep.subr.mxu0 0.0
    %238 = vmatpush2.msra.mxu0 0.0
    %239 = vmatprep.subr.mxu0 0.0
    %240 = vmatpush2.msra.mxu0 0.0
    %241 = vmatprep.subr.mxu0 0.0
    %242 = vmatpush2.msra.mxu0 0.0
    %243 = vmatprep.subr.mxu0 0.0
    %244 = vmatpush2.msra.mxu0 0.0
    %245 = vmatprep.subr.mxu0 0.0
    %246 = vmatpush2.msra.mxu0 0.0
    %247 = vmatprep.subr.mxu0 0.0
    %248 = vmatpush2.msra.mxu0 0.0
    %249 = vmatprep.mubr.f32.mxu0 0.0
    %250 = vmatmul.mubr.f32.gmra.mxu0 %v162
    %v251 = vpop.f32.mrf.mxu0
    %v252 = vadd.f32 %v143, %v251
    %v253 = vpop.f32.mrf.mxu0
    %v254 = vadd.f32 %v147, %v253
    %255 = vmatprep.mubr.f32.mxu0 0.0
    %256 = vmatmul.mubr.f32.gmra.mxu0 %v165
    %v257 = vpop.f32.mrf.mxu0
    %v258 = vadd.f32 %v143, %v257
    %v259 = vpop.f32.mrf.mxu0
    %v260 = vadd.f32 %v147, %v259
    %261 = vmatprep.mubr.f32.mxu0 0.0
    %262 = vmatmul.mubr.f32.gmra.mxu0 %v168
    %v263 = vpop.f32.mrf.mxu0
    %v264 = vadd.f32 %v143, %v263
    %v265 = vpop.f32.mrf.mxu0
    %v266 = vadd.f32 %v147, %v265
    %267 = vmatprep.mubr.f32.mxu0 0.0
    %268 = vmatmul.mubr.f32.gmra.mxu0 %v171
    %v269 = vpop.f32.mrf.mxu0
    %v270 = vadd.f32 %v143, %v269
    %v271 = vpop.f32.mrf.mxu0
    %v272 = vadd.f32 %v147, %v271
    %273 = vmatprep.mubr.f32.mxu0 0.0
    %274 = vmatmul.mubr.f32.gmra.mxu0 %v174
    %v275 = vpop.f32.mrf.mxu0
    %v276 = vadd.f32 %v143, %v275
    %v277 = vpop.f32.mrf.mxu0
    %v278 = vadd.f32 %v147, %v277
    %279 = vmatprep.mubr.f32.mxu0 0.0
    %280 = vmatmul.mubr.f32.gmra.mxu0 %v177
    %v281 = vpop.f32.mrf.mxu0
    %v282 = vadd.f32 %v143, %v281
    %v283 = vpop.f32.mrf.mxu0
    %v284 = vadd.f32 %v147, %v283
    %285 = vmatprep.mubr.f32.mxu0 0.0
    %286 = vmatmul.mubr.f32.gmra.mxu0 %v180
    %v287 = vpop.f32.mrf.mxu0
    %v288 = vadd.f32 %v143, %v287
    %v289 = vpop.f32.mrf.mxu0
    %v290 = vadd.f32 %v147, %v289
    %291 = vmatprep.mubr.f32.mxu0 0.0
    %292 = vmatmul.mubr.f32.gmra.mxu0 %v183
    %v293 = vpop.f32.mrf.mxu0
    %v294 = vadd.f32 %v143, %v293
    %v295 = vpop.f32.mrf.mxu0
    %v296 = vadd.f32 %v147, %v295
    %297 = vdwg.mxu0
    %298 = vmatprep.subr.mxu0 0.0
    %299 = vmatpush1.msra.mxu0 0.0
    %300 = vmatprep.subr.mxu0 0.0
    %301 = vmatpush1.msra.mxu0 0.0
    %302 = vmatprep.subr.mxu0 0.0
    %303 = vmatpush1.msra.mxu0 0.0
    %304 = vmatprep.subr.mxu0 0.0
    %305 = vmatpush1.msra.mxu0 0.0
    %306 = vmatprep.subr.mxu0 0.0
    %307 = vmatpush1.msra.mxu0 0.0
    %308 = vmatprep.subr.mxu0 0.0
    %309 = vmatpush1.msra.mxu0 0.0
    %310 = vmatprep.subr.mxu0 0.0
    %311 = vmatpush1.msra.mxu0 0.0
    %312 = vmatprep.subr.mxu0 0.0
    %313 = vmatpush1.msra.mxu0 0.0
    %314 = vmatprep.subr.mxu0 %v137
    %315 = vmatpush1.msra.mxu0 %v136
    %316 = vmatprep.subr.mxu0 %v133
    %317 = vmatpush1.msra.mxu0 %v132
    %318 = vmatprep.subr.mxu0 %v129
    %319 = vmatpush1.msra.mxu0 %v128
    %320 = vmatprep.subr.mxu0 %v125
    %321 = vmatpush1.msra.mxu0 %v124
    %322 = vmatprep.subr.mxu0 %v121
    %323 = vmatpush1.msra.mxu0 %v120
    %324 = vmatprep.subr.mxu0 %v117
    %325 = vmatpush1.msra.mxu0 %v116
    %326 = vmatprep.subr.mxu0 %v113
    %327 = vmatpush1.msra.mxu0 %v112
    %328 = vmatprep.subr.mxu0 %v109
    %329 = vmatpush1.msra.mxu0 %v108
    %330 = vmatprep.subr.mxu0 0.0
    %331 = vmatpush2.msra.mxu0 0.0
    %332 = vmatprep.subr.mxu0 0.0
    %333 = vmatpush2.msra.mxu0 0.0
    %334 = vmatprep.subr.mxu0 0.0
    %335 = vmatpush2.msra.mxu0 0.0
    %336 = vmatprep.subr.mxu0 0.0
    %337 = vmatpush2.msra.mxu0 0.0
    %338 = vmatprep.subr.mxu0 0.0
    %339 = vmatpush2.msra.mxu0 0.0
    %340 = vmatprep.subr.mxu0 0.0
    %341 = vmatpush2.msra.mxu0 0.0
    %342 = vmatprep.subr.mxu0 0.0
    %343 = vmatpush2.msra.mxu0 0.0
    %344 = vmatprep.subr.mxu0 0.0
    %345 = vmatpush2.msra.mxu0 0.0
    %346 = vmatprep.subr.mxu0 0.0
    %347 = vmatpush2.msra.mxu0 0.0
    %348 = vmatprep.subr.mxu0 0.0
    %349 = vmatpush2.msra.mxu0 0.0
    %350 = vmatprep.subr.mxu0 0.0
    %351 = vmatpush2.msra.mxu0 0.0
    %352 = vmatprep.subr.mxu0 0.0
    %353 = vmatpush2.msra.mxu0 0.0
    %354 = vmatprep.subr.mxu0 0.0
    %355 = vmatpush2.msra.mxu0 0.0
    %356 = vmatprep.subr.mxu0 0.0
    %357 = vmatpush2.msra.mxu0 0.0
    %358 = vmatprep.subr.mxu0 0.0
    %359 = vmatpush2.msra.mxu0 0.0
    %360 = vmatprep.subr.mxu0 0.0
    %361 = vmatpush2.msra.mxu0 0.0
    %362 = vmatprep.mubr.f32.mxu0 0.0
    %363 = vmatmul.mubr.f32.gmra.mxu0 %v162
    %v364 = vpop.f32.mrf.mxu0
    %v365 = vadd.f32 %v151, %v364
    %v366 = vpop.f32.mrf.mxu0
    %v367 = vadd.f32 %v155, %v366
    %368 = vmatprep.mubr.f32.mxu0 0.0
    %369 = vmatmul.mubr.f32.gmra.mxu0 %v165
    %v370 = vpop.f32.mrf.mxu0
    %v371 = vadd.f32 %v151, %v370
    %v372 = vpop.f32.mrf.mxu0
    %v373 = vadd.f32 %v155, %v372
    %374 = vmatprep.mubr.f32.mxu0 0.0
    %375 = vmatmul.mubr.f32.gmra.mxu0 %v168
    %v376 = vpop.f32.mrf.mxu0
    %v377 = vadd.f32 %v151, %v376
    %v378 = vpop.f32.mrf.mxu0
    %v379 = vadd.f32 %v155, %v378
    %380 = vmatprep.mubr.f32.mxu0 0.0
    %381 = vmatmul.mubr.f32.gmra.mxu0 %v171
    %v382 = vpop.f32.mrf.mxu0
    %v383 = vadd.f32 %v151, %v382
    %v384 = vpop.f32.mrf.mxu0
    %v385 = vadd.f32 %v155, %v384
    %386 = vmatprep.mubr.f32.mxu0 0.0
    %387 = vmatmul.mubr.f32.gmra.mxu0 %v174
    %v388 = vpop.f32.mrf.mxu0
    %v389 = vadd.f32 %v151, %v388
    %v390 = vpop.f32.mrf.mxu0
    %v391 = vadd.f32 %v155, %v390
    %392 = vmatprep.mubr.f32.mxu0 0.0
    %393 = vmatmul.mubr.f32.gmra.mxu0 %v177
    %v394 = vpop.f32.mrf.mxu0
    %v395 = vadd.f32 %v151, %v394
    %v396 = vpop.f32.mrf.mxu0
    %v397 = vadd.f32 %v155, %v396
    %398 = vmatprep.mubr.f32.mxu0 0.0
    %399 = vmatmul.mubr.f32.gmra.mxu0 %v180
    %v400 = vpop.f32.mrf.mxu0
    %v401 = vadd.f32 %v151, %v400
    %v402 = vpop.f32.mrf.mxu0
    %v403 = vadd.f32 %v155, %v402
    %404 = vmatprep.mubr.f32.mxu0 0.0
    %405 = vmatmul.mubr.f32.gmra.mxu0 %v183
    %v406 = vpop.f32.mrf.mxu0
    %v407 = vadd.f32 %v151, %v406
    %v408 = vpop.f32.mrf.mxu0
    %v409 = vadd.f32 %v155, %v408
    %410 = vdwg.mxu0
    %v411 = vld [vmem:[#allocation7] sm:$0xff]
    %v412 = vld [vmem:[#allocation7 + $0x8] sm:$0xff]
    %v413 = vld [vmem:[#allocation7 + $0x10] sm:$0xff]
    %v414 = vld [vmem:[#allocation7 + $0x18] sm:$0xff]
    %v415 = vld [vmem:[#allocation7 + $0x20] sm:$0xff]
    %v416 = vld [vmem:[#allocation7 + $0x28] sm:$0xff]
    %v417 = vld [vmem:[#allocation7 + $0x30] sm:$0xff]
    %v418 = vld [vmem:[#allocation7 + $0x38] sm:$0xff]
    %v419 = vld [vmem:[#allocation7 + $0x40] sm:$0xff]
    %v420 = vld [vmem:[#allocation7 + $0x48] sm:$0xff]
    %v421 = vld [vmem:[#allocation7 + $0x50] sm:$0xff]
    %v422 = vld [vmem:[#allocation7 + $0x58] sm:$0xff]
    %v423 = vld [vmem:[#allocation7 + $0x60] sm:$0xff]
    %v424 = vld [vmem:[#allocation7 + $0x68] sm:$0xff]
    %v425 = vld [vmem:[#allocation7 + $0x70] sm:$0xff]
    %v426 = vld [vmem:[#allocation7 + $0x78] sm:$0xff]
    %v427 = vld [vmem:[#allocation7 + $0x80] sm:$0xff]
    %v428 = vld [vmem:[#allocation7 + $0x88] sm:$0xff]
    %v429 = vld [vmem:[#allocation7 + $0x90] sm:$0xff]
    %v430 = vld [vmem:[#allocation7 + $0x98] sm:$0xff]
    %v431 = vld [vmem:[#allocation7 + $0xa0] sm:$0xff]
    %v432 = vld [vmem:[#allocation7 + $0xa8] sm:$0xff]
    %v433 = vld [vmem:[#allocation7 + $0xb0] sm:$0xff]
    %v434 = vld [vmem:[#allocation7 + $0xb8] sm:$0xff]
    %v435 = vld [vmem:[#allocation7 + $0xc0] sm:$0xff]
    %v436 = vld [vmem:[#allocation7 + $0xc8] sm:$0xff]
    %v437 = vld [vmem:[#allocation7 + $0xd0] sm:$0xff]
    %v438 = vld [vmem:[#allocation7 + $0xd8] sm:$0xff]
    %v439 = vld [vmem:[#allocation7 + $0xe0] sm:$0xff]
    %v440 = vld [vmem:[#allocation7 + $0xe8] sm:$0xff]
    %v441 = vld [vmem:[#allocation7 + $0xf0] sm:$0xff]
    %v442 = vld [vmem:[#allocation7 + $0xf8] sm:$0xff]
    %v443 = vld [vmem:[#allocation7 + $0x100] sm:$0xff]
    %v444 = vld [vmem:[#allocation7 + $0x108] sm:$0xff]
    %v445 = vld [vmem:[#allocation7 + $0x110] sm:$0xff]
    %v446 = vld [vmem:[#allocation7 + $0x118] sm:$0xff]
    %v447 = vld [vmem:[#allocation7 + $0x120] sm:$0xff]
    %v448 = vld [vmem:[#allocation7 + $0x128] sm:$0xff]
    %v449 = vld [vmem:[#allocation7 + $0x130] sm:$0xff]
    %v450 = vld [vmem:[#allocation7 + $0x138] sm:$0xff]
    %v451 = vld [vmem:[#allocation7 + $0x140] sm:$0xff]
    %v452 = vld [vmem:[#allocation7 + $0x148] sm:$0xff]
    %v453 = vld [vmem:[#allocation7 + $0x150] sm:$0xff]
    %v454 = vld [vmem:[#allocation7 + $0x158] sm:$0xff]
    %v455 = vld [vmem:[#allocation7 + $0x160] sm:$0xff]
    %v456 = vld [vmem:[#allocation7 + $0x168] sm:$0xff]
    %v457 = vld [vmem:[#allocation7 + $0x170] sm:$0xff]
    %v458 = vld [vmem:[#allocation7 + $0x178] sm:$0xff]
    %v459 = vld [vmem:[#allocation7 + $0x180] sm:$0xff]
    %v460 = vld [vmem:[#allocation7 + $0x188] sm:$0xff]
    %v461 = vld [vmem:[#allocation7 + $0x190] sm:$0xff]
    %v462 = vld [vmem:[#allocation7 + $0x198] sm:$0xff]
    %v463 = vld [vmem:[#allocation7 + $0x1a0] sm:$0xff]
    %v464 = vld [vmem:[#allocation7 + $0x1a8] sm:$0xff]
    %v465 = vld [vmem:[#allocation7 + $0x1b0] sm:$0xff]
    %v466 = vld [vmem:[#allocation7 + $0x1b8] sm:$0xff]
    %v467 = vld [vmem:[#allocation7 + $0x1c0] sm:$0xff]
    %v468 = vld [vmem:[#allocation7 + $0x1c8] sm:$0xff]
    %v469 = vld [vmem:[#allocation7 + $0x1d0] sm:$0xff]
    %v470 = vld [vmem:[#allocation7 + $0x1d8] sm:$0xff]
    %v471 = vld [vmem:[#allocation7 + $0x1e0] sm:$0xff]
    %v472 = vld [vmem:[#allocation7 + $0x1e8] sm:$0xff]
    %v473 = vld [vmem:[#allocation7 + $0x1f0] sm:$0xff]
    %v474 = vld [vmem:[#allocation7 + $0x1f8] sm:$0xff]
    %475 = vmatprep.subr.mxu0 %v472
    %476 = vmatpush1.msra.mxu0 %v471
    %477 = vmatprep.subr.mxu0 %v468
    %478 = vmatpush1.msra.mxu0 %v467
    %479 = vmatprep.subr.mxu0 %v464
    %480 = vmatpush1.msra.mxu0 %v463
    %481 = vmatprep.subr.mxu0 %v460
    %482 = vmatpush1.msra.mxu0 %v459
    %483 = vmatprep.subr.mxu0 %v456
    %484 = vmatpush1.msra.mxu0 %v455
    %485 = vmatprep.subr.mxu0 %v452
    %486 = vmatpush1.msra.mxu0 %v451
    %487 = vmatprep.subr.mxu0 %v448
    %488 = vmatpush1.msra.mxu0 %v447
    %489 = vmatprep.subr.mxu0 %v444
    %490 = vmatpush1.msra.mxu0 %v443
    %491 = vmatprep.subr.mxu0 %v440
    %492 = vmatpush1.msra.mxu0 %v439
    %493 = vmatprep.subr.mxu0 %v436
    %494 = vmatpush1.msra.mxu0 %v435
    %495 = vmatprep.subr.mxu0 %v432
    %496 = vmatpush1.msra.mxu0 %v431
    %497 = vmatprep.subr.mxu0 %v428
    %498 = vmatpush1.msra.mxu0 %v427
    %499 = vmatprep.subr.mxu0 %v424
    %500 = vmatpush1.msra.mxu0 %v423
    %501 = vmatprep.subr.mxu0 %v420
    %502 = vmatpush1.msra.mxu0 %v419
    %503 = vmatprep.subr.mxu0 %v416
    %504 = vmatpush1.msra.mxu0 %v415
    %505 = vmatprep.subr.mxu0 %v412
    %506 = vmatpush1.msra.mxu0 %v411
    %507 = vmatprep.subr.mxu0 0.0
    %508 = vmatpush2.msra.mxu0 0.0
    %509 = vmatprep.subr.mxu0 0.0
    %510 = vmatpush2.msra.mxu0 0.0
    %511 = vmatprep.subr.mxu0 0.0
    %512 = vmatpush2.msra.mxu0 0.0
    %513 = vmatprep.subr.mxu0 0.0
    %514 = vmatpush2.msra.mxu0 0.0
    %515 = vmatprep.subr.mxu0 0.0
    %516 = vmatpush2.msra.mxu0 0.0
    %517 = vmatprep.subr.mxu0 0.0
    %518 = vmatpush2.msra.mxu0 0.0
    %519 = vmatprep.subr.mxu0 0.0
    %520 = vmatpush2.msra.mxu0 0.0
    %521 = vmatprep.subr.mxu0 0.0
    %522 = vmatpush2.msra.mxu0 0.0
    %523 = vmatprep.subr.mxu0 0.0
    %524 = vmatpush2.msra.mxu0 0.0
    %525 = vmatprep.subr.mxu0 0.0
    %526 = vmatpush2.msra.mxu0 0.0
    %527 = vmatprep.subr.mxu0 0.0
    %528 = vmatpush2.msra.mxu0 0.0
    %529 = vmatprep.subr.mxu0 0.0
    %530 = vmatpush2.msra.mxu0 0.0
    %531 = vmatprep.subr.mxu0 0.0
    %532 = vmatpush2.msra.mxu0 0.0
    %533 = vmatprep.subr.mxu0 0.0
    %534 = vmatpush2.msra.mxu0 0.0
    %535 = vmatprep.subr.mxu0 0.0
    %536 = vmatpush2.msra.mxu0 0.0
    %537 = vmatprep.subr.mxu0 0.0
    %538 = vmatpush2.msra.mxu0 0.0
    %539 = vmatprep.mubr.f32.mxu0 0.0
    %540 = vmatmul.mubr.f32.gmra.mxu0 0.0
    %v541 = vpop.f32.mrf.mxu0
    %v542 = vadd.f32 0.0, %v541
    %v543 = vpop.f32.mrf.mxu0
    %v544 = vadd.f32 0.0, %v543
    %545 = vdwg.mxu0
    %546 = vmatprep.subr.mxu0 %v474
    %547 = vmatpush1.msra.mxu0 %v473
    %548 = vmatprep.subr.mxu0 %v470
    %549 = vmatpush1.msra.mxu0 %v469
    %550 = vmatprep.subr.mxu0 %v466
    %551 = vmatpush1.msra.mxu0 %v465
    %552 = vmatprep.subr.mxu0 %v462
    %553 = vmatpush1.msra.mxu0 %v461
    %554 = vmatprep.subr.mxu0 %v458
    %555 = vmatpush1.msra.mxu0 %v457
    %556 = vmatprep.subr.mxu0 %v454
    %557 = vmatpush1.msra.mxu0 %v453
    %558 = vmatprep.subr.mxu0 %v450
    %559 = vmatpush1.msra.mxu0 %v449
    %560 = vmatprep.subr.mxu0 %v446
    %561 = vmatpush1.msra.mxu0 %v445
    %562 = vmatprep.subr.mxu0 %v442
    %563 = vmatpush1.msra.mxu0 %v441
    %564 = vmatprep.subr.mxu0 %v438
    %565 = vmatpush1.msra.mxu0 %v437
    %566 = vmatprep.subr.mxu0 %v434
    %567 = vmatpush1.msra.mxu0 %v433
    %568 = vmatprep.subr.mxu0 %v430
    %569 = vmatpush1.msra.mxu0 %v429
    %570 = vmatprep.subr.mxu0 %v426
    %571 = vmatpush1.msra.mxu0 %v425
    %572 = vmatprep.subr.mxu0 %v422
    %573 = vmatpush1.msra.mxu0 %v421
    %574 = vmatprep.subr.mxu0 %v418
    %575 = vmatpush1.msra.mxu0 %v417
    %576 = vmatprep.subr.mxu0 %v414
    %577 = vmatpush1.msra.mxu0 %v413
    %578 = vmatprep.subr.mxu0 0.0
    %579 = vmatpush2.msra.mxu0 0.0
    %580 = vmatprep.subr.mxu0 0.0
    %581 = vmatpush2.msra.mxu0 0.0
    %582 = vmatprep.subr.mxu0 0.0
    %583 = vmatpush2.msra.mxu0 0.0
    %584 = vmatprep.subr.mxu0 0.0
    %585 = vmatpush2.msra.mxu0 0.0
    %586 = vmatprep.subr.mxu0 0.0
    %587 = vmatpush2.msra.mxu0 0.0
    %588 = vmatprep.subr.mxu0 0.0
    %589 = vmatpush2.msra.mxu0 0.0
    %590 = vmatprep.subr.mxu0 0.0
    %591 = vmatpush2.msra.mxu0 0.0
    %592 = vmatprep.subr.mxu0 0.0
    %593 = vmatpush2.msra.mxu0 0.0
    %594 = vmatprep.subr.mxu0 0.0
    %595 = vmatpush2.msra.mxu0 0.0
    %596 = vmatprep.subr.mxu0 0.0
    %597 = vmatpush2.msra.mxu0 0.0
    %598 = vmatprep.subr.mxu0 0.0
    %599 = vmatpush2.msra.mxu0 0.0
    %600 = vmatprep.subr.mxu0 0.0
    %601 = vmatpush2.msra.mxu0 0.0
    %602 = vmatprep.subr.mxu0 0.0
    %603 = vmatpush2.msra.mxu0 0.0
    %604 = vmatprep.subr.mxu0 0.0
    %605 = vmatpush2.msra.mxu0 0.0
    %606 = vmatprep.subr.mxu0 0.0
    %607 = vmatpush2.msra.mxu0 0.0
    %608 = vmatprep.subr.mxu0 0.0
    %609 = vmatpush2.msra.mxu0 0.0
    %610 = vmatprep.mubr.f32.mxu0 0.0
    %611 = vmatmul.mubr.f32.gmra.mxu0 0.0
    %v612 = vpop.f32.mrf.mxu0
    %v613 = vadd.f32 0.0, %v612
    %v614 = vpop.f32.mrf.mxu0
    %v615 = vadd.f32 0.0, %v614
    %616 = vdwg.mxu0
    %v621 = vrot.slane %v542, 1
    %v622 = vrot.slane %v544, 1
    %v623 = vrot.slane %v613, 1
    %v624 = vrot.slane %v615, 1
    %v625 = vrot.slane %v542, 2
    %v626 = vrot.slane %v544, 2
    %v627 = vrot.slane %v613, 2
    %v628 = vrot.slane %v615, 2
    %v629 = vrot.slane %v542, 3
    %v630 = vrot.slane %v544, 3
    %v631 = vrot.slane %v613, 3
    %v632 = vrot.slane %v615, 3
    %v633 = vrot.slane %v542, 4
    %v634 = vrot.slane %v544, 4
    %v635 = vrot.slane %v613, 4
    %v636 = vrot.slane %v615, 4
    %v637 = vrot.slane %v542, 5
    %v638 = vrot.slane %v544, 5
    %v639 = vrot.slane %v613, 5
    %v640 = vrot.slane %v615, 5
    %v641 = vrot.slane %v542, 6
    %v642 = vrot.slane %v544, 6
    %v643 = vrot.slane %v613, 6
    %v644 = vrot.slane %v615, 6
    %v645 = vrot.slane %v542, 7
    %v646 = vrot.slane %v544, 7
    %v647 = vrot.slane %v613, 7
    %v648 = vrot.slane %v615, 7
    %v681 = vadd.f32 %v252, %v542
    %v682 = vadd.f32 %v254, %v544
    %v683 = vadd.f32 %v365, %v613
    %v684 = vadd.f32 %v367, %v615
    %v685 = vadd.f32 %v258, %v621
    %v686 = vadd.f32 %v260, %v622
    %v687 = vadd.f32 %v371, %v623
    %v688 = vadd.f32 %v373, %v624
    %v689 = vadd.f32 %v264, %v625
    %v690 = vadd.f32 %v266, %v626
    %v691 = vadd.f32 %v377, %v627
    %v692 = vadd.f32 %v379, %v628
    %v693 = vadd.f32 %v270, %v629
    %v694 = vadd.f32 %v272, %v630
    %v695 = vadd.f32 %v383, %v631
    %v696 = vadd.f32 %v385, %v632
    %v697 = vadd.f32 %v276, %v633
    %v698 = vadd.f32 %v278, %v634
    %v699 = vadd.f32 %v389, %v635
    %v700 = vadd.f32 %v391, %v636
    %v701 = vadd.f32 %v282, %v637
    %v702 = vadd.f32 %v284, %v638
    %v703 = vadd.f32 %v395, %v639
    %v704 = vadd.f32 %v397, %v640
    %v705 = vadd.f32 %v288, %v641
    %v706 = vadd.f32 %v290, %v642
    %v707 = vadd.f32 %v401, %v643
    %v708 = vadd.f32 %v403, %v644
    %v709 = vadd.f32 %v294, %v645
    %v710 = vadd.f32 %v296, %v646
    %v711 = vadd.f32 %v407, %v647
    %v712 = vadd.f32 %v409, %v648
    %v713 = vxor.u32 %v681, 2147483648
    %v714 = vxor.u32 %v685, 2147483648
    %v715 = vxor.u32 %v689, 2147483648
    %v716 = vxor.u32 %v693, 2147483648
    %v717 = vxor.u32 %v697, 2147483648
    %v718 = vxor.u32 %v701, 2147483648
    %v719 = vxor.u32 %v705, 2147483648
    %v720 = vxor.u32 %v709, 2147483648
    %v721 = vmul.f32 %v713, 1.442695
    %v722 = vpow.pop %v721
    %v723 = vmul.f32 %v714, 1.442695
    %v724 = vpow.pop %v723
    %v725 = vmul.f32 %v715, 1.442695
    %v726 = vpow.pop %v725
    %v727 = vmul.f32 %v716, 1.442695
    %v728 = vpow.pop %v727
    %v729 = vmul.f32 %v717, 1.442695
    %v730 = vpow.pop %v729
    %v731 = vmul.f32 %v718, 1.442695
    %v732 = vpow.pop %v731
    %v733 = vmul.f32 %v719, 1.442695
    %v734 = vpow.pop %v733
    %v735 = vmul.f32 %v720, 1.442695
    %v736 = vpow.pop %v735
    %v737 = vadd.f32 %v722, 1.0
    %v738 = vadd.f32 %v724, 1.0
    %v739 = vadd.f32 %v726, 1.0
    %v740 = vadd.f32 %v728, 1.0
    %v741 = vadd.f32 %v730, 1.0
    %v742 = vadd.f32 %v732, 1.0
    %v743 = vadd.f32 %v734, 1.0
    %v744 = vadd.f32 %v736, 1.0
    %v745 = vrcp.pop %v737
    %v746 = vmul.f32 1.0, %v745
    %v747 = vrcp.pop %v738
    %v748 = vmul.f32 1.0, %v747
    %v749 = vrcp.pop %v739
    %v750 = vmul.f32 1.0, %v749
    %v751 = vrcp.pop %v740
    %v752 = vmul.f32 1.0, %v751
    %v753 = vrcp.pop %v741
    %v754 = vmul.f32 1.0, %v753
    %v755 = vrcp.pop %v742
    %v756 = vmul.f32 1.0, %v755
    %v757 = vrcp.pop %v743
    %v758 = vmul.f32 1.0, %v757
    %v759 = vrcp.pop %v744
    %v760 = vmul.f32 1.0, %v759
    %v761 = vxor.u32 %v682, 2147483648
    %v762 = vxor.u32 %v686, 2147483648
    %v763 = vxor.u32 %v690, 2147483648
    %v764 = vxor.u32 %v694, 2147483648
    %v765 = vxor.u32 %v698, 2147483648
    %v766 = vxor.u32 %v702, 2147483648
    %v767 = vxor.u32 %v706, 2147483648
    %v768 = vxor.u32 %v710, 2147483648
    %v769 = vmul.f32 %v761, 1.442695
    %v770 = vpow.pop %v769
    %v771 = vmul.f32 %v762, 1.442695
    %v772 = vpow.pop %v771
    %v773 = vmul.f32 %v763, 1.442695
    %v774 = vpow.pop %v773
    %v775 = vmul.f32 %v764, 1.442695
    %v776 = vpow.pop %v775
    %v777 = vmul.f32 %v765, 1.442695
    %v778 = vpow.pop %v777
    %v779 = vmul.f32 %v766, 1.442695
    %v780 = vpow.pop %v779
    %v781 = vmul.f32 %v767, 1.442695
    %v782 = vpow.pop %v781
    %v783 = vmul.f32 %v768, 1.442695
    %v784 = vpow.pop %v783
    %v785 = vadd.f32 %v770, 1.0
    %v786 = vadd.f32 %v772, 1.0
    %v787 = vadd.f32 %v774, 1.0
    %v788 = vadd.f32 %v776, 1.0
    %v789 = vadd.f32 %v778, 1.0
    %v790 = vadd.f32 %v780, 1.0
    %v791 = vadd.f32 %v782, 1.0
    %v792 = vadd.f32 %v784, 1.0
    %v793 = vrcp.pop %v785
    %v794 = vmul.f32 1.0, %v793
    %v795 = vrcp.pop %v786
    %v796 = vmul.f32 1.0, %v795
    %v797 = vrcp.pop %v787
    %v798 = vmul.f32 1.0, %v797
    %v799 = vrcp.pop %v788
    %v800 = vmul.f32 1.0, %v799
    %v801 = vrcp.pop %v789
    %v802 = vmul.f32 1.0, %v801
    %v803 = vrcp.pop %v790
    %v804 = vmul.f32 1.0, %v803
    %v805 = vrcp.pop %v791
    %v806 = vmul.f32 1.0, %v805
    %v807 = vrcp.pop %v792
    %v808 = vmul.f32 1.0, %v807
    %v809 = vtanh.pop %v683
    %v810 = vtanh.pop %v687
    %v811 = vtanh.pop %v691
    %v812 = vtanh.pop %v695
    %v813 = vtanh.pop %v699
    %v814 = vtanh.pop %v703
    %v815 = vtanh.pop %v707
    %v816 = vtanh.pop %v711
    %v817 = vxor.u32 %v684, 2147483648
    %v818 = vxor.u32 %v688, 2147483648
    %v819 = vxor.u32 %v692, 2147483648
    %v820 = vxor.u32 %v696, 2147483648
    %v821 = vxor.u32 %v700, 2147483648
    %v822 = vxor.u32 %v704, 2147483648
    %v823 = vxor.u32 %v708, 2147483648
    %v824 = vxor.u32 %v712, 2147483648
    %v825 = vmul.f32 %v817, 1.442695
    %v826 = vpow.pop %v825
    %v827 = vmul.f32 %v818, 1.442695
    %v828 = vpow.pop %v827
    %v829 = vmul.f32 %v819, 1.442695
    %v830 = vpow.pop %v829
    %v831 = vmul.f32 %v820, 1.442695
    %v832 = vpow.pop %v831
    %v833 = vmul.f32 %v821, 1.442695
    %v834 = vpow.pop %v833
    %v835 = vmul.f32 %v822, 1.442695
    %v836 = vpow.pop %v835
    %v837 = vmul.f32 %v823, 1.442695
    %v838 = vpow.pop %v837
    %v839 = vmul.f32 %v824, 1.442695
    %v840 = vpow.pop %v839
    %v841 = vadd.f32 %v826, 1.0
    %v842 = vadd.f32 %v828, 1.0
    %v843 = vadd.f32 %v830, 1.0
    %v844 = vadd.f32 %v832, 1.0
    %v845 = vadd.f32 %v834, 1.0
    %v846 = vadd.f32 %v836, 1.0
    %v847 = vadd.f32 %v838, 1.0
    %v848 = vadd.f32 %v840, 1.0
    %v849 = vrcp.pop %v841
    %v850 = vmul.f32 1.0, %v849
    %v851 = vrcp.pop %v842
    %v852 = vmul.f32 1.0, %v851
    %v853 = vrcp.pop %v843
    %v854 = vmul.f32 1.0, %v853
    %v855 = vrcp.pop %v844
    %v856 = vmul.f32 1.0, %v855
    %v857 = vrcp.pop %v845
    %v858 = vmul.f32 1.0, %v857
    %v859 = vrcp.pop %v846
    %v860 = vmul.f32 1.0, %v859
    %v861 = vrcp.pop %v847
    %v862 = vmul.f32 1.0, %v861
    %v863 = vrcp.pop %v848
    %v864 = vmul.f32 1.0, %v863
    %v865 = vmul.f32 %v794, 0.0
    %v866 = vmul.f32 %v796, 0.0
    %v867 = vmul.f32 %v798, 0.0
    %v868 = vmul.f32 %v800, 0.0
    %v869 = vmul.f32 %v802, 0.0
    %v870 = vmul.f32 %v804, 0.0
    %v871 = vmul.f32 %v806, 0.0
    %v872 = vmul.f32 %v808, 0.0
    %v873 = vmul.f32 %v746, %v809
    %v874 = vmul.f32 %v748, %v810
    %v875 = vmul.f32 %v750, %v811
    %v876 = vmul.f32 %v752, %v812
    %v877 = vmul.f32 %v754, %v813
    %v878 = vmul.f32 %v756, %v814
    %v879 = vmul.f32 %v758, %v815
    %v880 = vmul.f32 %v760, %v816
    %v881 = vadd.f32 %v865, %v873
    %v882 = vadd.f32 %v866, %v874
    %v883 = vadd.f32 %v867, %v875
    %v884 = vadd.f32 %v868, %v876
    %v885 = vadd.f32 %v869, %v877
    %v886 = vadd.f32 %v870, %v878
    %v887 = vadd.f32 %v871, %v879
    %v888 = vadd.f32 %v872, %v880
    %v889 = vtanh.pop %v881
    %v890 = vtanh.pop %v882
    %v891 = vtanh.pop %v883
    %v892 = vtanh.pop %v884
    %v893 = vtanh.pop %v885
    %v894 = vtanh.pop %v886
    %v895 = vtanh.pop %v887
    %v896 = vtanh.pop %v888
    %v897 = vmul.f32 %v850, %v889
    %v898 = vmul.f32 %v852, %v890
    %v899 = vmul.f32 %v854, %v891
    %v900 = vmul.f32 %v856, %v892
    %v901 = vmul.f32 %v858, %v893
    %v902 = vmul.f32 %v860, %v894
    %v903 = vmul.f32 %v862, %v895
    %v904 = vmul.f32 %v864, %v896
    %v913 = vrot.slane %v898, 7
    %vm914 = vcmask 1041409
    %v915 = vsel %vm914, %v913, %v897
    %v916 = vrot.slane %v899, 6
    %vm917 = vcmask 1042434
    %v918 = vsel %vm917, %v916, %v915
    %v919 = vrot.slane %v900, 5
    %vm920 = vcmask 1043459
    %v921 = vsel %vm920, %v919, %v918
    %v922 = vrot.slane %v901, 4
    %vm923 = vcmask 1044484
    %v924 = vsel %vm923, %v922, %v921
    %v925 = vrot.slane %v902, 3
    %vm926 = vcmask 1045509
    %v927 = vsel %vm926, %v925, %v924
    %v928 = vrot.slane %v903, 2
    %vm929 = vcmask 1046534
    %v930 = vsel %vm929, %v928, %v927
    %v931 = vrot.slane %v904, 1
    %vm932 = vcmask 1047559
    %v933 = vsel %vm932, %v931, %v930
    %935 = vmatprep.subr.mxu0 %v472
    %936 = vmatpush1.msra.mxu0 %v471
    %937 = vmatprep.subr.mxu0 %v468
    %938 = vmatpush1.msra.mxu0 %v467
    %939 = vmatprep.subr.mxu0 %v464
    %940 = vmatpush1.msra.mxu0 %v463
    %941 = vmatprep.subr.mxu0 %v460
    %942 = vmatpush1.msra.mxu0 %v459
    %943 = vmatprep.subr.mxu0 %v456
    %944 = vmatpush1.msra.mxu0 %v455
    %945 = vmatprep.subr.mxu0 %v452
    %946 = vmatpush1.msra.mxu0 %v451
    %947 = vmatprep.subr.mxu0 %v448
    %948 = vmatpush1.msra.mxu0 %v447
    %949 = vmatprep.subr.mxu0 %v444
    %950 = vmatpush1.msra.mxu0 %v443
    %951 = vmatprep.subr.mxu0 %v440
    %952 = vmatpush1.msra.mxu0 %v439
    %953 = vmatprep.subr.mxu0 %v436
    %954 = vmatpush1.msra.mxu0 %v435
    %955 = vmatprep.subr.mxu0 %v432
    %956 = vmatpush1.msra.mxu0 %v431
    %957 = vmatprep.subr.mxu0 %v428
    %958 = vmatpush1.msra.mxu0 %v427
    %959 = vmatprep.subr.mxu0 %v424
    %960 = vmatpush1.msra.mxu0 %v423
    %961 = vmatprep.subr.mxu0 %v420
    %962 = vmatpush1.msra.mxu0 %v419
    %963 = vmatprep.subr.mxu0 %v416
    %964 = vmatpush1.msra.mxu0 %v415
    %965 = vmatprep.subr.mxu0 %v412
    %966 = vmatpush1.msra.mxu0 %v411
    %967 = vmatprep.subr.mxu0 0.0
    %968 = vmatpush2.msra.mxu0 0.0
    %969 = vmatprep.subr.mxu0 0.0
    %970 = vmatpush2.msra.mxu0 0.0
    %971 = vmatprep.subr.mxu0 0.0
    %972 = vmatpush2.msra.mxu0 0.0
    %973 = vmatprep.subr.mxu0 0.0
    %974 = vmatpush2.msra.mxu0 0.0
    %975 = vmatprep.subr.mxu0 0.0
    %976 = vmatpush2.msra.mxu0 0.0
    %977 = vmatprep.subr.mxu0 0.0
    %978 = vmatpush2.msra.mxu0 0.0
    %979 = vmatprep.subr.mxu0 0.0
    %980 = vmatpush2.msra.mxu0 0.0
    %981 = vmatprep.subr.mxu0 0.0
    %982 = vmatpush2.msra.mxu0 0.0
    %983 = vmatprep.subr.mxu0 0.0
    %984 = vmatpush2.msra.mxu0 0.0
    %985 = vmatprep.subr.mxu0 0.0
    %986 = vmatpush2.msra.mxu0 0.0
    %987 = vmatprep.subr.mxu0 0.0
    %988 = vmatpush2.msra.mxu0 0.0
    %989 = vmatprep.subr.mxu0 0.0
    %990 = vmatpush2.msra.mxu0 0.0
    %991 = vmatprep.subr.mxu0 0.0
    %992 = vmatpush2.msra.mxu0 0.0
    %993 = vmatprep.subr.mxu0 0.0
    %994 = vmatpush2.msra.mxu0 0.0
    %995 = vmatprep.subr.mxu0 0.0
    %996 = vmatpush2.msra.mxu0 0.0
    %997 = vmatprep.subr.mxu0 0.0
    %998 = vmatpush2.msra.mxu0 0.0
    %999 = vmatprep.mubr.f32.mxu0 0.0
    %1000 = vmatmul.mubr.f32.gmra.mxu0 %v933
    %v1001 = vpop.f32.mrf.mxu0
    %v1002 = vadd.f32 0.0, %v1001
    %v1003 = vpop.f32.mrf.mxu0
    %v1004 = vadd.f32 0.0, %v1003
    %1005 = vdwg.mxu0
    %1006 = vmatprep.subr.mxu0 %v474
    %1007 = vmatpush1.msra.mxu0 %v473
    %1008 = vmatprep.subr.mxu0 %v470
    %1009 = vmatpush1.msra.mxu0 %v469
    %1010 = vmatprep.subr.mxu0 %v466
    %1011 = vmatpush1.msra.mxu0 %v465
    %1012 = vmatprep.subr.mxu0 %v462
    %1013 = vmatpush1.msra.mxu0 %v461
    %1014 = vmatprep.subr.mxu0 %v458
    %1015 = vmatpush1.msra.mxu0 %v457
    %1016 = vmatprep.subr.mxu0 %v454
    %1017 = vmatpush1.msra.mxu0 %v453
    %1018 = vmatprep.subr.mxu0 %v450
    %1019 = vmatpush1.msra.mxu0 %v449
    %1020 = vmatprep.subr.mxu0 %v446
    %1021 = vmatpush1.msra.mxu0 %v445
    %1022 = vmatprep.subr.mxu0 %v442
    %1023 = vmatpush1.msra.mxu0 %v441
    %1024 = vmatprep.subr.mxu0 %v438
    %1025 = vmatpush1.msra.mxu0 %v437
    %1026 = vmatprep.subr.mxu0 %v434
    %1027 = vmatpush1.msra.mxu0 %v433
    %1028 = vmatprep.subr.mxu0 %v430
    %1029 = vmatpush1.msra.mxu0 %v429
    %1030 = vmatprep.subr.mxu0 %v426
    %1031 = vmatpush1.msra.mxu0 %v425
    %1032 = vmatprep.subr.mxu0 %v422
    %1033 = vmatpush1.msra.mxu0 %v421
    %1034 = vmatprep.subr.mxu0 %v418
    %1035 = vmatpush1.msra.mxu0 %v417
    %1036 = vmatprep.subr.mxu0 %v414
    %1037 = vmatpush1.msra.mxu0 %v413
    %1038 = vmatprep.subr.mxu0 0.0
    %1039 = vmatpush2.msra.mxu0 0.0
    %1040 = vmatprep.subr.mxu0 0.0
    %1041 = vmatpush2.msra.mxu0 0.0
    %1042 = vmatprep.subr.mxu0 0.0
    %1043 = vmatpush2.msra.mxu0 0.0
    %1044 = vmatprep.subr.mxu0 0.0
    %1045 = vmatpush2.msra.mxu0 0.0
    %1046 = vmatprep.subr.mxu0 0.0
    %1047 = vmatpush2.msra.mxu0 0.0
    %1048 = vmatprep.subr.mxu0 0.0
    %1049 = vmatpush2.msra.mxu0 0.0
    %1050 = vmatprep.subr.mxu0 0.0
    %1051 = vmatpush2.msra.mxu0 0.0
    %1052 = vmatprep.subr.mxu0 0.0
    %1053 = vmatpush2.msra.mxu0 0.0
    %1054 = vmatprep.subr.mxu0 0.0
    %1055 = vmatpush2.msra.mxu0 0.0
    %1056 = vmatprep.subr.mxu0 0.0
    %1057 = vmatpush2.msra.mxu0 0.0
    %1058 = vmatprep.subr.mxu0 0.0
    %1059 = vmatpush2.msra.mxu0 0.0
    %1060 = vmatprep.subr.mxu0 0.0
    %1061 = vmatpush2.msra.mxu0 0.0
    %1062 = vmatprep.subr.mxu0 0.0
    %1063 = vmatpush2.msra.mxu0 0.0
    %1064 = vmatprep.subr.mxu0 0.0
    %1065 = vmatpush2.msra.mxu0 0.0
    %1066 = vmatprep.subr.mxu0 0.0
    %1067 = vmatpush2.msra.mxu0 0.0
    %1068 = vmatprep.subr.mxu0 0.0
    %1069 = vmatpush2.msra.mxu0 0.0
    %1070 = vmatprep.mubr.f32.mxu0 0.0
    %1071 = vmatmul.mubr.f32.gmra.mxu0 %v933
    %v1072 = vpop.f32.mrf.mxu0
    %v1073 = vadd.f32 0.0, %v1072
    %v1074 = vpop.f32.mrf.mxu0
    %v1075 = vadd.f32 0.0, %v1074
    %1076 = vdwg.mxu0
    %v1081 = vrot.slane %v1002, 7
    %v1082 = vrot.slane %v1004, 7
    %v1083 = vrot.slane %v1073, 7
    %v1084 = vrot.slane %v1075, 7
    %v1085 = vrot.slane %v1002, 1
    %v1086 = vrot.slane %v1004, 1
    %v1087 = vrot.slane %v1073, 1
    %v1088 = vrot.slane %v1075, 1
    %v1089 = vrot.slane %v1002, 2
    %v1090 = vrot.slane %v1004, 2
    %v1091 = vrot.slane %v1073, 2
    %v1092 = vrot.slane %v1075, 2
    %v1093 = vrot.slane %v1002, 3
    %v1094 = vrot.slane %v1004, 3
    %v1095 = vrot.slane %v1073, 3
    %v1096 = vrot.slane %v1075, 3
    %v1097 = vrot.slane %v1002, 4
    %v1098 = vrot.slane %v1004, 4
    %v1099 = vrot.slane %v1073, 4
    %v1100 = vrot.slane %v1075, 4
    %v1101 = vrot.slane %v1002, 5
    %v1102 = vrot.slane %v1004, 5
    %v1103 = vrot.slane %v1073, 5
    %v1104 = vrot.slane %v1075, 5
    %v1105 = vrot.slane %v1002, 6
    %v1106 = vrot.slane %v1004, 6
    %v1107 = vrot.slane %v1073, 6
    %v1108 = vrot.slane %v1075, 6
    %v1141 = vadd.f32 %v252, %v1081
    %v1142 = vadd.f32 %v254, %v1082
    %v1143 = vadd.f32 %v365, %v1083
    %v1144 = vadd.f32 %v367, %v1084
    %v1145 = vadd.f32 %v258, %v1002
    %v1146 = vadd.f32 %v260, %v1004
    %v1147 = vadd.f32 %v371, %v1073
    %v1148 = vadd.f32 %v373, %v1075
    %v1149 = vadd.f32 %v264, %v1085
    %v1150 = vadd.f32 %v266, %v1086
    %v1151 = vadd.f32 %v377, %v1087
    %v1152 = vadd.f32 %v379, %v1088
    %v1153 = vadd.f32 %v270, %v1089
    %v1154 = vadd.f32 %v272, %v1090
    %v1155 = vadd.f32 %v383, %v1091
    %v1156 = vadd.f32 %v385, %v1092
    %v1157 = vadd.f32 %v276, %v1093
    %v1158 = vadd.f32 %v278, %v1094
    %v1159 = vadd.f32 %v389, %v1095
    %v1160 = vadd.f32 %v391, %v1096
    %v1161 = vadd.f32 %v282, %v1097
    %v1162 = vadd.f32 %v284, %v1098
    %v1163 = vadd.f32 %v395, %v1099
    %v1164 = vadd.f32 %v397, %v1100
    %v1165 = vadd.f32 %v288, %v1101
    %v1166 = vadd.f32 %v290, %v1102
    %v1167 = vadd.f32 %v401, %v1103
    %v1168 = vadd.f32 %v403, %v1104
    %v1169 = vadd.f32 %v294, %v1105
    %v1170 = vadd.f32 %v296, %v1106
    %v1171 = vadd.f32 %v407, %v1107
    %v1172 = vadd.f32 %v409, %v1108
    %v1173 = vxor.u32 %v1141, 2147483648
    %v1174 = vxor.u32 %v1145, 2147483648
    %v1175 = vxor.u32 %v1149, 2147483648
    %v1176 = vxor.u32 %v1153, 2147483648
    %v1177 = vxor.u32 %v1157, 2147483648
    %v1178 = vxor.u32 %v1161, 2147483648
    %v1179 = vxor.u32 %v1165, 2147483648
    %v1180 = vxor.u32 %v1169, 2147483648
    %v1181 = vmul.f32 %v1173, 1.442695
    %v1182 = vpow.pop %v1181
    %v1183 = vmul.f32 %v1174, 1.442695
    %v1184 = vpow.pop %v1183
    %v1185 = vmul.f32 %v1175, 1.442695
    %v1186 = vpow.pop %v1185
    %v1187 = vmul.f32 %v1176, 1.442695
    %v1188 = vpow.pop %v1187
    %v1189 = vmul.f32 %v1177, 1.442695
    %v1190 = vpow.pop %v1189
    %v1191 = vmul.f32 %v1178, 1.442695
    %v1192 = vpow.pop %v1191
    %v1193 = vmul.f32 %v1179, 1.442695
    %v1194 = vpow.pop %v1193
    %v1195 = vmul.f32 %v1180, 1.442695
    %v1196 = vpow.pop %v1195
    %v1197 = vadd.f32 %v1182, 1.0
    %v1198 = vadd.f32 %v1184, 1.0
    %v1199 = vadd.f32 %v1186, 1.0
    %v1200 = vadd.f32 %v1188, 1.0
    %v1201 = vadd.f32 %v1190, 1.0
    %v1202 = vadd.f32 %v1192, 1.0
    %v1203 = vadd.f32 %v1194, 1.0
    %v1204 = vadd.f32 %v1196, 1.0
    %v1205 = vrcp.pop %v1197
    %v1206 = vmul.f32 1.0, %v1205
    %v1207 = vrcp.pop %v1198
    %v1208 = vmul.f32 1.0, %v1207
    %v1209 = vrcp.pop %v1199
    %v1210 = vmul.f32 1.0, %v1209
    %v1211 = vrcp.pop %v1200
    %v1212 = vmul.f32 1.0, %v1211
    %v1213 = vrcp.pop %v1201
    %v1214 = vmul.f32 1.0, %v1213
    %v1215 = vrcp.pop %v1202
    %v1216 = vmul.f32 1.0, %v1215
    %v1217 = vrcp.pop %v1203
    %v1218 = vmul.f32 1.0, %v1217
    %v1219 = vrcp.pop %v1204
    %v1220 = vmul.f32 1.0, %v1219
    %v1221 = vxor.u32 %v1142, 2147483648
    %v1222 = vxor.u32 %v1146, 2147483648
    %v1223 = vxor.u32 %v1150, 2147483648
    %v1224 = vxor.u32 %v1154, 2147483648
    %v1225 = vxor.u32 %v1158, 2147483648
    %v1226 = vxor.u32 %v1162, 2147483648
    %v1227 = vxor.u32 %v1166, 2147483648
    %v1228 = vxor.u32 %v1170, 2147483648
    %v1229 = vmul.f32 %v1221, 1.442695
    %v1230 = vpow.pop %v1229
    %v1231 = vmul.f32 %v1222, 1.442695
    %v1232 = vpow.pop %v1231
    %v1233 = vmul.f32 %v1223, 1.442695
    %v1234 = vpow.pop %v1233
    %v1235 = vmul.f32 %v1224, 1.442695
    %v1236 = vpow.pop %v1235
    %v1237 = vmul.f32 %v1225, 1.442695
    %v1238 = vpow.pop %v1237
    %v1239 = vmul.f32 %v1226, 1.442695
    %v1240 = vpow.pop %v1239
    %v1241 = vmul.f32 %v1227, 1.442695
    %v1242 = vpow.pop %v1241
    %v1243 = vmul.f32 %v1228, 1.442695
    %v1244 = vpow.pop %v1243
    %v1245 = vadd.f32 %v1230, 1.0
    %v1246 = vadd.f32 %v1232, 1.0
    %v1247 = vadd.f32 %v1234, 1.0
    %v1248 = vadd.f32 %v1236, 1.0
    %v1249 = vadd.f32 %v1238, 1.0
    %v1250 = vadd.f32 %v1240, 1.0
    %v1251 = vadd.f32 %v1242, 1.0
    %v1252 = vadd.f32 %v1244, 1.0
    %v1253 = vrcp.pop %v1245
    %v1254 = vmul.f32 1.0, %v1253
    %v1255 = vrcp.pop %v1246
    %v1256 = vmul.f32 1.0, %v1255
    %v1257 = vrcp.pop %v1247
    %v1258 = vmul.f32 1.0, %v1257
    %v1259 = vrcp.pop %v1248
    %v1260 = vmul.f32 1.0, %v1259
    %v1261 = vrcp.pop %v1249
    %v1262 = vmul.f32 1.0, %v1261
    %v1263 = vrcp.pop %v1250
    %v1264 = vmul.f32 1.0, %v1263
    %v1265 = vrcp.pop %v1251
    %v1266 = vmul.f32 1.0, %v1265
    %v1267 = vrcp.pop %v1252
    %v1268 = vmul.f32 1.0, %v1267
    %v1269 = vtanh.pop %v1143
    %v1270 = vtanh.pop %v1147
    %v1271 = vtanh.pop %v1151
    %v1272 = vtanh.pop %v1155
    %v1273 = vtanh.pop %v1159
    %v1274 = vtanh.pop %v1163
    %v1275 = vtanh.pop %v1167
    %v1276 = vtanh.pop %v1171
    %v1277 = vxor.u32 %v1144, 2147483648
    %v1278 = vxor.u32 %v1148, 2147483648
    %v1279 = vxor.u32 %v1152, 2147483648
    %v1280 = vxor.u32 %v1156, 2147483648
    %v1281 = vxor.u32 %v1160, 2147483648
    %v1282 = vxor.u32 %v1164, 2147483648
    %v1283 = vxor.u32 %v1168, 2147483648
    %v1284 = vxor.u32 %v1172, 2147483648
    %v1285 = vmul.f32 %v1277, 1.442695
    %v1286 = vpow.pop %v1285
    %v1287 = vmul.f32 %v1278, 1.442695
    %v1288 = vpow.pop %v1287
    %v1289 = vmul.f32 %v1279, 1.442695
    %v1290 = vpow.pop %v1289
    %v1291 = vmul.f32 %v1280, 1.442695
    %v1292 = vpow.pop %v1291
    %v1293 = vmul.f32 %v1281, 1.442695
    %v1294 = vpow.pop %v1293
    %v1295 = vmul.f32 %v1282, 1.442695
    %v1296 = vpow.pop %v1295
    %v1297 = vmul.f32 %v1283, 1.442695
    %v1298 = vpow.pop %v1297
    %v1299 = vmul.f32 %v1284, 1.442695
    %v1300 = vpow.pop %v1299
    %v1301 = vadd.f32 %v1286, 1.0
    %v1302 = vadd.f32 %v1288, 1.0
    %v1303 = vadd.f32 %v1290, 1.0
    %v1304 = vadd.f32 %v1292, 1.0
    %v1305 = vadd.f32 %v1294, 1.0
    %v1306 = vadd.f32 %v1296, 1.0
    %v1307 = vadd.f32 %v1298, 1.0
    %v1308 = vadd.f32 %v1300, 1.0
    %v1309 = vrcp.pop %v1301
    %v1310 = vmul.f32 1.0, %v1309
    %v1311 = vrcp.pop %v1302
    %v1312 = vmul.f32 1.0, %v1311
    %v1313 = vrcp.pop %v1303
    %v1314 = vmul.f32 1.0, %v1313
    %v1315 = vrcp.pop %v1304
    %v1316 = vmul.f32 1.0, %v1315
    %v1317 = vrcp.pop %v1305
    %v1318 = vmul.f32 1.0, %v1317
    %v1319 = vrcp.pop %v1306
    %v1320 = vmul.f32 1.0, %v1319
    %v1321 = vrcp.pop %v1307
    %v1322 = vmul.f32 1.0, %v1321
    %v1323 = vrcp.pop %v1308
    %v1324 = vmul.f32 1.0, %v1323
    %v1333 = vrot.slane %v881, 7
    %v1334 = vrot.slane %v882, 7
    %v1335 = vrot.slane %v883, 7
    %v1336 = vrot.slane %v884, 7
    %v1337 = vrot.slane %v885, 7
    %v1338 = vrot.slane %v886, 7
    %v1339 = vrot.slane %v887, 7
    %v1340 = vrot.slane %v888, 7
    %v1349 = vmul.f32 %v1254, %v1333
    %v1350 = vmul.f32 %v1256, %v1334
    %v1351 = vmul.f32 %v1258, %v1335
    %v1352 = vmul.f32 %v1260, %v1336
    %v1353 = vmul.f32 %v1262, %v1337
    %v1354 = vmul.f32 %v1264, %v1338
    %v1355 = vmul.f32 %v1266, %v1339
    %v1356 = vmul.f32 %v1268, %v1340
    %v1357 = vmul.f32 %v1206, %v1269
    %v1358 = vmul.f32 %v1208, %v1270
    %v1359 = vmul.f32 %v1210, %v1271
    %v1360 = vmul.f32 %v1212, %v1272
    %v1361 = vmul.f32 %v1214, %v1273
    %v1362 = vmul.f32 %v1216, %v1274
    %v1363 = vmul.f32 %v1218, %v1275
    %v1364 = vmul.f32 %v1220, %v1276
    %v1365 = vadd.f32 %v1349, %v1357
    %v1366 = vadd.f32 %v1350, %v1358
    %v1367 = vadd.f32 %v1351, %v1359
    %v1368 = vadd.f32 %v1352, %v1360
    %v1369 = vadd.f32 %v1353, %v1361
    %v1370 = vadd.f32 %v1354, %v1362
    %v1371 = vadd.f32 %v1355, %v1363
    %v1372 = vadd.f32 %v1356, %v1364
    %v1373 = vtanh.pop %v1365
    %v1374 = vtanh.pop %v1366
    %v1375 = vtanh.pop %v1367
    %v1376 = vtanh.pop %v1368
    %v1377 = vtanh.pop %v1369
    %v1378 = vtanh.pop %v1370
    %v1379 = vtanh.pop %v1371
    %v1380 = vtanh.pop %v1372
    %v1381 = vmul.f32 %v1310, %v1373
    %v1382 = vmul.f32 %v1312, %v1374
    %v1383 = vmul.f32 %v1314, %v1375
    %v1384 = vmul.f32 %v1316, %v1376
    %v1385 = vmul.f32 %v1318, %v1377
    %v1386 = vmul.f32 %v1320, %v1378
    %v1387 = vmul.f32 %v1322, %v1379
    %v1388 = vmul.f32 %v1324, %v1380
    %v1397 = vrot.slane %v1381, 1
    %v1398 = vsel %vm914, %v1382, %v1397
    %v1399 = vrot.slane %v1383, 7
    %v1400 = vsel %vm917, %v1399, %v1398
    %v1401 = vrot.slane %v1384, 6
    %v1402 = vsel %vm920, %v1401, %v1400
    %v1403 = vrot.slane %v1385, 5
    %v1404 = vsel %vm923, %v1403, %v1402
    %v1405 = vrot.slane %v1386, 4
    %v1406 = vsel %vm926, %v1405, %v1404
    %v1407 = vrot.slane %v1387, 3
    %v1408 = vsel %vm929, %v1407, %v1406
    %v1409 = vrot.slane %v1388, 2
    %v1410 = vsel %vm932, %v1409, %v1408
    %1412 = vmatprep.subr.mxu0 %v472
    %1413 = vmatpush1.msra.mxu0 %v471
    %1414 = vmatprep.subr.mxu0 %v468
    %1415 = vmatpush1.msra.mxu0 %v467
    %1416 = vmatprep.subr.mxu0 %v464
    %1417 = vmatpush1.msra.mxu0 %v463
    %1418 = vmatprep.subr.mxu0 %v460
    %1419 = vmatpush1.msra.mxu0 %v459
    %1420 = vmatprep.subr.mxu0 %v456
    %1421 = vmatpush1.msra.mxu0 %v455
    %1422 = vmatprep.subr.mxu0 %v452
    %1423 = vmatpush1.msra.mxu0 %v451
    %1424 = vmatprep.subr.mxu0 %v448
    %1425 = vmatpush1.msra.mxu0 %v447
    %1426 = vmatprep.subr.mxu0 %v444
    %1427 = vmatpush1.msra.mxu0 %v443
    %1428 = vmatprep.subr.mxu0 %v440
    %1429 = vmatpush1.msra.mxu0 %v439
    %1430 = vmatprep.subr.mxu0 %v436
    %1431 = vmatpush1.msra.mxu0 %v435
    %1432 = vmatprep.subr.mxu0 %v432
    %1433 = vmatpush1.msra.mxu0 %v431
    %1434 = vmatprep.subr.mxu0 %v428
    %1435 = vmatpush1.msra.mxu0 %v427
    %1436 = vmatprep.subr.mxu0 %v424
    %1437 = vmatpush1.msra.mxu0 %v423
    %1438 = vmatprep.subr.mxu0 %v420
    %1439 = vmatpush1.msra.mxu0 %v419
    %1440 = vmatprep.subr.mxu0 %v416
    %1441 = vmatpush1.msra.mxu0 %v415
    %1442 = vmatprep.subr.mxu0 %v412
    %1443 = vmatpush1.msra.mxu0 %v411
    %1444 = vmatprep.subr.mxu0 0.0
    %1445 = vmatpush2.msra.mxu0 0.0
    %1446 = vmatprep.subr.mxu0 0.0
    %1447 = vmatpush2.msra.mxu0 0.0
    %1448 = vmatprep.subr.mxu0 0.0
    %1449 = vmatpush2.msra.mxu0 0.0
    %1450 = vmatprep.subr.mxu0 0.0
    %1451 = vmatpush2.msra.mxu0 0.0
    %1452 = vmatprep.subr.mxu0 0.0
    %1453 = vmatpush2.msra.mxu0 0.0
    %1454 = vmatprep.subr.mxu0 0.0
    %1455 = vmatpush2.msra.mxu0 0.0
    %1456 = vmatprep.subr.mxu0 0.0
    %1457 = vmatpush2.msra.mxu0 0.0
    %1458 = vmatprep.subr.mxu0 0.0
    %1459 = vmatpush2.msra.mxu0 0.0
    %1460 = vmatprep.subr.mxu0 0.0
    %1461 = vmatpush2.msra.mxu0 0.0
    %1462 = vmatprep.subr.mxu0 0.0
    %1463 = vmatpush2.msra.mxu0 0.0
    %1464 = vmatprep.subr.mxu0 0.0
    %1465 = vmatpush2.msra.mxu0 0.0
    %1466 = vmatprep.subr.mxu0 0.0
    %1467 = vmatpush2.msra.mxu0 0.0
    %1468 = vmatprep.subr.mxu0 0.0
    %1469 = vmatpush2.msra.mxu0 0.0
    %1470 = vmatprep.subr.mxu0 0.0
    %1471 = vmatpush2.msra.mxu0 0.0
    %1472 = vmatprep.subr.mxu0 0.0
    %1473 = vmatpush2.msra.mxu0 0.0
    %1474 = vmatprep.subr.mxu0 0.0
    %1475 = vmatpush2.msra.mxu0 0.0
    %1476 = vmatprep.mubr.f32.mxu0 0.0
    %1477 = vmatmul.mubr.f32.gmra.mxu0 %v1410
    %v1478 = vpop.f32.mrf.mxu0
    %v1479 = vadd.f32 0.0, %v1478
    %v1480 = vpop.f32.mrf.mxu0
    %v1481 = vadd.f32 0.0, %v1480
    %1482 = vdwg.mxu0
    %1483 = vmatprep.subr.mxu0 %v474
    %1484 = vmatpush1.msra.mxu0 %v473
    %1485 = vmatprep.subr.mxu0 %v470
    %1486 = vmatpush1.msra.mxu0 %v469
    %1487 = vmatprep.subr.mxu0 %v466
    %1488 = vmatpush1.msra.mxu0 %v465
    %1489 = vmatprep.subr.mxu0 %v462
    %1490 = vmatpush1.msra.mxu0 %v461
    %1491 = vmatprep.subr.mxu0 %v458
    %1492 = vmatpush1.msra.mxu0 %v457
    %1493 = vmatprep.subr.mxu0 %v454
    %1494 = vmatpush1.msra.mxu0 %v453
    %1495 = vmatprep.subr.mxu0 %v450
    %1496 = vmatpush1.msra.mxu0 %v449
    %1497 = vmatprep.subr.mxu0 %v446
    %1498 = vmatpush1.msra.mxu0 %v445
    %1499 = vmatprep.subr.mxu0 %v442
    %1500 = vmatpush1.msra.mxu0 %v441
    %1501 = vmatprep.subr.mxu0 %v438
    %1502 = vmatpush1.msra.mxu0 %v437
    %1503 = vmatprep.subr.mxu0 %v434
    %1504 = vmatpush1.msra.mxu0 %v433
    %1505 = vmatprep.subr.mxu0 %v430
    %1506 = vmatpush1.msra.mxu0 %v429
    %1507 = vmatprep.subr.mxu0 %v426
    %1508 = vmatpush1.msra.mxu0 %v425
    %1509 = vmatprep.subr.mxu0 %v422
    %1510 = vmatpush1.msra.mxu0 %v421
    %1511 = vmatprep.subr.mxu0 %v418
    %1512 = vmatpush1.msra.mxu0 %v417
    %1513 = vmatprep.subr.mxu0 %v414
    %1514 = vmatpush1.msra.mxu0 %v413
    %1515 = vmatprep.subr.mxu0 0.0
    %1516 = vmatpush2.msra.mxu0 0.0
    %1517 = vmatprep.subr.mxu0 0.0
    %1518 = vmatpush2.msra.mxu0 0.0
    %1519 = vmatprep.subr.mxu0 0.0
    %1520 = vmatpush2.msra.mxu0 0.0
    %1521 = vmatprep.subr.mxu0 0.0
    %1522 = vmatpush2.msra.mxu0 0.0
    %1523 = vmatprep.subr.mxu0 0.0
    %1524 = vmatpush2.msra.mxu0 0.0
    %1525 = vmatprep.subr.mxu0 0.0
    %1526 = vmatpush2.msra.mxu0 0.0
    %1527 = vmatprep.subr.mxu0 0.0
    %1528 = vmatpush2.msra.mxu0 0.0
    %1529 = vmatprep.subr.mxu0 0.0
    %1530 = vmatpush2.msra.mxu0 0.0
    %1531 = vmatprep.subr.mxu0 0.0
    %1532 = vmatpush2.msra.mxu0 0.0
    %1533 = vmatprep.subr.mxu0 0.0
    %1534 = vmatpush2.msra.mxu0 0.0
    %1535 = vmatprep.subr.mxu0 0.0
    %1536 = vmatpush2.msra.mxu0 0.0
    %1537 = vmatprep.subr.mxu0 0.0
    %1538 = vmatpush2.msra.mxu0 0.0
    %1539 = vmatprep.subr.mxu0 0.0
    %1540 = vmatpush2.msra.mxu0 0.0
    %1541 = vmatprep.subr.mxu0 0.0
    %1542 = vmatpush2.msra.mxu0 0.0
    %1543 = vmatprep.subr.mxu0 0.0
    %1544 = vmatpush2.msra.mxu0 0.0
    %1545 = vmatprep.subr.mxu0 0.0
    %1546 = vmatpush2.msra.mxu0 0.0
    %1547 = vmatprep.mubr.f32.mxu0 0.0
    %1548 = vmatmul.mubr.f32.gmra.mxu0 %v1410
    %v1549 = vpop.f32.mrf.mxu0
    %v1550 = vadd.f32 0.0, %v1549
    %v1551 = vpop.f32.mrf.mxu0
    %v1552 = vadd.f32 0.0, %v1551
    %1553 = vdwg.mxu0
    %v1558 = vrot.slane %v1479, 6
    %v1559 = vrot.slane %v1481, 6
    %v1560 = vrot.slane %v1550, 6
    %v1561 = vrot.slane %v1552, 6
    %v1562 = vrot.slane %v1479, 7
    %v1563 = vrot.slane %v1481, 7
    %v1564 = vrot.slane %v1550, 7
    %v1565 = vrot.slane %v1552, 7
    %v1566 = vrot.slane %v1479, 1
    %v1567 = vrot.slane %v1481, 1
    %v1568 = vrot.slane %v1550, 1
    %v1569 = vrot.slane %v1552, 1
    %v1570 = vrot.slane %v1479, 2
    %v1571 = vrot.slane %v1481, 2
    %v1572 = vrot.slane %v1550, 2
    %v1573 = vrot.slane %v1552, 2
    %v1574 = vrot.slane %v1479, 3
    %v1575 = vrot.slane %v1481, 3
    %v1576 = vrot.slane %v1550, 3
    %v1577 = vrot.slane %v1552, 3
    %v1578 = vrot.slane %v1479, 4
    %v1579 = vrot.slane %v1481, 4
    %v1580 = vrot.slane %v1550, 4
    %v1581 = vrot.slane %v1552, 4
    %v1582 = vrot.slane %v1479, 5
    %v1583 = vrot.slane %v1481, 5
    %v1584 = vrot.slane %v1550, 5
    %v1585 = vrot.slane %v1552, 5
    %v1618 = vadd.f32 %v252, %v1558
    %v1619 = vadd.f32 %v254, %v1559
    %v1620 = vadd.f32 %v365, %v1560
    %v1621 = vadd.f32 %v367, %v1561
    %v1622 = vadd.f32 %v258, %v1562
    %v1623 = vadd.f32 %v260, %v1563
    %v1624 = vadd.f32 %v371, %v1564
    %v1625 = vadd.f32 %v373, %v1565
    %v1626 = vadd.f32 %v264, %v1479
    %v1627 = vadd.f32 %v266, %v1481
    %v1628 = vadd.f32 %v377, %v1550
    %v1629 = vadd.f32 %v379, %v1552
    %v1630 = vadd.f32 %v270, %v1566
    %v1631 = vadd.f32 %v272, %v1567
    %v1632 = vadd.f32 %v383, %v1568
    %v1633 = vadd.f32 %v385, %v1569
    %v1634 = vadd.f32 %v276, %v1570
    %v1635 = vadd.f32 %v278, %v1571
    %v1636 = vadd.f32 %v389, %v1572
    %v1637 = vadd.f32 %v391, %v1573
    %v1638 = vadd.f32 %v282, %v1574
    %v1639 = vadd.f32 %v284, %v1575
    %v1640 = vadd.f32 %v395, %v1576
    %v1641 = vadd.f32 %v397, %v1577
    %v1642 = vadd.f32 %v288, %v1578
    %v1643 = vadd.f32 %v290, %v1579
    %v1644 = vadd.f32 %v401, %v1580
    %v1645 = vadd.f32 %v403, %v1581
    %v1646 = vadd.f32 %v294, %v1582
    %v1647 = vadd.f32 %v296, %v1583
    %v1648 = vadd.f32 %v407, %v1584
    %v1649 = vadd.f32 %v409, %v1585
    %v1650 = vxor.u32 %v1618, 2147483648
    %v1651 = vxor.u32 %v1622, 2147483648
    %v1652 = vxor.u32 %v1626, 2147483648
    %v1653 = vxor.u32 %v1630, 2147483648
    %v1654 = vxor.u32 %v1634, 2147483648
    %v1655 = vxor.u32 %v1638, 2147483648
    %v1656 = vxor.u32 %v1642, 2147483648
    %v1657 = vxor.u32 %v1646, 2147483648
    %v1658 = vmul.f32 %v1650, 1.442695
    %v1659 = vpow.pop %v1658
    %v1660 = vmul.f32 %v1651, 1.442695
    %v1661 = vpow.pop %v1660
    %v1662 = vmul.f32 %v1652, 1.442695
    %v1663 = vpow.pop %v1662
    %v1664 = vmul.f32 %v1653, 1.442695
    %v1665 = vpow.pop %v1664
    %v1666 = vmul.f32 %v1654, 1.442695
    %v1667 = vpow.pop %v1666
    %v1668 = vmul.f32 %v1655, 1.442695
    %v1669 = vpow.pop %v1668
    %v1670 = vmul.f32 %v1656, 1.442695
    %v1671 = vpow.pop %v1670
    %v1672 = vmul.f32 %v1657, 1.442695
    %v1673 = vpow.pop %v1672
    %v1674 = vadd.f32 %v1659, 1.0
    %v1675 = vadd.f32 %v1661, 1.0
    %v1676 = vadd.f32 %v1663, 1.0
    %v1677 = vadd.f32 %v1665, 1.0
    %v1678 = vadd.f32 %v1667, 1.0
    %v1679 = vadd.f32 %v1669, 1.0
    %v1680 = vadd.f32 %v1671, 1.0
    %v1681 = vadd.f32 %v1673, 1.0
    %v1682 = vrcp.pop %v1674
    %v1683 = vmul.f32 1.0, %v1682
    %v1684 = vrcp.pop %v1675
    %v1685 = vmul.f32 1.0, %v1684
    %v1686 = vrcp.pop %v1676
    %v1687 = vmul.f32 1.0, %v1686
    %v1688 = vrcp.pop %v1677
    %v1689 = vmul.f32 1.0, %v1688
    %v1690 = vrcp.pop %v1678
    %v1691 = vmul.f32 1.0, %v1690
    %v1692 = vrcp.pop %v1679
    %v1693 = vmul.f32 1.0, %v1692
    %v1694 = vrcp.pop %v1680
    %v1695 = vmul.f32 1.0, %v1694
    %v1696 = vrcp.pop %v1681
    %v1697 = vmul.f32 1.0, %v1696
    %v1698 = vxor.u32 %v1619, 2147483648
    %v1699 = vxor.u32 %v1623, 2147483648
    %v1700 = vxor.u32 %v1627, 2147483648
    %v1701 = vxor.u32 %v1631, 2147483648
    %v1702 = vxor.u32 %v1635, 2147483648
    %v1703 = vxor.u32 %v1639, 2147483648
    %v1704 = vxor.u32 %v1643, 2147483648
    %v1705 = vxor.u32 %v1647, 2147483648
    %v1706 = vmul.f32 %v1698, 1.442695
    %v1707 = vpow.pop %v1706
    %v1708 = vmul.f32 %v1699, 1.442695
    %v1709 = vpow.pop %v1708
    %v1710 = vmul.f32 %v1700, 1.442695
    %v1711 = vpow.pop %v1710
    %v1712 = vmul.f32 %v1701, 1.442695
    %v1713 = vpow.pop %v1712
    %v1714 = vmul.f32 %v1702, 1.442695
    %v1715 = vpow.pop %v1714
    %v1716 = vmul.f32 %v1703, 1.442695
    %v1717 = vpow.pop %v1716
    %v1718 = vmul.f32 %v1704, 1.442695
    %v1719 = vpow.pop %v1718
    %v1720 = vmul.f32 %v1705, 1.442695
    %v1721 = vpow.pop %v1720
    %v1722 = vadd.f32 %v1707, 1.0
    %v1723 = vadd.f32 %v1709, 1.0
    %v1724 = vadd.f32 %v1711, 1.0
    %v1725 = vadd.f32 %v1713, 1.0
    %v1726 = vadd.f32 %v1715, 1.0
    %v1727 = vadd.f32 %v1717, 1.0
    %v1728 = vadd.f32 %v1719, 1.0
    %v1729 = vadd.f32 %v1721, 1.0
    %v1730 = vrcp.pop %v1722
    %v1731 = vmul.f32 1.0, %v1730
    %v1732 = vrcp.pop %v1723
    %v1733 = vmul.f32 1.0, %v1732
    %v1734 = vrcp.pop %v1724
    %v1735 = vmul.f32 1.0, %v1734
    %v1736 = vrcp.pop %v1725
    %v1737 = vmul.f32 1.0, %v1736
    %v1738 = vrcp.pop %v1726
    %v1739 = vmul.f32 1.0, %v1738
    %v1740 = vrcp.pop %v1727
    %v1741 = vmul.f32 1.0, %v1740
    %v1742 = vrcp.pop %v1728
    %v1743 = vmul.f32 1.0, %v1742
    %v1744 = vrcp.pop %v1729
    %v1745 = vmul.f32 1.0, %v1744
    %v1746 = vtanh.pop %v1620
    %v1747 = vtanh.pop %v1624
    %v1748 = vtanh.pop %v1628
    %v1749 = vtanh.pop %v1632
    %v1750 = vtanh.pop %v1636
    %v1751 = vtanh.pop %v1640
    %v1752 = vtanh.pop %v1644
    %v1753 = vtanh.pop %v1648
    %v1754 = vxor.u32 %v1621, 2147483648
    %v1755 = vxor.u32 %v1625, 2147483648
    %v1756 = vxor.u32 %v1629, 2147483648
    %v1757 = vxor.u32 %v1633, 2147483648
    %v1758 = vxor.u32 %v1637, 2147483648
    %v1759 = vxor.u32 %v1641, 2147483648
    %v1760 = vxor.u32 %v1645, 2147483648
    %v1761 = vxor.u32 %v1649, 2147483648
    %v1762 = vmul.f32 %v1754, 1.442695
    %v1763 = vpow.pop %v1762
    %v1764 = vmul.f32 %v1755, 1.442695
    %v1765 = vpow.pop %v1764
    %v1766 = vmul.f32 %v1756, 1.442695
    %v1767 = vpow.pop %v1766
    %v1768 = vmul.f32 %v1757, 1.442695
    %v1769 = vpow.pop %v1768
    %v1770 = vmul.f32 %v1758, 1.442695
    %v1771 = vpow.pop %v1770
    %v1772 = vmul.f32 %v1759, 1.442695
    %v1773 = vpow.pop %v1772
    %v1774 = vmul.f32 %v1760, 1.442695
    %v1775 = vpow.pop %v1774
    %v1776 = vmul.f32 %v1761, 1.442695
    %v1777 = vpow.pop %v1776
    %v1778 = vadd.f32 %v1763, 1.0
    %v1779 = vadd.f32 %v1765, 1.0
    %v1780 = vadd.f32 %v1767, 1.0
    %v1781 = vadd.f32 %v1769, 1.0
    %v1782 = vadd.f32 %v1771, 1.0
    %v1783 = vadd.f32 %v1773, 1.0
    %v1784 = vadd.f32 %v1775, 1.0
    %v1785 = vadd.f32 %v1777, 1.0
    %v1786 = vrcp.pop %v1778
    %v1787 = vmul.f32 1.0, %v1786
    %v1788 = vrcp.pop %v1779
    %v1789 = vmul.f32 1.0, %v1788
    %v1790 = vrcp.pop %v1780
    %v1791 = vmul.f32 1.0, %v1790
    %v1792 = vrcp.pop %v1781
    %v1793 = vmul.f32 1.0, %v1792
    %v1794 = vrcp.pop %v1782
    %v1795 = vmul.f32 1.0, %v1794
    %v1796 = vrcp.pop %v1783
    %v1797 = vmul.f32 1.0, %v1796
    %v1798 = vrcp.pop %v1784
    %v1799 = vmul.f32 1.0, %v1798
    %v1800 = vrcp.pop %v1785
    %v1801 = vmul.f32 1.0, %v1800
    %v1810 = vrot.slane %v1365, 7
    %v1811 = vrot.slane %v1366, 7
    %v1812 = vrot.slane %v1367, 7
    %v1813 = vrot.slane %v1368, 7
    %v1814 = vrot.slane %v1369, 7
    %v1815 = vrot.slane %v1370, 7
    %v1816 = vrot.slane %v1371, 7
    %v1817 = vrot.slane %v1372, 7
    %v1826 = vmul.f32 %v1731, %v1810
    %v1827 = vmul.f32 %v1733, %v1811
    %v1828 = vmul.f32 %v1735, %v1812
    %v1829 = vmul.f32 %v1737, %v1813
    %v1830 = vmul.f32 %v1739, %v1814
    %v1831 = vmul.f32 %v1741, %v1815
    %v1832 = vmul.f32 %v1743, %v1816
    %v1833 = vmul.f32 %v1745, %v1817
    %v1834 = vmul.f32 %v1683, %v1746
    %v1835 = vmul.f32 %v1685, %v1747
    %v1836 = vmul.f32 %v1687, %v1748
    %v1837 = vmul.f32 %v1689, %v1749
    %v1838 = vmul.f32 %v1691, %v1750
    %v1839 = vmul.f32 %v1693, %v1751
    %v1840 = vmul.f32 %v1695, %v1752
    %v1841 = vmul.f32 %v1697, %v1753
    %v1842 = vadd.f32 %v1826, %v1834
    %v1843 = vadd.f32 %v1827, %v1835
    %v1844 = vadd.f32 %v1828, %v1836
    %v1845 = vadd.f32 %v1829, %v1837
    %v1846 = vadd.f32 %v1830, %v1838
    %v1847 = vadd.f32 %v1831, %v1839
    %v1848 = vadd.f32 %v1832, %v1840
    %v1849 = vadd.f32 %v1833, %v1841
    %v1850 = vtanh.pop %v1842
    %v1851 = vtanh.pop %v1843
    %v1852 = vtanh.pop %v1844
    %v1853 = vtanh.pop %v1845
    %v1854 = vtanh.pop %v1846
    %v1855 = vtanh.pop %v1847
    %v1856 = vtanh.pop %v1848
    %v1857 = vtanh.pop %v1849
    %v1858 = vmul.f32 %v1787, %v1850
    %v1859 = vmul.f32 %v1789, %v1851
    %v1860 = vmul.f32 %v1791, %v1852
    %v1861 = vmul.f32 %v1793, %v1853
    %v1862 = vmul.f32 %v1795, %v1854
    %v1863 = vmul.f32 %v1797, %v1855
    %v1864 = vmul.f32 %v1799, %v1856
    %v1865 = vmul.f32 %v1801, %v1857
    %v1874 = vrot.slane %v1858, 2
    %v1875 = vrot.slane %v1859, 1
    %v1876 = vsel %vm914, %v1875, %v1874
    %v1877 = vsel %vm917, %v1860, %v1876
    %v1878 = vrot.slane %v1861, 7
    %v1879 = vsel %vm920, %v1878, %v1877
    %v1880 = vrot.slane %v1862, 6
    %v1881 = vsel %vm923, %v1880, %v1879
    %v1882 = vrot.slane %v1863, 5
    %v1883 = vsel %vm926, %v1882, %v1881
    %v1884 = vrot.slane %v1864, 4
    %v1885 = vsel %vm929, %v1884, %v1883
    %v1886 = vrot.slane %v1865, 3
    %v1887 = vsel %vm932, %v1886, %v1885
    %1889 = vmatprep.subr.mxu0 %v472
    %1890 = vmatpush1.msra.mxu0 %v471
    %1891 = vmatprep.subr.mxu0 %v468
    %1892 = vmatpush1.msra.mxu0 %v467
    %1893 = vmatprep.subr.mxu0 %v464
    %1894 = vmatpush1.msra.mxu0 %v463
    %1895 = vmatprep.subr.mxu0 %v460
    %1896 = vmatpush1.msra.mxu0 %v459
    %1897 = vmatprep.subr.mxu0 %v456
    %1898 = vmatpush1.msra.mxu0 %v455
    %1899 = vmatprep.subr.mxu0 %v452
    %1900 = vmatpush1.msra.mxu0 %v451
    %1901 = vmatprep.subr.mxu0 %v448
    %1902 = vmatpush1.msra.mxu0 %v447
    %1903 = vmatprep.subr.mxu0 %v444
    %1904 = vmatpush1.msra.mxu0 %v443
    %1905 = vmatprep.subr.mxu0 %v440
    %1906 = vmatpush1.msra.mxu0 %v439
    %1907 = vmatprep.subr.mxu0 %v436
    %1908 = vmatpush1.msra.mxu0 %v435
    %1909 = vmatprep.subr.mxu0 %v432
    %1910 = vmatpush1.msra.mxu0 %v431
    %1911 = vmatprep.subr.mxu0 %v428
    %1912 = vmatpush1.msra.mxu0 %v427
    %1913 = vmatprep.subr.mxu0 %v424
    %1914 = vmatpush1.msra.mxu0 %v423
    %1915 = vmatprep.subr.mxu0 %v420
    %1916 = vmatpush1.msra.mxu0 %v419
    %1917 = vmatprep.subr.mxu0 %v416
    %1918 = vmatpush1.msra.mxu0 %v415
    %1919 = vmatprep.subr.mxu0 %v412
    %1920 = vmatpush1.msra.mxu0 %v411
    %1921 = vmatprep.subr.mxu0 0.0
    %1922 = vmatpush2.msra.mxu0 0.0
    %1923 = vmatprep.subr.mxu0 0.0
    %1924 = vmatpush2.msra.mxu0 0.0
    %1925 = vmatprep.subr.mxu0 0.0
    %1926 = vmatpush2.msra.mxu0 0.0
    %1927 = vmatprep.subr.mxu0 0.0
    %1928 = vmatpush2.msra.mxu0 0.0
    %1929 = vmatprep.subr.mxu0 0.0
    %1930 = vmatpush2.msra.mxu0 0.0
    %1931 = vmatprep.subr.mxu0 0.0
    %1932 = vmatpush2.msra.mxu0 0.0
    %1933 = vmatprep.subr.mxu0 0.0
    %1934 = vmatpush2.msra.mxu0 0.0
    %1935 = vmatprep.subr.mxu0 0.0
    %1936 = vmatpush2.msra.mxu0 0.0
    %1937 = vmatprep.subr.mxu0 0.0
    %1938 = vmatpush2.msra.mxu0 0.0
    %1939 = vmatprep.subr.mxu0 0.0
    %1940 = vmatpush2.msra.mxu0 0.0
    %1941 = vmatprep.subr.mxu0 0.0
    %1942 = vmatpush2.msra.mxu0 0.0
    %1943 = vmatprep.subr.mxu0 0.0
    %1944 = vmatpush2.msra.mxu0 0.0
    %1945 = vmatprep.subr.mxu0 0.0
    %1946 = vmatpush2.msra.mxu0 0.0
    %1947 = vmatprep.subr.mxu0 0.0
    %1948 = vmatpush2.msra.mxu0 0.0
    %1949 = vmatprep.subr.mxu0 0.0
    %1950 = vmatpush2.msra.mxu0 0.0
    %1951 = vmatprep.subr.mxu0 0.0
    %1952 = vmatpush2.msra.mxu0 0.0
    %1953 = vmatprep.mubr.f32.mxu0 0.0
    %1954 = vmatmul.mubr.f32.gmra.mxu0 %v1887
    %v1955 = vpop.f32.mrf.mxu0
    %v1956 = vadd.f32 0.0, %v1955
    %v1957 = vpop.f32.mrf.mxu0
    %v1958 = vadd.f32 0.0, %v1957
    %1959 = vdwg.mxu0
    %1960 = vmatprep.subr.mxu0 %v474
    %1961 = vmatpush1.msra.mxu0 %v473
    %1962 = vmatprep.subr.mxu0 %v470
    %1963 = vmatpush1.msra.mxu0 %v469
    %1964 = vmatprep.subr.mxu0 %v466
    %1965 = vmatpush1.msra.mxu0 %v465
    %1966 = vmatprep.subr.mxu0 %v462
    %1967 = vmatpush1.msra.mxu0 %v461
    %1968 = vmatprep.subr.mxu0 %v458
    %1969 = vmatpush1.msra.mxu0 %v457
    %1970 = vmatprep.subr.mxu0 %v454
    %1971 = vmatpush1.msra.mxu0 %v453
    %1972 = vmatprep.subr.mxu0 %v450
    %1973 = vmatpush1.msra.mxu0 %v449
    %1974 = vmatprep.subr.mxu0 %v446
    %1975 = vmatpush1.msra.mxu0 %v445
    %1976 = vmatprep.subr.mxu0 %v442
    %1977 = vmatpush1.msra.mxu0 %v441
    %1978 = vmatprep.subr.mxu0 %v438
    %1979 = vmatpush1.msra.mxu0 %v437
    %1980 = vmatprep.subr.mxu0 %v434
    %1981 = vmatpush1.msra.mxu0 %v433
    %1982 = vmatprep.subr.mxu0 %v430
    %1983 = vmatpush1.msra.mxu0 %v429
    %1984 = vmatprep.subr.mxu0 %v426
    %1985 = vmatpush1.msra.mxu0 %v425
    %1986 = vmatprep.subr.mxu0 %v422
    %1987 = vmatpush1.msra.mxu0 %v421
    %1988 = vmatprep.subr.mxu0 %v418
    %1989 = vmatpush1.msra.mxu0 %v417
    %1990 = vmatprep.subr.mxu0 %v414
    %1991 = vmatpush1.msra.mxu0 %v413
    %1992 = vmatprep.subr.mxu0 0.0
    %1993 = vmatpush2.msra.mxu0 0.0
    %1994 = vmatprep.subr.mxu0 0.0
    %1995 = vmatpush2.msra.mxu0 0.0
    %1996 = vmatprep.subr.mxu0 0.0
    %1997 = vmatpush2.msra.mxu0 0.0
    %1998 = vmatprep.subr.mxu0 0.0
    %1999 = vmatpush2.msra.mxu0 0.0
    %2000 = vmatprep.subr.mxu0 0.0
    %2001 = vmatpush2.msra.mxu0 0.0
    %2002 = vmatprep.subr.mxu0 0.0
    %2003 = vmatpush2.msra.mxu0 0.0
    %2004 = vmatprep.subr.mxu0 0.0
    %2005 = vmatpush2.msra.mxu0 0.0
    %2006 = vmatprep.subr.mxu0 0.0
    %2007 = vmatpush2.msra.mxu0 0.0
    %2008 = vmatprep.subr.mxu0 0.0
    %2009 = vmatpush2.msra.mxu0 0.0
    %2010 = vmatprep.subr.mxu0 0.0
    %2011 = vmatpush2.msra.mxu0 0.0
    %2012 = vmatprep.subr.mxu0 0.0
    %2013 = vmatpush2.msra.mxu0 0.0
    %2014 = vmatprep.subr.mxu0 0.0
    %2015 = vmatpush2.msra.mxu0 0.0
    %2016 = vmatprep.subr.mxu0 0.0
    %2017 = vmatpush2.msra.mxu0 0.0
    %2018 = vmatprep.subr.mxu0 0.0
    %2019 = vmatpush2.msra.mxu0 0.0
    %2020 = vmatprep.subr.mxu0 0.0
    %2021 = vmatpush2.msra.mxu0 0.0
    %2022 = vmatprep.subr.mxu0 0.0
    %2023 = vmatpush2.msra.mxu0 0.0
    %2024 = vmatprep.mubr.f32.mxu0 0.0
    %2025 = vmatmul.mubr.f32.gmra.mxu0 %v1887
    %v2026 = vpop.f32.mrf.mxu0
    %v2027 = vadd.f32 0.0, %v2026
    %v2028 = vpop.f32.mrf.mxu0
    %v2029 = vadd.f32 0.0, %v2028
    %2030 = vdwg.mxu0
    %v2035 = vrot.slane %v1956, 5
    %v2036 = vrot.slane %v1958, 5
    %v2037 = vrot.slane %v2027, 5
    %v2038 = vrot.slane %v2029, 5
    %v2039 = vrot.slane %v1956, 6
    %v2040 = vrot.slane %v1958, 6
    %v2041 = vrot.slane %v2027, 6
    %v2042 = vrot.slane %v2029, 6
    %v2043 = vrot.slane %v1956, 7
    %v2044 = vrot.slane %v1958, 7
    %v2045 = vrot.slane %v2027, 7
    %v2046 = vrot.slane %v2029, 7
    %v2047 = vrot.slane %v1956, 1
    %v2048 = vrot.slane %v1958, 1
    %v2049 = vrot.slane %v2027, 1
    %v2050 = vrot.slane %v2029, 1
    %v2051 = vrot.slane %v1956, 2
    %v2052 = vrot.slane %v1958, 2
    %v2053 = vrot.slane %v2027, 2
    %v2054 = vrot.slane %v2029, 2
    %v2055 = vrot.slane %v1956, 3
    %v2056 = vrot.slane %v1958, 3
    %v2057 = vrot.slane %v2027, 3
    %v2058 = vrot.slane %v2029, 3
    %v2059 = vrot.slane %v1956, 4
    %v2060 = vrot.slane %v1958, 4
    %v2061 = vrot.slane %v2027, 4
    %v2062 = vrot.slane %v2029, 4
    %v2095 = vadd.f32 %v252, %v2035
    %v2096 = vadd.f32 %v254, %v2036
    %v2097 = vadd.f32 %v365, %v2037
    %v2098 = vadd.f32 %v367, %v2038
    %v2099 = vadd.f32 %v258, %v2039
    %v2100 = vadd.f32 %v260, %v2040
    %v2101 = vadd.f32 %v371, %v2041
    %v2102 = vadd.f32 %v373, %v2042
    %v2103 = vadd.f32 %v264, %v2043
    %v2104 = vadd.f32 %v266, %v2044
    %v2105 = vadd.f32 %v377, %v2045
    %v2106 = vadd.f32 %v379, %v2046
    %v2107 = vadd.f32 %v270, %v1956
    %v2108 = vadd.f32 %v272, %v1958
    %v2109 = vadd.f32 %v383, %v2027
    %v2110 = vadd.f32 %v385, %v2029
    %v2111 = vadd.f32 %v276, %v2047
    %v2112 = vadd.f32 %v278, %v2048
    %v2113 = vadd.f32 %v389, %v2049
    %v2114 = vadd.f32 %v391, %v2050
    %v2115 = vadd.f32 %v282, %v2051
    %v2116 = vadd.f32 %v284, %v2052
    %v2117 = vadd.f32 %v395, %v2053
    %v2118 = vadd.f32 %v397, %v2054
    %v2119 = vadd.f32 %v288, %v2055
    %v2120 = vadd.f32 %v290, %v2056
    %v2121 = vadd.f32 %v401, %v2057
    %v2122 = vadd.f32 %v403, %v2058
    %v2123 = vadd.f32 %v294, %v2059
    %v2124 = vadd.f32 %v296, %v2060
    %v2125 = vadd.f32 %v407, %v2061
    %v2126 = vadd.f32 %v409, %v2062
    %v2127 = vxor.u32 %v2095, 2147483648
    %v2128 = vxor.u32 %v2099, 2147483648
    %v2129 = vxor.u32 %v2103, 2147483648
    %v2130 = vxor.u32 %v2107, 2147483648
    %v2131 = vxor.u32 %v2111, 2147483648
    %v2132 = vxor.u32 %v2115, 2147483648
    %v2133 = vxor.u32 %v2119, 2147483648
    %v2134 = vxor.u32 %v2123, 2147483648
    %v2135 = vmul.f32 %v2127, 1.442695
    %v2136 = vpow.pop %v2135
    %v2137 = vmul.f32 %v2128, 1.442695
    %v2138 = vpow.pop %v2137
    %v2139 = vmul.f32 %v2129, 1.442695
    %v2140 = vpow.pop %v2139
    %v2141 = vmul.f32 %v2130, 1.442695
    %v2142 = vpow.pop %v2141
    %v2143 = vmul.f32 %v2131, 1.442695
    %v2144 = vpow.pop %v2143
    %v2145 = vmul.f32 %v2132, 1.442695
    %v2146 = vpow.pop %v2145
    %v2147 = vmul.f32 %v2133, 1.442695
    %v2148 = vpow.pop %v2147
    %v2149 = vmul.f32 %v2134, 1.442695
    %v2150 = vpow.pop %v2149
    %v2151 = vadd.f32 %v2136, 1.0
    %v2152 = vadd.f32 %v2138, 1.0
    %v2153 = vadd.f32 %v2140, 1.0
    %v2154 = vadd.f32 %v2142, 1.0
    %v2155 = vadd.f32 %v2144, 1.0
    %v2156 = vadd.f32 %v2146, 1.0
    %v2157 = vadd.f32 %v2148, 1.0
    %v2158 = vadd.f32 %v2150, 1.0
    %v2159 = vrcp.pop %v2151
    %v2160 = vmul.f32 1.0, %v2159
    %v2161 = vrcp.pop %v2152
    %v2162 = vmul.f32 1.0, %v2161
    %v2163 = vrcp.pop %v2153
    %v2164 = vmul.f32 1.0, %v2163
    %v2165 = vrcp.pop %v2154
    %v2166 = vmul.f32 1.0, %v2165
    %v2167 = vrcp.pop %v2155
    %v2168 = vmul.f32 1.0, %v2167
    %v2169 = vrcp.pop %v2156
    %v2170 = vmul.f32 1.0, %v2169
    %v2171 = vrcp.pop %v2157
    %v2172 = vmul.f32 1.0, %v2171
    %v2173 = vrcp.pop %v2158
    %v2174 = vmul.f32 1.0, %v2173
    %v2175 = vxor.u32 %v2096, 2147483648
    %v2176 = vxor.u32 %v2100, 2147483648
    %v2177 = vxor.u32 %v2104, 2147483648
    %v2178 = vxor.u32 %v2108, 2147483648
    %v2179 = vxor.u32 %v2112, 2147483648
    %v2180 = vxor.u32 %v2116, 2147483648
    %v2181 = vxor.u32 %v2120, 2147483648
    %v2182 = vxor.u32 %v2124, 2147483648
    %v2183 = vmul.f32 %v2175, 1.442695
    %v2184 = vpow.pop %v2183
    %v2185 = vmul.f32 %v2176, 1.442695
    %v2186 = vpow.pop %v2185
    %v2187 = vmul.f32 %v2177, 1.442695
    %v2188 = vpow.pop %v2187
    %v2189 = vmul.f32 %v2178, 1.442695
    %v2190 = vpow.pop %v2189
    %v2191 = vmul.f32 %v2179, 1.442695
    %v2192 = vpow.pop %v2191
    %v2193 = vmul.f32 %v2180, 1.442695
    %v2194 = vpow.pop %v2193
    %v2195 = vmul.f32 %v2181, 1.442695
    %v2196 = vpow.pop %v2195
    %v2197 = vmul.f32 %v2182, 1.442695
    %v2198 = vpow.pop %v2197
    %v2199 = vadd.f32 %v2184, 1.0
    %v2200 = vadd.f32 %v2186, 1.0
    %v2201 = vadd.f32 %v2188, 1.0
    %v2202 = vadd.f32 %v2190, 1.0
    %v2203 = vadd.f32 %v2192, 1.0
    %v2204 = vadd.f32 %v2194, 1.0
    %v2205 = vadd.f32 %v2196, 1.0
    %v2206 = vadd.f32 %v2198, 1.0
    %v2207 = vrcp.pop %v2199
    %v2208 = vmul.f32 1.0, %v2207
    %v2209 = vrcp.pop %v2200
    %v2210 = vmul.f32 1.0, %v2209
    %v2211 = vrcp.pop %v2201
    %v2212 = vmul.f32 1.0, %v2211
    %v2213 = vrcp.pop %v2202
    %v2214 = vmul.f32 1.0, %v2213
    %v2215 = vrcp.pop %v2203
    %v2216 = vmul.f32 1.0, %v2215
    %v2217 = vrcp.pop %v2204
    %v2218 = vmul.f32 1.0, %v2217
    %v2219 = vrcp.pop %v2205
    %v2220 = vmul.f32 1.0, %v2219
    %v2221 = vrcp.pop %v2206
    %v2222 = vmul.f32 1.0, %v2221
    %v2223 = vtanh.pop %v2097
    %v2224 = vtanh.pop %v2101
    %v2225 = vtanh.pop %v2105
    %v2226 = vtanh.pop %v2109
    %v2227 = vtanh.pop %v2113
    %v2228 = vtanh.pop %v2117
    %v2229 = vtanh.pop %v2121
    %v2230 = vtanh.pop %v2125
    %v2231 = vxor.u32 %v2098, 2147483648
    %v2232 = vxor.u32 %v2102, 2147483648
    %v2233 = vxor.u32 %v2106, 2147483648
    %v2234 = vxor.u32 %v2110, 2147483648
    %v2235 = vxor.u32 %v2114, 2147483648
    %v2236 = vxor.u32 %v2118, 2147483648
    %v2237 = vxor.u32 %v2122, 2147483648
    %v2238 = vxor.u32 %v2126, 2147483648
    %v2239 = vmul.f32 %v2231, 1.442695
    %v2240 = vpow.pop %v2239
    %v2241 = vmul.f32 %v2232, 1.442695
    %v2242 = vpow.pop %v2241
    %v2243 = vmul.f32 %v2233, 1.442695
    %v2244 = vpow.pop %v2243
    %v2245 = vmul.f32 %v2234, 1.442695
    %v2246 = vpow.pop %v2245
    %v2247 = vmul.f32 %v2235, 1.442695
    %v2248 = vpow.pop %v2247
    %v2249 = vmul.f32 %v2236, 1.442695
    %v2250 = vpow.pop %v2249
    %v2251 = vmul.f32 %v2237, 1.442695
    %v2252 = vpow.pop %v2251
    %v2253 = vmul.f32 %v2238, 1.442695
    %v2254 = vpow.pop %v2253
    %v2255 = vadd.f32 %v2240, 1.0
    %v2256 = vadd.f32 %v2242, 1.0
    %v2257 = vadd.f32 %v2244, 1.0
    %v2258 = vadd.f32 %v2246, 1.0
    %v2259 = vadd.f32 %v2248, 1.0
    %v2260 = vadd.f32 %v2250, 1.0
    %v2261 = vadd.f32 %v2252, 1.0
    %v2262 = vadd.f32 %v2254, 1.0
    %v2263 = vrcp.pop %v2255
    %v2264 = vmul.f32 1.0, %v2263
    %v2265 = vrcp.pop %v2256
    %v2266 = vmul.f32 1.0, %v2265
    %v2267 = vrcp.pop %v2257
    %v2268 = vmul.f32 1.0, %v2267
    %v2269 = vrcp.pop %v2258
    %v2270 = vmul.f32 1.0, %v2269
    %v2271 = vrcp.pop %v2259
    %v2272 = vmul.f32 1.0, %v2271
    %v2273 = vrcp.pop %v2260
    %v2274 = vmul.f32 1.0, %v2273
    %v2275 = vrcp.pop %v2261
    %v2276 = vmul.f32 1.0, %v2275
    %v2277 = vrcp.pop %v2262
    %v2278 = vmul.f32 1.0, %v2277
    %v2287 = vrot.slane %v1842, 7
    %v2288 = vrot.slane %v1843, 7
    %v2289 = vrot.slane %v1844, 7
    %v2290 = vrot.slane %v1845, 7
    %v2291 = vrot.slane %v1846, 7
    %v2292 = vrot.slane %v1847, 7
    %v2293 = vrot.slane %v1848, 7
    %v2294 = vrot.slane %v1849, 7
    %v2303 = vmul.f32 %v2208, %v2287
    %v2304 = vmul.f32 %v2210, %v2288
    %v2305 = vmul.f32 %v2212, %v2289
    %v2306 = vmul.f32 %v2214, %v2290
    %v2307 = vmul.f32 %v2216, %v2291
    %v2308 = vmul.f32 %v2218, %v2292
    %v2309 = vmul.f32 %v2220, %v2293
    %v2310 = vmul.f32 %v2222, %v2294
    %v2311 = vmul.f32 %v2160, %v2223
    %v2312 = vmul.f32 %v2162, %v2224
    %v2313 = vmul.f32 %v2164, %v2225
    %v2314 = vmul.f32 %v2166, %v2226
    %v2315 = vmul.f32 %v2168, %v2227
    %v2316 = vmul.f32 %v2170, %v2228
    %v2317 = vmul.f32 %v2172, %v2229
    %v2318 = vmul.f32 %v2174, %v2230
    %v2319 = vadd.f32 %v2303, %v2311
    %v2320 = vadd.f32 %v2304, %v2312
    %v2321 = vadd.f32 %v2305, %v2313
    %v2322 = vadd.f32 %v2306, %v2314
    %v2323 = vadd.f32 %v2307, %v2315
    %v2324 = vadd.f32 %v2308, %v2316
    %v2325 = vadd.f32 %v2309, %v2317
    %v2326 = vadd.f32 %v2310, %v2318
    %v2327 = vtanh.pop %v2319
    %v2328 = vtanh.pop %v2320
    %v2329 = vtanh.pop %v2321
    %v2330 = vtanh.pop %v2322
    %v2331 = vtanh.pop %v2323
    %v2332 = vtanh.pop %v2324
    %v2333 = vtanh.pop %v2325
    %v2334 = vtanh.pop %v2326
    %v2335 = vmul.f32 %v2264, %v2327
    %v2336 = vmul.f32 %v2266, %v2328
    %v2337 = vmul.f32 %v2268, %v2329
    %v2338 = vmul.f32 %v2270, %v2330
    %v2339 = vmul.f32 %v2272, %v2331
    %v2340 = vmul.f32 %v2274, %v2332
    %v2341 = vmul.f32 %v2276, %v2333
    %v2342 = vmul.f32 %v2278, %v2334
    %v2351 = vrot.slane %v2335, 3
    %v2352 = vrot.slane %v2336, 2
    %v2353 = vsel %vm914, %v2352, %v2351
    %v2354 = vrot.slane %v2337, 1
    %v2355 = vsel %vm917, %v2354, %v2353
    %v2356 = vsel %vm920, %v2338, %v2355
    %v2357 = vrot.slane %v2339, 7
    %v2358 = vsel %vm923, %v2357, %v2356
    %v2359 = vrot.slane %v2340, 6
    %v2360 = vsel %vm926, %v2359, %v2358
    %v2361 = vrot.slane %v2341, 5
    %v2362 = vsel %vm929, %v2361, %v2360
    %v2363 = vrot.slane %v2342, 4
    %v2364 = vsel %vm932, %v2363, %v2362
    %2366 = vmatprep.subr.mxu0 %v472
    %2367 = vmatpush1.msra.mxu0 %v471
    %2368 = vmatprep.subr.mxu0 %v468
    %2369 = vmatpush1.msra.mxu0 %v467
    %2370 = vmatprep.subr.mxu0 %v464
    %2371 = vmatpush1.msra.mxu0 %v463
    %2372 = vmatprep.subr.mxu0 %v460
    %2373 = vmatpush1.msra.mxu0 %v459
    %2374 = vmatprep.subr.mxu0 %v456
    %2375 = vmatpush1.msra.mxu0 %v455
    %2376 = vmatprep.subr.mxu0 %v452
    %2377 = vmatpush1.msra.mxu0 %v451
    %2378 = vmatprep.subr.mxu0 %v448
    %2379 = vmatpush1.msra.mxu0 %v447
    %2380 = vmatprep.subr.mxu0 %v444
    %2381 = vmatpush1.msra.mxu0 %v443
    %2382 = vmatprep.subr.mxu0 %v440
    %2383 = vmatpush1.msra.mxu0 %v439
    %2384 = vmatprep.subr.mxu0 %v436
    %2385 = vmatpush1.msra.mxu0 %v435
    %2386 = vmatprep.subr.mxu0 %v432
    %2387 = vmatpush1.msra.mxu0 %v431
    %2388 = vmatprep.subr.mxu0 %v428
    %2389 = vmatpush1.msra.mxu0 %v427
    %2390 = vmatprep.subr.mxu0 %v424
    %2391 = vmatpush1.msra.mxu0 %v423
    %2392 = vmatprep.subr.mxu0 %v420
    %2393 = vmatpush1.msra.mxu0 %v419
    %2394 = vmatprep.subr.mxu0 %v416
    %2395 = vmatpush1.msra.mxu0 %v415
    %2396 = vmatprep.subr.mxu0 %v412
    %2397 = vmatpush1.msra.mxu0 %v411
    %2398 = vmatprep.subr.mxu0 0.0
    %2399 = vmatpush2.msra.mxu0 0.0
    %2400 = vmatprep.subr.mxu0 0.0
    %2401 = vmatpush2.msra.mxu0 0.0
    %2402 = vmatprep.subr.mxu0 0.0
    %2403 = vmatpush2.msra.mxu0 0.0
    %2404 = vmatprep.subr.mxu0 0.0
    %2405 = vmatpush2.msra.mxu0 0.0
    %2406 = vmatprep.subr.mxu0 0.0
    %2407 = vmatpush2.msra.mxu0 0.0
    %2408 = vmatprep.subr.mxu0 0.0
    %2409 = vmatpush2.msra.mxu0 0.0
    %2410 = vmatprep.subr.mxu0 0.0
    %2411 = vmatpush2.msra.mxu0 0.0
    %2412 = vmatprep.subr.mxu0 0.0
    %2413 = vmatpush2.msra.mxu0 0.0
    %2414 = vmatprep.subr.mxu0 0.0
    %2415 = vmatpush2.msra.mxu0 0.0
    %2416 = vmatprep.subr.mxu0 0.0
    %2417 = vmatpush2.msra.mxu0 0.0
    %2418 = vmatprep.subr.mxu0 0.0
    %2419 = vmatpush2.msra.mxu0 0.0
    %2420 = vmatprep.subr.mxu0 0.0
    %2421 = vmatpush2.msra.mxu0 0.0
    %2422 = vmatprep.subr.mxu0 0.0
    %2423 = vmatpush2.msra.mxu0 0.0
    %2424 = vmatprep.subr.mxu0 0.0
    %2425 = vmatpush2.msra.mxu0 0.0
    %2426 = vmatprep.subr.mxu0 0.0
    %2427 = vmatpush2.msra.mxu0 0.0
    %2428 = vmatprep.subr.mxu0 0.0
    %2429 = vmatpush2.msra.mxu0 0.0
    %2430 = vmatprep.mubr.f32.mxu0 0.0
    %2431 = vmatmul.mubr.f32.gmra.mxu0 %v2364
    %v2432 = vpop.f32.mrf.mxu0
    %v2433 = vadd.f32 0.0, %v2432
    %v2434 = vpop.f32.mrf.mxu0
    %v2435 = vadd.f32 0.0, %v2434
    %2436 = vdwg.mxu0
    %2437 = vmatprep.subr.mxu0 %v474
    %2438 = vmatpush1.msra.mxu0 %v473
    %2439 = vmatprep.subr.mxu0 %v470
    %2440 = vmatpush1.msra.mxu0 %v469
    %2441 = vmatprep.subr.mxu0 %v466
    %2442 = vmatpush1.msra.mxu0 %v465
    %2443 = vmatprep.subr.mxu0 %v462
    %2444 = vmatpush1.msra.mxu0 %v461
    %2445 = vmatprep.subr.mxu0 %v458
    %2446 = vmatpush1.msra.mxu0 %v457
    %2447 = vmatprep.subr.mxu0 %v454
    %2448 = vmatpush1.msra.mxu0 %v453
    %2449 = vmatprep.subr.mxu0 %v450
    %2450 = vmatpush1.msra.mxu0 %v449
    %2451 = vmatprep.subr.mxu0 %v446
    %2452 = vmatpush1.msra.mxu0 %v445
    %2453 = vmatprep.subr.mxu0 %v442
    %2454 = vmatpush1.msra.mxu0 %v441
    %2455 = vmatprep.subr.mxu0 %v438
    %2456 = vmatpush1.msra.mxu0 %v437
    %2457 = vmatprep.subr.mxu0 %v434
    %2458 = vmatpush1.msra.mxu0 %v433
    %2459 = vmatprep.subr.mxu0 %v430
    %2460 = vmatpush1.msra.mxu0 %v429
    %2461 = vmatprep.subr.mxu0 %v426
    %2462 = vmatpush1.msra.mxu0 %v425
    %2463 = vmatprep.subr.mxu0 %v422
    %2464 = vmatpush1.msra.mxu0 %v421
    %2465 = vmatprep.subr.mxu0 %v418
    %2466 = vmatpush1.msra.mxu0 %v417
    %2467 = vmatprep.subr.mxu0 %v414
    %2468 = vmatpush1.msra.mxu0 %v413
    %2469 = vmatprep.subr.mxu0 0.0
    %2470 = vmatpush2.msra.mxu0 0.0
    %2471 = vmatprep.subr.mxu0 0.0
    %2472 = vmatpush2.msra.mxu0 0.0
    %2473 = vmatprep.subr.mxu0 0.0
    %2474 = vmatpush2.msra.mxu0 0.0
    %2475 = vmatprep.subr.mxu0 0.0
    %2476 = vmatpush2.msra.mxu0 0.0
    %2477 = vmatprep.subr.mxu0 0.0
    %2478 = vmatpush2.msra.mxu0 0.0
    %2479 = vmatprep.subr.mxu0 0.0
    %2480 = vmatpush2.msra.mxu0 0.0
    %2481 = vmatprep.subr.mxu0 0.0
    %2482 = vmatpush2.msra.mxu0 0.0
    %2483 = vmatprep.subr.mxu0 0.0
    %2484 = vmatpush2.msra.mxu0 0.0
    %2485 = vmatprep.subr.mxu0 0.0
    %2486 = vmatpush2.msra.mxu0 0.0
    %2487 = vmatprep.subr.mxu0 0.0
    %2488 = vmatpush2.msra.mxu0 0.0
    %2489 = vmatprep.subr.mxu0 0.0
    %2490 = vmatpush2.msra.mxu0 0.0
    %2491 = vmatprep.subr.mxu0 0.0
    %2492 = vmatpush2.msra.mxu0 0.0
    %2493 = vmatprep.subr.mxu0 0.0
    %2494 = vmatpush2.msra.mxu0 0.0
    %2495 = vmatprep.subr.mxu0 0.0
    %2496 = vmatpush2.msra.mxu0 0.0
    %2497 = vmatprep.subr.mxu0 0.0
    %2498 = vmatpush2.msra.mxu0 0.0
    %2499 = vmatprep.subr.mxu0 0.0
    %2500 = vmatpush2.msra.mxu0 0.0
    %2501 = vmatprep.mubr.f32.mxu0 0.0
    %2502 = vmatmul.mubr.f32.gmra.mxu0 %v2364
    %v2503 = vpop.f32.mrf.mxu0
    %v2504 = vadd.f32 0.0, %v2503
    %v2505 = vpop.f32.mrf.mxu0
    %v2506 = vadd.f32 0.0, %v2505
    %2507 = vdwg.mxu0
    %v2512 = vrot.slane %v2433, 4
    %v2513 = vrot.slane %v2435, 4
    %v2514 = vrot.slane %v2504, 4
    %v2515 = vrot.slane %v2506, 4
    %v2516 = vrot.slane %v2433, 5
    %v2517 = vrot.slane %v2435, 5
    %v2518 = vrot.slane %v2504, 5
    %v2519 = vrot.slane %v2506, 5
    %v2520 = vrot.slane %v2433, 6
    %v2521 = vrot.slane %v2435, 6
    %v2522 = vrot.slane %v2504, 6
    %v2523 = vrot.slane %v2506, 6
    %v2524 = vrot.slane %v2433, 7
    %v2525 = vrot.slane %v2435, 7
    %v2526 = vrot.slane %v2504, 7
    %v2527 = vrot.slane %v2506, 7
    %v2528 = vrot.slane %v2433, 1
    %v2529 = vrot.slane %v2435, 1
    %v2530 = vrot.slane %v2504, 1
    %v2531 = vrot.slane %v2506, 1
    %v2532 = vrot.slane %v2433, 2
    %v2533 = vrot.slane %v2435, 2
    %v2534 = vrot.slane %v2504, 2
    %v2535 = vrot.slane %v2506, 2
    %v2536 = vrot.slane %v2433, 3
    %v2537 = vrot.slane %v2435, 3
    %v2538 = vrot.slane %v2504, 3
    %v2539 = vrot.slane %v2506, 3
    %v2572 = vadd.f32 %v252, %v2512
    %v2573 = vadd.f32 %v254, %v2513
    %v2574 = vadd.f32 %v365, %v2514
    %v2575 = vadd.f32 %v367, %v2515
    %v2576 = vadd.f32 %v258, %v2516
    %v2577 = vadd.f32 %v260, %v2517
    %v2578 = vadd.f32 %v371, %v2518
    %v2579 = vadd.f32 %v373, %v2519
    %v2580 = vadd.f32 %v264, %v2520
    %v2581 = vadd.f32 %v266, %v2521
    %v2582 = vadd.f32 %v377, %v2522
    %v2583 = vadd.f32 %v379, %v2523
    %v2584 = vadd.f32 %v270, %v2524
    %v2585 = vadd.f32 %v272, %v2525
    %v2586 = vadd.f32 %v383, %v2526
    %v2587 = vadd.f32 %v385, %v2527
    %v2588 = vadd.f32 %v276, %v2433
    %v2589 = vadd.f32 %v278, %v2435
    %v2590 = vadd.f32 %v389, %v2504
    %v2591 = vadd.f32 %v391, %v2506
    %v2592 = vadd.f32 %v282, %v2528
    %v2593 = vadd.f32 %v284, %v2529
    %v2594 = vadd.f32 %v395, %v2530
    %v2595 = vadd.f32 %v397, %v2531
    %v2596 = vadd.f32 %v288, %v2532
    %v2597 = vadd.f32 %v290, %v2533
    %v2598 = vadd.f32 %v401, %v2534
    %v2599 = vadd.f32 %v403, %v2535
    %v2600 = vadd.f32 %v294, %v2536
    %v2601 = vadd.f32 %v296, %v2537
    %v2602 = vadd.f32 %v407, %v2538
    %v2603 = vadd.f32 %v409, %v2539
    %v2604 = vxor.u32 %v2572, 2147483648
    %v2605 = vxor.u32 %v2576, 2147483648
    %v2606 = vxor.u32 %v2580, 2147483648
    %v2607 = vxor.u32 %v2584, 2147483648
    %v2608 = vxor.u32 %v2588, 2147483648
    %v2609 = vxor.u32 %v2592, 2147483648
    %v2610 = vxor.u32 %v2596, 2147483648
    %v2611 = vxor.u32 %v2600, 2147483648
    %v2612 = vmul.f32 %v2604, 1.442695
    %v2613 = vpow.pop %v2612
    %v2614 = vmul.f32 %v2605, 1.442695
    %v2615 = vpow.pop %v2614
    %v2616 = vmul.f32 %v2606, 1.442695
    %v2617 = vpow.pop %v2616
    %v2618 = vmul.f32 %v2607, 1.442695
    %v2619 = vpow.pop %v2618
    %v2620 = vmul.f32 %v2608, 1.442695
    %v2621 = vpow.pop %v2620
    %v2622 = vmul.f32 %v2609, 1.442695
    %v2623 = vpow.pop %v2622
    %v2624 = vmul.f32 %v2610, 1.442695
    %v2625 = vpow.pop %v2624
    %v2626 = vmul.f32 %v2611, 1.442695
    %v2627 = vpow.pop %v2626
    %v2628 = vadd.f32 %v2613, 1.0
    %v2629 = vadd.f32 %v2615, 1.0
    %v2630 = vadd.f32 %v2617, 1.0
    %v2631 = vadd.f32 %v2619, 1.0
    %v2632 = vadd.f32 %v2621, 1.0
    %v2633 = vadd.f32 %v2623, 1.0
    %v2634 = vadd.f32 %v2625, 1.0
    %v2635 = vadd.f32 %v2627, 1.0
    %v2636 = vrcp.pop %v2628
    %v2637 = vmul.f32 1.0, %v2636
    %v2638 = vrcp.pop %v2629
    %v2639 = vmul.f32 1.0, %v2638
    %v2640 = vrcp.pop %v2630
    %v2641 = vmul.f32 1.0, %v2640
    %v2642 = vrcp.pop %v2631
    %v2643 = vmul.f32 1.0, %v2642
    %v2644 = vrcp.pop %v2632
    %v2645 = vmul.f32 1.0, %v2644
    %v2646 = vrcp.pop %v2633
    %v2647 = vmul.f32 1.0, %v2646
    %v2648 = vrcp.pop %v2634
    %v2649 = vmul.f32 1.0, %v2648
    %v2650 = vrcp.pop %v2635
    %v2651 = vmul.f32 1.0, %v2650
    %v2652 = vxor.u32 %v2573, 2147483648
    %v2653 = vxor.u32 %v2577, 2147483648
    %v2654 = vxor.u32 %v2581, 2147483648
    %v2655 = vxor.u32 %v2585, 2147483648
    %v2656 = vxor.u32 %v2589, 2147483648
    %v2657 = vxor.u32 %v2593, 2147483648
    %v2658 = vxor.u32 %v2597, 2147483648
    %v2659 = vxor.u32 %v2601, 2147483648
    %v2660 = vmul.f32 %v2652, 1.442695
    %v2661 = vpow.pop %v2660
    %v2662 = vmul.f32 %v2653, 1.442695
    %v2663 = vpow.pop %v2662
    %v2664 = vmul.f32 %v2654, 1.442695
    %v2665 = vpow.pop %v2664
    %v2666 = vmul.f32 %v2655, 1.442695
    %v2667 = vpow.pop %v2666
    %v2668 = vmul.f32 %v2656, 1.442695
    %v2669 = vpow.pop %v2668
    %v2670 = vmul.f32 %v2657, 1.442695
    %v2671 = vpow.pop %v2670
    %v2672 = vmul.f32 %v2658, 1.442695
    %v2673 = vpow.pop %v2672
    %v2674 = vmul.f32 %v2659, 1.442695
    %v2675 = vpow.pop %v2674
    %v2676 = vadd.f32 %v2661, 1.0
    %v2677 = vadd.f32 %v2663, 1.0
    %v2678 = vadd.f32 %v2665, 1.0
    %v2679 = vadd.f32 %v2667, 1.0
    %v2680 = vadd.f32 %v2669, 1.0
    %v2681 = vadd.f32 %v2671, 1.0
    %v2682 = vadd.f32 %v2673, 1.0
    %v2683 = vadd.f32 %v2675, 1.0
    %v2684 = vrcp.pop %v2676
    %v2685 = vmul.f32 1.0, %v2684
    %v2686 = vrcp.pop %v2677
    %v2687 = vmul.f32 1.0, %v2686
    %v2688 = vrcp.pop %v2678
    %v2689 = vmul.f32 1.0, %v2688
    %v2690 = vrcp.pop %v2679
    %v2691 = vmul.f32 1.0, %v2690
    %v2692 = vrcp.pop %v2680
    %v2693 = vmul.f32 1.0, %v2692
    %v2694 = vrcp.pop %v2681
    %v2695 = vmul.f32 1.0, %v2694
    %v2696 = vrcp.pop %v2682
    %v2697 = vmul.f32 1.0, %v2696
    %v2698 = vrcp.pop %v2683
    %v2699 = vmul.f32 1.0, %v2698
    %v2700 = vtanh.pop %v2574
    %v2701 = vtanh.pop %v2578
    %v2702 = vtanh.pop %v2582
    %v2703 = vtanh.pop %v2586
    %v2704 = vtanh.pop %v2590
    %v2705 = vtanh.pop %v2594
    %v2706 = vtanh.pop %v2598
    %v2707 = vtanh.pop %v2602
    %v2708 = vxor.u32 %v2575, 2147483648
    %v2709 = vxor.u32 %v2579, 2147483648
    %v2710 = vxor.u32 %v2583, 2147483648
    %v2711 = vxor.u32 %v2587, 2147483648
    %v2712 = vxor.u32 %v2591, 2147483648
    %v2713 = vxor.u32 %v2595, 2147483648
    %v2714 = vxor.u32 %v2599, 2147483648
    %v2715 = vxor.u32 %v2603, 2147483648
    %v2716 = vmul.f32 %v2708, 1.442695
    %v2717 = vpow.pop %v2716
    %v2718 = vmul.f32 %v2709, 1.442695
    %v2719 = vpow.pop %v2718
    %v2720 = vmul.f32 %v2710, 1.442695
    %v2721 = vpow.pop %v2720
    %v2722 = vmul.f32 %v2711, 1.442695
    %v2723 = vpow.pop %v2722
    %v2724 = vmul.f32 %v2712, 1.442695
    %v2725 = vpow.pop %v2724
    %v2726 = vmul.f32 %v2713, 1.442695
    %v2727 = vpow.pop %v2726
    %v2728 = vmul.f32 %v2714, 1.442695
    %v2729 = vpow.pop %v2728
    %v2730 = vmul.f32 %v2715, 1.442695
    %v2731 = vpow.pop %v2730
    %v2732 = vadd.f32 %v2717, 1.0
    %v2733 = vadd.f32 %v2719, 1.0
    %v2734 = vadd.f32 %v2721, 1.0
    %v2735 = vadd.f32 %v2723, 1.0
    %v2736 = vadd.f32 %v2725, 1.0
    %v2737 = vadd.f32 %v2727, 1.0
    %v2738 = vadd.f32 %v2729, 1.0
    %v2739 = vadd.f32 %v2731, 1.0
    %v2740 = vrcp.pop %v2732
    %v2741 = vmul.f32 1.0, %v2740
    %v2742 = vrcp.pop %v2733
    %v2743 = vmul.f32 1.0, %v2742
    %v2744 = vrcp.pop %v2734
    %v2745 = vmul.f32 1.0, %v2744
    %v2746 = vrcp.pop %v2735
    %v2747 = vmul.f32 1.0, %v2746
    %v2748 = vrcp.pop %v2736
    %v2749 = vmul.f32 1.0, %v2748
    %v2750 = vrcp.pop %v2737
    %v2751 = vmul.f32 1.0, %v2750
    %v2752 = vrcp.pop %v2738
    %v2753 = vmul.f32 1.0, %v2752
    %v2754 = vrcp.pop %v2739
    %v2755 = vmul.f32 1.0, %v2754
    %v2764 = vrot.slane %v2319, 7
    %v2765 = vrot.slane %v2320, 7
    %v2766 = vrot.slane %v2321, 7
    %v2767 = vrot.slane %v2322, 7
    %v2768 = vrot.slane %v2323, 7
    %v2769 = vrot.slane %v2324, 7
    %v2770 = vrot.slane %v2325, 7
    %v2771 = vrot.slane %v2326, 7
    %v2780 = vmul.f32 %v2685, %v2764
    %v2781 = vmul.f32 %v2687, %v2765
    %v2782 = vmul.f32 %v2689, %v2766
    %v2783 = vmul.f32 %v2691, %v2767
    %v2784 = vmul.f32 %v2693, %v2768
    %v2785 = vmul.f32 %v2695, %v2769
    %v2786 = vmul.f32 %v2697, %v2770
    %v2787 = vmul.f32 %v2699, %v2771
    %v2788 = vmul.f32 %v2637, %v2700
    %v2789 = vmul.f32 %v2639, %v2701
    %v2790 = vmul.f32 %v2641, %v2702
    %v2791 = vmul.f32 %v2643, %v2703
    %v2792 = vmul.f32 %v2645, %v2704
    %v2793 = vmul.f32 %v2647, %v2705
    %v2794 = vmul.f32 %v2649, %v2706
    %v2795 = vmul.f32 %v2651, %v2707
    %v2796 = vadd.f32 %v2780, %v2788
    %v2797 = vadd.f32 %v2781, %v2789
    %v2798 = vadd.f32 %v2782, %v2790
    %v2799 = vadd.f32 %v2783, %v2791
    %v2800 = vadd.f32 %v2784, %v2792
    %v2801 = vadd.f32 %v2785, %v2793
    %v2802 = vadd.f32 %v2786, %v2794
    %v2803 = vadd.f32 %v2787, %v2795
    %v2804 = vtanh.pop %v2796
    %v2805 = vtanh.pop %v2797
    %v2806 = vtanh.pop %v2798
    %v2807 = vtanh.pop %v2799
    %v2808 = vtanh.pop %v2800
    %v2809 = vtanh.pop %v2801
    %v2810 = vtanh.pop %v2802
    %v2811 = vtanh.pop %v2803
    %v2812 = vmul.f32 %v2741, %v2804
    %v2813 = vmul.f32 %v2743, %v2805
    %v2814 = vmul.f32 %v2745, %v2806
    %v2815 = vmul.f32 %v2747, %v2807
    %v2816 = vmul.f32 %v2749, %v2808
    %v2817 = vmul.f32 %v2751, %v2809
    %v2818 = vmul.f32 %v2753, %v2810
    %v2819 = vmul.f32 %v2755, %v2811
    %v2828 = vrot.slane %v2812, 4
    %v2829 = vrot.slane %v2813, 3
    %v2830 = vsel %vm914, %v2829, %v2828
    %v2831 = vrot.slane %v2814, 2
    %v2832 = vsel %vm917, %v2831, %v2830
    %v2833 = vrot.slane %v2815, 1
    %v2834 = vsel %vm920, %v2833, %v2832
    %v2835 = vsel %vm923, %v2816, %v2834
    %v2836 = vrot.slane %v2817, 7
    %v2837 = vsel %vm926, %v2836, %v2835
    %v2838 = vrot.slane %v2818, 6
    %v2839 = vsel %vm929, %v2838, %v2837
    %v2840 = vrot.slane %v2819, 5
    %v2841 = vsel %vm932, %v2840, %v2839
    %2843 = vmatprep.subr.mxu0 %v472
    %2844 = vmatpush1.msra.mxu0 %v471
    %2845 = vmatprep.subr.mxu0 %v468
    %2846 = vmatpush1.msra.mxu0 %v467
    %2847 = vmatprep.subr.mxu0 %v464
    %2848 = vmatpush1.msra.mxu0 %v463
    %2849 = vmatprep.subr.mxu0 %v460
    %2850 = vmatpush1.msra.mxu0 %v459
    %2851 = vmatprep.subr.mxu0 %v456
    %2852 = vmatpush1.msra.mxu0 %v455
    %2853 = vmatprep.subr.mxu0 %v452
    %2854 = vmatpush1.msra.mxu0 %v451
    %2855 = vmatprep.subr.mxu0 %v448
    %2856 = vmatpush1.msra.mxu0 %v447
    %2857 = vmatprep.subr.mxu0 %v444
    %2858 = vmatpush1.msra.mxu0 %v443
    %2859 = vmatprep.subr.mxu0 %v440
    %2860 = vmatpush1.msra.mxu0 %v439
    %2861 = vmatprep.subr.mxu0 %v436
    %2862 = vmatpush1.msra.mxu0 %v435
    %2863 = vmatprep.subr.mxu0 %v432
    %2864 = vmatpush1.msra.mxu0 %v431
    %2865 = vmatprep.subr.mxu0 %v428
    %2866 = vmatpush1.msra.mxu0 %v427
    %2867 = vmatprep.subr.mxu0 %v424
    %2868 = vmatpush1.msra.mxu0 %v423
    %2869 = vmatprep.subr.mxu0 %v420
    %2870 = vmatpush1.msra.mxu0 %v419
    %2871 = vmatprep.subr.mxu0 %v416
    %2872 = vmatpush1.msra.mxu0 %v415
    %2873 = vmatprep.subr.mxu0 %v412
    %2874 = vmatpush1.msra.mxu0 %v411
    %2875 = vmatprep.subr.mxu0 0.0
    %2876 = vmatpush2.msra.mxu0 0.0
    %2877 = vmatprep.subr.mxu0 0.0
    %2878 = vmatpush2.msra.mxu0 0.0
    %2879 = vmatprep.subr.mxu0 0.0
    %2880 = vmatpush2.msra.mxu0 0.0
    %2881 = vmatprep.subr.mxu0 0.0
    %2882 = vmatpush2.msra.mxu0 0.0
    %2883 = vmatprep.subr.mxu0 0.0
    %2884 = vmatpush2.msra.mxu0 0.0
    %2885 = vmatprep.subr.mxu0 0.0
    %2886 = vmatpush2.msra.mxu0 0.0
    %2887 = vmatprep.subr.mxu0 0.0
    %2888 = vmatpush2.msra.mxu0 0.0
    %2889 = vmatprep.subr.mxu0 0.0
    %2890 = vmatpush2.msra.mxu0 0.0
    %2891 = vmatprep.subr.mxu0 0.0
    %2892 = vmatpush2.msra.mxu0 0.0
    %2893 = vmatprep.subr.mxu0 0.0
    %2894 = vmatpush2.msra.mxu0 0.0
    %2895 = vmatprep.subr.mxu0 0.0
    %2896 = vmatpush2.msra.mxu0 0.0
    %2897 = vmatprep.subr.mxu0 0.0
    %2898 = vmatpush2.msra.mxu0 0.0
    %2899 = vmatprep.subr.mxu0 0.0
    %2900 = vmatpush2.msra.mxu0 0.0
    %2901 = vmatprep.subr.mxu0 0.0
    %2902 = vmatpush2.msra.mxu0 0.0
    %2903 = vmatprep.subr.mxu0 0.0
    %2904 = vmatpush2.msra.mxu0 0.0
    %2905 = vmatprep.subr.mxu0 0.0
    %2906 = vmatpush2.msra.mxu0 0.0
    %2907 = vmatprep.mubr.f32.mxu0 0.0
    %2908 = vmatmul.mubr.f32.gmra.mxu0 %v2841
    %v2909 = vpop.f32.mrf.mxu0
    %v2910 = vadd.f32 0.0, %v2909
    %v2911 = vpop.f32.mrf.mxu0
    %v2912 = vadd.f32 0.0, %v2911
    %2913 = vdwg.mxu0
    %2914 = vmatprep.subr.mxu0 %v474
    %2915 = vmatpush1.msra.mxu0 %v473
    %2916 = vmatprep.subr.mxu0 %v470
    %2917 = vmatpush1.msra.mxu0 %v469
    %2918 = vmatprep.subr.mxu0 %v466
    %2919 = vmatpush1.msra.mxu0 %v465
    %2920 = vmatprep.subr.mxu0 %v462
    %2921 = vmatpush1.msra.mxu0 %v461
    %2922 = vmatprep.subr.mxu0 %v458
    %2923 = vmatpush1.msra.mxu0 %v457
    %2924 = vmatprep.subr.mxu0 %v454
    %2925 = vmatpush1.msra.mxu0 %v453
    %2926 = vmatprep.subr.mxu0 %v450
    %2927 = vmatpush1.msra.mxu0 %v449
    %2928 = vmatprep.subr.mxu0 %v446
    %2929 = vmatpush1.msra.mxu0 %v445
    %2930 = vmatprep.subr.mxu0 %v442
    %2931 = vmatpush1.msra.mxu0 %v441
    %2932 = vmatprep.subr.mxu0 %v438
    %2933 = vmatpush1.msra.mxu0 %v437
    %2934 = vmatprep.subr.mxu0 %v434
    %2935 = vmatpush1.msra.mxu0 %v433
    %2936 = vmatprep.subr.mxu0 %v430
    %2937 = vmatpush1.msra.mxu0 %v429
    %2938 = vmatprep.subr.mxu0 %v426
    %2939 = vmatpush1.msra.mxu0 %v425
    %2940 = vmatprep.subr.mxu0 %v422
    %2941 = vmatpush1.msra.mxu0 %v421
    %2942 = vmatprep.subr.mxu0 %v418
    %2943 = vmatpush1.msra.mxu0 %v417
    %2944 = vmatprep.subr.mxu0 %v414
    %2945 = vmatpush1.msra.mxu0 %v413
    %2946 = vmatprep.subr.mxu0 0.0
    %2947 = vmatpush2.msra.mxu0 0.0
    %2948 = vmatprep.subr.mxu0 0.0
    %2949 = vmatpush2.msra.mxu0 0.0
    %2950 = vmatprep.subr.mxu0 0.0
    %2951 = vmatpush2.msra.mxu0 0.0
    %2952 = vmatprep.subr.mxu0 0.0
    %2953 = vmatpush2.msra.mxu0 0.0
    %2954 = vmatprep.subr.mxu0 0.0
    %2955 = vmatpush2.msra.mxu0 0.0
    %2956 = vmatprep.subr.mxu0 0.0
    %2957 = vmatpush2.msra.mxu0 0.0
    %2958 = vmatprep.subr.mxu0 0.0
    %2959 = vmatpush2.msra.mxu0 0.0
    %2960 = vmatprep.subr.mxu0 0.0
    %2961 = vmatpush2.msra.mxu0 0.0
    %2962 = vmatprep.subr.mxu0 0.0
    %2963 = vmatpush2.msra.mxu0 0.0
    %2964 = vmatprep.subr.mxu0 0.0
    %2965 = vmatpush2.msra.mxu0 0.0
    %2966 = vmatprep.subr.mxu0 0.0
    %2967 = vmatpush2.msra.mxu0 0.0
    %2968 = vmatprep.subr.mxu0 0.0
    %2969 = vmatpush2.msra.mxu0 0.0
    %2970 = vmatprep.subr.mxu0 0.0
    %2971 = vmatpush2.msra.mxu0 0.0
    %2972 = vmatprep.subr.mxu0 0.0
    %2973 = vmatpush2.msra.mxu0 0.0
    %2974 = vmatprep.subr.mxu0 0.0
    %2975 = vmatpush2.msra.mxu0 0.0
    %2976 = vmatprep.subr.mxu0 0.0
    %2977 = vmatpush2.msra.mxu0 0.0
    %2978 = vmatprep.mubr.f32.mxu0 0.0
    %2979 = vmatmul.mubr.f32.gmra.mxu0 %v2841
    %v2980 = vpop.f32.mrf.mxu0
    %v2981 = vadd.f32 0.0, %v2980
    %v2982 = vpop.f32.mrf.mxu0
    %v2983 = vadd.f32 0.0, %v2982
    %2984 = vdwg.mxu0
    %v2989 = vrot.slane %v2910, 3
    %v2990 = vrot.slane %v2912, 3
    %v2991 = vrot.slane %v2981, 3
    %v2992 = vrot.slane %v2983, 3
    %v2993 = vrot.slane %v2910, 4
    %v2994 = vrot.slane %v2912, 4
    %v2995 = vrot.slane %v2981, 4
    %v2996 = vrot.slane %v2983, 4
    %v2997 = vrot.slane %v2910, 5
    %v2998 = vrot.slane %v2912, 5
    %v2999 = vrot.slane %v2981, 5
    %v3000 = vrot.slane %v2983, 5
    %v3001 = vrot.slane %v2910, 6
    %v3002 = vrot.slane %v2912, 6
    %v3003 = vrot.slane %v2981, 6
    %v3004 = vrot.slane %v2983, 6
    %v3005 = vrot.slane %v2910, 7
    %v3006 = vrot.slane %v2912, 7
    %v3007 = vrot.slane %v2981, 7
    %v3008 = vrot.slane %v2983, 7
    %v3009 = vrot.slane %v2910, 1
    %v3010 = vrot.slane %v2912, 1
    %v3011 = vrot.slane %v2981, 1
    %v3012 = vrot.slane %v2983, 1
    %v3013 = vrot.slane %v2910, 2
    %v3014 = vrot.slane %v2912, 2
    %v3015 = vrot.slane %v2981, 2
    %v3016 = vrot.slane %v2983, 2
    %v3049 = vadd.f32 %v252, %v2989
    %v3050 = vadd.f32 %v254, %v2990
    %v3051 = vadd.f32 %v365, %v2991
    %v3052 = vadd.f32 %v367, %v2992
    %v3053 = vadd.f32 %v258, %v2993
    %v3054 = vadd.f32 %v260, %v2994
    %v3055 = vadd.f32 %v371, %v2995
    %v3056 = vadd.f32 %v373, %v2996
    %v3057 = vadd.f32 %v264, %v2997
    %v3058 = vadd.f32 %v266, %v2998
    %v3059 = vadd.f32 %v377, %v2999
    %v3060 = vadd.f32 %v379, %v3000
    %v3061 = vadd.f32 %v270, %v3001
    %v3062 = vadd.f32 %v272, %v3002
    %v3063 = vadd.f32 %v383, %v3003
    %v3064 = vadd.f32 %v385, %v3004
    %v3065 = vadd.f32 %v276, %v3005
    %v3066 = vadd.f32 %v278, %v3006
    %v3067 = vadd.f32 %v389, %v3007
    %v3068 = vadd.f32 %v391, %v3008
    %v3069 = vadd.f32 %v282, %v2910
    %v3070 = vadd.f32 %v284, %v2912
    %v3071 = vadd.f32 %v395, %v2981
    %v3072 = vadd.f32 %v397, %v2983
    %v3073 = vadd.f32 %v288, %v3009
    %v3074 = vadd.f32 %v290, %v3010
    %v3075 = vadd.f32 %v401, %v3011
    %v3076 = vadd.f32 %v403, %v3012
    %v3077 = vadd.f32 %v294, %v3013
    %v3078 = vadd.f32 %v296, %v3014
    %v3079 = vadd.f32 %v407, %v3015
    %v3080 = vadd.f32 %v409, %v3016
    %v3081 = vxor.u32 %v3049, 2147483648
    %v3082 = vxor.u32 %v3053, 2147483648
    %v3083 = vxor.u32 %v3057, 2147483648
    %v3084 = vxor.u32 %v3061, 2147483648
    %v3085 = vxor.u32 %v3065, 2147483648
    %v3086 = vxor.u32 %v3069, 2147483648
    %v3087 = vxor.u32 %v3073, 2147483648
    %v3088 = vxor.u32 %v3077, 2147483648
    %v3089 = vmul.f32 %v3081, 1.442695
    %v3090 = vpow.pop %v3089
    %v3091 = vmul.f32 %v3082, 1.442695
    %v3092 = vpow.pop %v3091
    %v3093 = vmul.f32 %v3083, 1.442695
    %v3094 = vpow.pop %v3093
    %v3095 = vmul.f32 %v3084, 1.442695
    %v3096 = vpow.pop %v3095
    %v3097 = vmul.f32 %v3085, 1.442695
    %v3098 = vpow.pop %v3097
    %v3099 = vmul.f32 %v3086, 1.442695
    %v3100 = vpow.pop %v3099
    %v3101 = vmul.f32 %v3087, 1.442695
    %v3102 = vpow.pop %v3101
    %v3103 = vmul.f32 %v3088, 1.442695
    %v3104 = vpow.pop %v3103
    %v3105 = vadd.f32 %v3090, 1.0
    %v3106 = vadd.f32 %v3092, 1.0
    %v3107 = vadd.f32 %v3094, 1.0
    %v3108 = vadd.f32 %v3096, 1.0
    %v3109 = vadd.f32 %v3098, 1.0
    %v3110 = vadd.f32 %v3100, 1.0
    %v3111 = vadd.f32 %v3102, 1.0
    %v3112 = vadd.f32 %v3104, 1.0
    %v3113 = vrcp.pop %v3105
    %v3114 = vmul.f32 1.0, %v3113
    %v3115 = vrcp.pop %v3106
    %v3116 = vmul.f32 1.0, %v3115
    %v3117 = vrcp.pop %v3107
    %v3118 = vmul.f32 1.0, %v3117
    %v3119 = vrcp.pop %v3108
    %v3120 = vmul.f32 1.0, %v3119
    %v3121 = vrcp.pop %v3109
    %v3122 = vmul.f32 1.0, %v3121
    %v3123 = vrcp.pop %v3110
    %v3124 = vmul.f32 1.0, %v3123
    %v3125 = vrcp.pop %v3111
    %v3126 = vmul.f32 1.0, %v3125
    %v3127 = vrcp.pop %v3112
    %v3128 = vmul.f32 1.0, %v3127
    %v3129 = vxor.u32 %v3050, 2147483648
    %v3130 = vxor.u32 %v3054, 2147483648
    %v3131 = vxor.u32 %v3058, 2147483648
    %v3132 = vxor.u32 %v3062, 2147483648
    %v3133 = vxor.u32 %v3066, 2147483648
    %v3134 = vxor.u32 %v3070, 2147483648
    %v3135 = vxor.u32 %v3074, 2147483648
    %v3136 = vxor.u32 %v3078, 2147483648
    %v3137 = vmul.f32 %v3129, 1.442695
    %v3138 = vpow.pop %v3137
    %v3139 = vmul.f32 %v3130, 1.442695
    %v3140 = vpow.pop %v3139
    %v3141 = vmul.f32 %v3131, 1.442695
    %v3142 = vpow.pop %v3141
    %v3143 = vmul.f32 %v3132, 1.442695
    %v3144 = vpow.pop %v3143
    %v3145 = vmul.f32 %v3133, 1.442695
    %v3146 = vpow.pop %v3145
    %v3147 = vmul.f32 %v3134, 1.442695
    %v3148 = vpow.pop %v3147
    %v3149 = vmul.f32 %v3135, 1.442695
    %v3150 = vpow.pop %v3149
    %v3151 = vmul.f32 %v3136, 1.442695
    %v3152 = vpow.pop %v3151
    %v3153 = vadd.f32 %v3138, 1.0
    %v3154 = vadd.f32 %v3140, 1.0
    %v3155 = vadd.f32 %v3142, 1.0
    %v3156 = vadd.f32 %v3144, 1.0
    %v3157 = vadd.f32 %v3146, 1.0
    %v3158 = vadd.f32 %v3148, 1.0
    %v3159 = vadd.f32 %v3150, 1.0
    %v3160 = vadd.f32 %v3152, 1.0
    %v3161 = vrcp.pop %v3153
    %v3162 = vmul.f32 1.0, %v3161
    %v3163 = vrcp.pop %v3154
    %v3164 = vmul.f32 1.0, %v3163
    %v3165 = vrcp.pop %v3155
    %v3166 = vmul.f32 1.0, %v3165
    %v3167 = vrcp.pop %v3156
    %v3168 = vmul.f32 1.0, %v3167
    %v3169 = vrcp.pop %v3157
    %v3170 = vmul.f32 1.0, %v3169
    %v3171 = vrcp.pop %v3158
    %v3172 = vmul.f32 1.0, %v3171
    %v3173 = vrcp.pop %v3159
    %v3174 = vmul.f32 1.0, %v3173
    %v3175 = vrcp.pop %v3160
    %v3176 = vmul.f32 1.0, %v3175
    %v3177 = vtanh.pop %v3051
    %v3178 = vtanh.pop %v3055
    %v3179 = vtanh.pop %v3059
    %v3180 = vtanh.pop %v3063
    %v3181 = vtanh.pop %v3067
    %v3182 = vtanh.pop %v3071
    %v3183 = vtanh.pop %v3075
    %v3184 = vtanh.pop %v3079
    %v3185 = vxor.u32 %v3052, 2147483648
    %v3186 = vxor.u32 %v3056, 2147483648
    %v3187 = vxor.u32 %v3060, 2147483648
    %v3188 = vxor.u32 %v3064, 2147483648
    %v3189 = vxor.u32 %v3068, 2147483648
    %v3190 = vxor.u32 %v3072, 2147483648
    %v3191 = vxor.u32 %v3076, 2147483648
    %v3192 = vxor.u32 %v3080, 2147483648
    %v3193 = vmul.f32 %v3185, 1.442695
    %v3194 = vpow.pop %v3193
    %v3195 = vmul.f32 %v3186, 1.442695
    %v3196 = vpow.pop %v3195
    %v3197 = vmul.f32 %v3187, 1.442695
    %v3198 = vpow.pop %v3197
    %v3199 = vmul.f32 %v3188, 1.442695
    %v3200 = vpow.pop %v3199
    %v3201 = vmul.f32 %v3189, 1.442695
    %v3202 = vpow.pop %v3201
    %v3203 = vmul.f32 %v3190, 1.442695
    %v3204 = vpow.pop %v3203
    %v3205 = vmul.f32 %v3191, 1.442695
    %v3206 = vpow.pop %v3205
    %v3207 = vmul.f32 %v3192, 1.442695
    %v3208 = vpow.pop %v3207
    %v3209 = vadd.f32 %v3194, 1.0
    %v3210 = vadd.f32 %v3196, 1.0
    %v3211 = vadd.f32 %v3198, 1.0
    %v3212 = vadd.f32 %v3200, 1.0
    %v3213 = vadd.f32 %v3202, 1.0
    %v3214 = vadd.f32 %v3204, 1.0
    %v3215 = vadd.f32 %v3206, 1.0
    %v3216 = vadd.f32 %v3208, 1.0
    %v3217 = vrcp.pop %v3209
    %v3218 = vmul.f32 1.0, %v3217
    %v3219 = vrcp.pop %v3210
    %v3220 = vmul.f32 1.0, %v3219
    %v3221 = vrcp.pop %v3211
    %v3222 = vmul.f32 1.0, %v3221
    %v3223 = vrcp.pop %v3212
    %v3224 = vmul.f32 1.0, %v3223
    %v3225 = vrcp.pop %v3213
    %v3226 = vmul.f32 1.0, %v3225
    %v3227 = vrcp.pop %v3214
    %v3228 = vmul.f32 1.0, %v3227
    %v3229 = vrcp.pop %v3215
    %v3230 = vmul.f32 1.0, %v3229
    %v3231 = vrcp.pop %v3216
    %v3232 = vmul.f32 1.0, %v3231
    %v3241 = vrot.slane %v2796, 7
    %v3242 = vrot.slane %v2797, 7
    %v3243 = vrot.slane %v2798, 7
    %v3244 = vrot.slane %v2799, 7
    %v3245 = vrot.slane %v2800, 7
    %v3246 = vrot.slane %v2801, 7
    %v3247 = vrot.slane %v2802, 7
    %v3248 = vrot.slane %v2803, 7
    %v3257 = vmul.f32 %v3162, %v3241
    %v3258 = vmul.f32 %v3164, %v3242
    %v3259 = vmul.f32 %v3166, %v3243
    %v3260 = vmul.f32 %v3168, %v3244
    %v3261 = vmul.f32 %v3170, %v3245
    %v3262 = vmul.f32 %v3172, %v3246
    %v3263 = vmul.f32 %v3174, %v3247
    %v3264 = vmul.f32 %v3176, %v3248
    %v3265 = vmul.f32 %v3114, %v3177
    %v3266 = vmul.f32 %v3116, %v3178
    %v3267 = vmul.f32 %v3118, %v3179
    %v3268 = vmul.f32 %v3120, %v3180
    %v3269 = vmul.f32 %v3122, %v3181
    %v3270 = vmul.f32 %v3124, %v3182
    %v3271 = vmul.f32 %v3126, %v3183
    %v3272 = vmul.f32 %v3128, %v3184
    %v3273 = vadd.f32 %v3257, %v3265
    %v3274 = vadd.f32 %v3258, %v3266
    %v3275 = vadd.f32 %v3259, %v3267
    %v3276 = vadd.f32 %v3260, %v3268
    %v3277 = vadd.f32 %v3261, %v3269
    %v3278 = vadd.f32 %v3262, %v3270
    %v3279 = vadd.f32 %v3263, %v3271
    %v3280 = vadd.f32 %v3264, %v3272
    %v3281 = vtanh.pop %v3273
    %v3282 = vtanh.pop %v3274
    %v3283 = vtanh.pop %v3275
    %v3284 = vtanh.pop %v3276
    %v3285 = vtanh.pop %v3277
    %v3286 = vtanh.pop %v3278
    %v3287 = vtanh.pop %v3279
    %v3288 = vtanh.pop %v3280
    %v3289 = vmul.f32 %v3218, %v3281
    %v3290 = vmul.f32 %v3220, %v3282
    %v3291 = vmul.f32 %v3222, %v3283
    %v3292 = vmul.f32 %v3224, %v3284
    %v3293 = vmul.f32 %v3226, %v3285
    %v3294 = vmul.f32 %v3228, %v3286
    %v3295 = vmul.f32 %v3230, %v3287
    %v3296 = vmul.f32 %v3232, %v3288
    %v3305 = vrot.slane %v3289, 5
    %v3306 = vrot.slane %v3290, 4
    %v3307 = vsel %vm914, %v3306, %v3305
    %v3308 = vrot.slane %v3291, 3
    %v3309 = vsel %vm917, %v3308, %v3307
    %v3310 = vrot.slane %v3292, 2
    %v3311 = vsel %vm920, %v3310, %v3309
    %v3312 = vrot.slane %v3293, 1
    %v3313 = vsel %vm923, %v3312, %v3311
    %v3314 = vsel %vm926, %v3294, %v3313
    %v3315 = vrot.slane %v3295, 7
    %v3316 = vsel %vm929, %v3315, %v3314
    %v3317 = vrot.slane %v3296, 6
    %v3318 = vsel %vm932, %v3317, %v3316
    %3320 = vmatprep.subr.mxu0 %v472
    %3321 = vmatpush1.msra.mxu0 %v471
    %3322 = vmatprep.subr.mxu0 %v468
    %3323 = vmatpush1.msra.mxu0 %v467
    %3324 = vmatprep.subr.mxu0 %v464
    %3325 = vmatpush1.msra.mxu0 %v463
    %3326 = vmatprep.subr.mxu0 %v460
    %3327 = vmatpush1.msra.mxu0 %v459
    %3328 = vmatprep.subr.mxu0 %v456
    %3329 = vmatpush1.msra.mxu0 %v455
    %3330 = vmatprep.subr.mxu0 %v452
    %3331 = vmatpush1.msra.mxu0 %v451
    %3332 = vmatprep.subr.mxu0 %v448
    %3333 = vmatpush1.msra.mxu0 %v447
    %3334 = vmatprep.subr.mxu0 %v444
    %3335 = vmatpush1.msra.mxu0 %v443
    %3336 = vmatprep.subr.mxu0 %v440
    %3337 = vmatpush1.msra.mxu0 %v439
    %3338 = vmatprep.subr.mxu0 %v436
    %3339 = vmatpush1.msra.mxu0 %v435
    %3340 = vmatprep.subr.mxu0 %v432
    %3341 = vmatpush1.msra.mxu0 %v431
    %3342 = vmatprep.subr.mxu0 %v428
    %3343 = vmatpush1.msra.mxu0 %v427
    %3344 = vmatprep.subr.mxu0 %v424
    %3345 = vmatpush1.msra.mxu0 %v423
    %3346 = vmatprep.subr.mxu0 %v420
    %3347 = vmatpush1.msra.mxu0 %v419
    %3348 = vmatprep.subr.mxu0 %v416
    %3349 = vmatpush1.msra.mxu0 %v415
    %3350 = vmatprep.subr.mxu0 %v412
    %3351 = vmatpush1.msra.mxu0 %v411
    %3352 = vmatprep.subr.mxu0 0.0
    %3353 = vmatpush2.msra.mxu0 0.0
    %3354 = vmatprep.subr.mxu0 0.0
    %3355 = vmatpush2.msra.mxu0 0.0
    %3356 = vmatprep.subr.mxu0 0.0
    %3357 = vmatpush2.msra.mxu0 0.0
    %3358 = vmatprep.subr.mxu0 0.0
    %3359 = vmatpush2.msra.mxu0 0.0
    %3360 = vmatprep.subr.mxu0 0.0
    %3361 = vmatpush2.msra.mxu0 0.0
    %3362 = vmatprep.subr.mxu0 0.0
    %3363 = vmatpush2.msra.mxu0 0.0
    %3364 = vmatprep.subr.mxu0 0.0
    %3365 = vmatpush2.msra.mxu0 0.0
    %3366 = vmatprep.subr.mxu0 0.0
    %3367 = vmatpush2.msra.mxu0 0.0
    %3368 = vmatprep.subr.mxu0 0.0
    %3369 = vmatpush2.msra.mxu0 0.0
    %3370 = vmatprep.subr.mxu0 0.0
    %3371 = vmatpush2.msra.mxu0 0.0
    %3372 = vmatprep.subr.mxu0 0.0
    %3373 = vmatpush2.msra.mxu0 0.0
    %3374 = vmatprep.subr.mxu0 0.0
    %3375 = vmatpush2.msra.mxu0 0.0
    %3376 = vmatprep.subr.mxu0 0.0
    %3377 = vmatpush2.msra.mxu0 0.0
    %3378 = vmatprep.subr.mxu0 0.0
    %3379 = vmatpush2.msra.mxu0 0.0
    %3380 = vmatprep.subr.mxu0 0.0
    %3381 = vmatpush2.msra.mxu0 0.0
    %3382 = vmatprep.subr.mxu0 0.0
    %3383 = vmatpush2.msra.mxu0 0.0
    %3384 = vmatprep.mubr.f32.mxu0 0.0
    %3385 = vmatmul.mubr.f32.gmra.mxu0 %v3318
    %v3386 = vpop.f32.mrf.mxu0
    %v3387 = vadd.f32 0.0, %v3386
    %v3388 = vpop.f32.mrf.mxu0
    %v3389 = vadd.f32 0.0, %v3388
    %3390 = vdwg.mxu0
    %3391 = vmatprep.subr.mxu0 %v474
    %3392 = vmatpush1.msra.mxu0 %v473
    %3393 = vmatprep.subr.mxu0 %v470
    %3394 = vmatpush1.msra.mxu0 %v469
    %3395 = vmatprep.subr.mxu0 %v466
    %3396 = vmatpush1.msra.mxu0 %v465
    %3397 = vmatprep.subr.mxu0 %v462
    %3398 = vmatpush1.msra.mxu0 %v461
    %3399 = vmatprep.subr.mxu0 %v458
    %3400 = vmatpush1.msra.mxu0 %v457
    %3401 = vmatprep.subr.mxu0 %v454
    %3402 = vmatpush1.msra.mxu0 %v453
    %3403 = vmatprep.subr.mxu0 %v450
    %3404 = vmatpush1.msra.mxu0 %v449
    %3405 = vmatprep.subr.mxu0 %v446
    %3406 = vmatpush1.msra.mxu0 %v445
    %3407 = vmatprep.subr.mxu0 %v442
    %3408 = vmatpush1.msra.mxu0 %v441
    %3409 = vmatprep.subr.mxu0 %v438
    %3410 = vmatpush1.msra.mxu0 %v437
    %3411 = vmatprep.subr.mxu0 %v434
    %3412 = vmatpush1.msra.mxu0 %v433
    %3413 = vmatprep.subr.mxu0 %v430
    %3414 = vmatpush1.msra.mxu0 %v429
    %3415 = vmatprep.subr.mxu0 %v426
    %3416 = vmatpush1.msra.mxu0 %v425
    %3417 = vmatprep.subr.mxu0 %v422
    %3418 = vmatpush1.msra.mxu0 %v421
    %3419 = vmatprep.subr.mxu0 %v418
    %3420 = vmatpush1.msra.mxu0 %v417
    %3421 = vmatprep.subr.mxu0 %v414
    %3422 = vmatpush1.msra.mxu0 %v413
    %3423 = vmatprep.subr.mxu0 0.0
    %3424 = vmatpush2.msra.mxu0 0.0
    %3425 = vmatprep.subr.mxu0 0.0
    %3426 = vmatpush2.msra.mxu0 0.0
    %3427 = vmatprep.subr.mxu0 0.0
    %3428 = vmatpush2.msra.mxu0 0.0
    %3429 = vmatprep.subr.mxu0 0.0
    %3430 = vmatpush2.msra.mxu0 0.0
    %3431 = vmatprep.subr.mxu0 0.0
    %3432 = vmatpush2.msra.mxu0 0.0
    %3433 = vmatprep.subr.mxu0 0.0
    %3434 = vmatpush2.msra.mxu0 0.0
    %3435 = vmatprep.subr.mxu0 0.0
    %3436 = vmatpush2.msra.mxu0 0.0
    %3437 = vmatprep.subr.mxu0 0.0
    %3438 = vmatpush2.msra.mxu0 0.0
    %3439 = vmatprep.subr.mxu0 0.0
    %3440 = vmatpush2.msra.mxu0 0.0
    %3441 = vmatprep.subr.mxu0 0.0
    %3442 = vmatpush2.msra.mxu0 0.0
    %3443 = vmatprep.subr.mxu0 0.0
    %3444 = vmatpush2.msra.mxu0 0.0
    %3445 = vmatprep.subr.mxu0 0.0
    %3446 = vmatpush2.msra.mxu0 0.0
    %3447 = vmatprep.subr.mxu0 0.0
    %3448 = vmatpush2.msra.mxu0 0.0
    %3449 = vmatprep.subr.mxu0 0.0
    %3450 = vmatpush2.msra.mxu0 0.0
    %3451 = vmatprep.subr.mxu0 0.0
    %3452 = vmatpush2.msra.mxu0 0.0
    %3453 = vmatprep.subr.mxu0 0.0
    %3454 = vmatpush2.msra.mxu0 0.0
    %3455 = vmatprep.mubr.f32.mxu0 0.0
    %3456 = vmatmul.mubr.f32.gmra.mxu0 %v3318
    %v3457 = vpop.f32.mrf.mxu0
    %v3458 = vadd.f32 0.0, %v3457
    %v3459 = vpop.f32.mrf.mxu0
    %v3460 = vadd.f32 0.0, %v3459
    %3461 = vdwg.mxu0
    %v3466 = vrot.slane %v3387, 2
    %v3467 = vrot.slane %v3389, 2
    %v3468 = vrot.slane %v3458, 2
    %v3469 = vrot.slane %v3460, 2
    %v3470 = vrot.slane %v3387, 3
    %v3471 = vrot.slane %v3389, 3
    %v3472 = vrot.slane %v3458, 3
    %v3473 = vrot.slane %v3460, 3
    %v3474 = vrot.slane %v3387, 4
    %v3475 = vrot.slane %v3389, 4
    %v3476 = vrot.slane %v3458, 4
    %v3477 = vrot.slane %v3460, 4
    %v3478 = vrot.slane %v3387, 5
    %v3479 = vrot.slane %v3389, 5
    %v3480 = vrot.slane %v3458, 5
    %v3481 = vrot.slane %v3460, 5
    %v3482 = vrot.slane %v3387, 6
    %v3483 = vrot.slane %v3389, 6
    %v3484 = vrot.slane %v3458, 6
    %v3485 = vrot.slane %v3460, 6
    %v3486 = vrot.slane %v3387, 7
    %v3487 = vrot.slane %v3389, 7
    %v3488 = vrot.slane %v3458, 7
    %v3489 = vrot.slane %v3460, 7
    %v3490 = vrot.slane %v3387, 1
    %v3491 = vrot.slane %v3389, 1
    %v3492 = vrot.slane %v3458, 1
    %v3493 = vrot.slane %v3460, 1
    %v3526 = vadd.f32 %v252, %v3466
    %v3527 = vadd.f32 %v254, %v3467
    %v3528 = vadd.f32 %v365, %v3468
    %v3529 = vadd.f32 %v367, %v3469
    %v3530 = vadd.f32 %v258, %v3470
    %v3531 = vadd.f32 %v260, %v3471
    %v3532 = vadd.f32 %v371, %v3472
    %v3533 = vadd.f32 %v373, %v3473
    %v3534 = vadd.f32 %v264, %v3474
    %v3535 = vadd.f32 %v266, %v3475
    %v3536 = vadd.f32 %v377, %v3476
    %v3537 = vadd.f32 %v379, %v3477
    %v3538 = vadd.f32 %v270, %v3478
    %v3539 = vadd.f32 %v272, %v3479
    %v3540 = vadd.f32 %v383, %v3480
    %v3541 = vadd.f32 %v385, %v3481
    %v3542 = vadd.f32 %v276, %v3482
    %v3543 = vadd.f32 %v278, %v3483
    %v3544 = vadd.f32 %v389, %v3484
    %v3545 = vadd.f32 %v391, %v3485
    %v3546 = vadd.f32 %v282, %v3486
    %v3547 = vadd.f32 %v284, %v3487
    %v3548 = vadd.f32 %v395, %v3488
    %v3549 = vadd.f32 %v397, %v3489
    %v3550 = vadd.f32 %v288, %v3387
    %v3551 = vadd.f32 %v290, %v3389
    %v3552 = vadd.f32 %v401, %v3458
    %v3553 = vadd.f32 %v403, %v3460
    %v3554 = vadd.f32 %v294, %v3490
    %v3555 = vadd.f32 %v296, %v3491
    %v3556 = vadd.f32 %v407, %v3492
    %v3557 = vadd.f32 %v409, %v3493
    %v3558 = vxor.u32 %v3526, 2147483648
    %v3559 = vxor.u32 %v3530, 2147483648
    %v3560 = vxor.u32 %v3534, 2147483648
    %v3561 = vxor.u32 %v3538, 2147483648
    %v3562 = vxor.u32 %v3542, 2147483648
    %v3563 = vxor.u32 %v3546, 2147483648
    %v3564 = vxor.u32 %v3550, 2147483648
    %v3565 = vxor.u32 %v3554, 2147483648
    %v3566 = vmul.f32 %v3558, 1.442695
    %v3567 = vpow.pop %v3566
    %v3568 = vmul.f32 %v3559, 1.442695
    %v3569 = vpow.pop %v3568
    %v3570 = vmul.f32 %v3560, 1.442695
    %v3571 = vpow.pop %v3570
    %v3572 = vmul.f32 %v3561, 1.442695
    %v3573 = vpow.pop %v3572
    %v3574 = vmul.f32 %v3562, 1.442695
    %v3575 = vpow.pop %v3574
    %v3576 = vmul.f32 %v3563, 1.442695
    %v3577 = vpow.pop %v3576
    %v3578 = vmul.f32 %v3564, 1.442695
    %v3579 = vpow.pop %v3578
    %v3580 = vmul.f32 %v3565, 1.442695
    %v3581 = vpow.pop %v3580
    %v3582 = vadd.f32 %v3567, 1.0
    %v3583 = vadd.f32 %v3569, 1.0
    %v3584 = vadd.f32 %v3571, 1.0
    %v3585 = vadd.f32 %v3573, 1.0
    %v3586 = vadd.f32 %v3575, 1.0
    %v3587 = vadd.f32 %v3577, 1.0
    %v3588 = vadd.f32 %v3579, 1.0
    %v3589 = vadd.f32 %v3581, 1.0
    %v3590 = vrcp.pop %v3582
    %v3591 = vmul.f32 1.0, %v3590
    %v3592 = vrcp.pop %v3583
    %v3593 = vmul.f32 1.0, %v3592
    %v3594 = vrcp.pop %v3584
    %v3595 = vmul.f32 1.0, %v3594
    %v3596 = vrcp.pop %v3585
    %v3597 = vmul.f32 1.0, %v3596
    %v3598 = vrcp.pop %v3586
    %v3599 = vmul.f32 1.0, %v3598
    %v3600 = vrcp.pop %v3587
    %v3601 = vmul.f32 1.0, %v3600
    %v3602 = vrcp.pop %v3588
    %v3603 = vmul.f32 1.0, %v3602
    %v3604 = vrcp.pop %v3589
    %v3605 = vmul.f32 1.0, %v3604
    %v3606 = vxor.u32 %v3527, 2147483648
    %v3607 = vxor.u32 %v3531, 2147483648
    %v3608 = vxor.u32 %v3535, 2147483648
    %v3609 = vxor.u32 %v3539, 2147483648
    %v3610 = vxor.u32 %v3543, 2147483648
    %v3611 = vxor.u32 %v3547, 2147483648
    %v3612 = vxor.u32 %v3551, 2147483648
    %v3613 = vxor.u32 %v3555, 2147483648
    %v3614 = vmul.f32 %v3606, 1.442695
    %v3615 = vpow.pop %v3614
    %v3616 = vmul.f32 %v3607, 1.442695
    %v3617 = vpow.pop %v3616
    %v3618 = vmul.f32 %v3608, 1.442695
    %v3619 = vpow.pop %v3618
    %v3620 = vmul.f32 %v3609, 1.442695
    %v3621 = vpow.pop %v3620
    %v3622 = vmul.f32 %v3610, 1.442695
    %v3623 = vpow.pop %v3622
    %v3624 = vmul.f32 %v3611, 1.442695
    %v3625 = vpow.pop %v3624
    %v3626 = vmul.f32 %v3612, 1.442695
    %v3627 = vpow.pop %v3626
    %v3628 = vmul.f32 %v3613, 1.442695
    %v3629 = vpow.pop %v3628
    %v3630 = vadd.f32 %v3615, 1.0
    %v3631 = vadd.f32 %v3617, 1.0
    %v3632 = vadd.f32 %v3619, 1.0
    %v3633 = vadd.f32 %v3621, 1.0
    %v3634 = vadd.f32 %v3623, 1.0
    %v3635 = vadd.f32 %v3625, 1.0
    %v3636 = vadd.f32 %v3627, 1.0
    %v3637 = vadd.f32 %v3629, 1.0
    %v3638 = vrcp.pop %v3630
    %v3639 = vmul.f32 1.0, %v3638
    %v3640 = vrcp.pop %v3631
    %v3641 = vmul.f32 1.0, %v3640
    %v3642 = vrcp.pop %v3632
    %v3643 = vmul.f32 1.0, %v3642
    %v3644 = vrcp.pop %v3633
    %v3645 = vmul.f32 1.0, %v3644
    %v3646 = vrcp.pop %v3634
    %v3647 = vmul.f32 1.0, %v3646
    %v3648 = vrcp.pop %v3635
    %v3649 = vmul.f32 1.0, %v3648
    %v3650 = vrcp.pop %v3636
    %v3651 = vmul.f32 1.0, %v3650
    %v3652 = vrcp.pop %v3637
    %v3653 = vmul.f32 1.0, %v3652
    %v3654 = vtanh.pop %v3528
    %v3655 = vtanh.pop %v3532
    %v3656 = vtanh.pop %v3536
    %v3657 = vtanh.pop %v3540
    %v3658 = vtanh.pop %v3544
    %v3659 = vtanh.pop %v3548
    %v3660 = vtanh.pop %v3552
    %v3661 = vtanh.pop %v3556
    %v3662 = vxor.u32 %v3529, 2147483648
    %v3663 = vxor.u32 %v3533, 2147483648
    %v3664 = vxor.u32 %v3537, 2147483648
    %v3665 = vxor.u32 %v3541, 2147483648
    %v3666 = vxor.u32 %v3545, 2147483648
    %v3667 = vxor.u32 %v3549, 2147483648
    %v3668 = vxor.u32 %v3553, 2147483648
    %v3669 = vxor.u32 %v3557, 2147483648
    %v3670 = vmul.f32 %v3662, 1.442695
    %v3671 = vpow.pop %v3670
    %v3672 = vmul.f32 %v3663, 1.442695
    %v3673 = vpow.pop %v3672
    %v3674 = vmul.f32 %v3664, 1.442695
    %v3675 = vpow.pop %v3674
    %v3676 = vmul.f32 %v3665, 1.442695
    %v3677 = vpow.pop %v3676
    %v3678 = vmul.f32 %v3666, 1.442695
    %v3679 = vpow.pop %v3678
    %v3680 = vmul.f32 %v3667, 1.442695
    %v3681 = vpow.pop %v3680
    %v3682 = vmul.f32 %v3668, 1.442695
    %v3683 = vpow.pop %v3682
    %v3684 = vmul.f32 %v3669, 1.442695
    %v3685 = vpow.pop %v3684
    %v3686 = vadd.f32 %v3671, 1.0
    %v3687 = vadd.f32 %v3673, 1.0
    %v3688 = vadd.f32 %v3675, 1.0
    %v3689 = vadd.f32 %v3677, 1.0
    %v3690 = vadd.f32 %v3679, 1.0
    %v3691 = vadd.f32 %v3681, 1.0
    %v3692 = vadd.f32 %v3683, 1.0
    %v3693 = vadd.f32 %v3685, 1.0
    %v3694 = vrcp.pop %v3686
    %v3695 = vmul.f32 1.0, %v3694
    %v3696 = vrcp.pop %v3687
    %v3697 = vmul.f32 1.0, %v3696
    %v3698 = vrcp.pop %v3688
    %v3699 = vmul.f32 1.0, %v3698
    %v3700 = vrcp.pop %v3689
    %v3701 = vmul.f32 1.0, %v3700
    %v3702 = vrcp.pop %v3690
    %v3703 = vmul.f32 1.0, %v3702
    %v3704 = vrcp.pop %v3691
    %v3705 = vmul.f32 1.0, %v3704
    %v3706 = vrcp.pop %v3692
    %v3707 = vmul.f32 1.0, %v3706
    %v3708 = vrcp.pop %v3693
    %v3709 = vmul.f32 1.0, %v3708
    %v3718 = vrot.slane %v3273, 7
    %v3719 = vrot.slane %v3274, 7
    %v3720 = vrot.slane %v3275, 7
    %v3721 = vrot.slane %v3276, 7
    %v3722 = vrot.slane %v3277, 7
    %v3723 = vrot.slane %v3278, 7
    %v3724 = vrot.slane %v3279, 7
    %v3725 = vrot.slane %v3280, 7
    %v3734 = vmul.f32 %v3639, %v3718
    %v3735 = vmul.f32 %v3641, %v3719
    %v3736 = vmul.f32 %v3643, %v3720
    %v3737 = vmul.f32 %v3645, %v3721
    %v3738 = vmul.f32 %v3647, %v3722
    %v3739 = vmul.f32 %v3649, %v3723
    %v3740 = vmul.f32 %v3651, %v3724
    %v3741 = vmul.f32 %v3653, %v3725
    %v3742 = vmul.f32 %v3591, %v3654
    %v3743 = vmul.f32 %v3593, %v3655
    %v3744 = vmul.f32 %v3595, %v3656
    %v3745 = vmul.f32 %v3597, %v3657
    %v3746 = vmul.f32 %v3599, %v3658
    %v3747 = vmul.f32 %v3601, %v3659
    %v3748 = vmul.f32 %v3603, %v3660
    %v3749 = vmul.f32 %v3605, %v3661
    %v3750 = vadd.f32 %v3734, %v3742
    %v3751 = vadd.f32 %v3735, %v3743
    %v3752 = vadd.f32 %v3736, %v3744
    %v3753 = vadd.f32 %v3737, %v3745
    %v3754 = vadd.f32 %v3738, %v3746
    %v3755 = vadd.f32 %v3739, %v3747
    %v3756 = vadd.f32 %v3740, %v3748
    %v3757 = vadd.f32 %v3741, %v3749
    %v3758 = vtanh.pop %v3750
    %v3759 = vtanh.pop %v3751
    %v3760 = vtanh.pop %v3752
    %v3761 = vtanh.pop %v3753
    %v3762 = vtanh.pop %v3754
    %v3763 = vtanh.pop %v3755
    %v3764 = vtanh.pop %v3756
    %v3765 = vtanh.pop %v3757
    %v3766 = vmul.f32 %v3695, %v3758
    %v3767 = vmul.f32 %v3697, %v3759
    %v3768 = vmul.f32 %v3699, %v3760
    %v3769 = vmul.f32 %v3701, %v3761
    %v3770 = vmul.f32 %v3703, %v3762
    %v3771 = vmul.f32 %v3705, %v3763
    %v3772 = vmul.f32 %v3707, %v3764
    %v3773 = vmul.f32 %v3709, %v3765
    %v3782 = vrot.slane %v3766, 6
    %v3783 = vrot.slane %v3767, 5
    %v3784 = vsel %vm914, %v3783, %v3782
    %v3785 = vrot.slane %v3768, 4
    %v3786 = vsel %vm917, %v3785, %v3784
    %v3787 = vrot.slane %v3769, 3
    %v3788 = vsel %vm920, %v3787, %v3786
    %v3789 = vrot.slane %v3770, 2
    %v3790 = vsel %vm923, %v3789, %v3788
    %v3791 = vrot.slane %v3771, 1
    %v3792 = vsel %vm926, %v3791, %v3790
    %v3793 = vsel %vm929, %v3772, %v3792
    %v3794 = vrot.slane %v3773, 7
    %v3795 = vsel %vm932, %v3794, %v3793
    %3797 = vmatprep.subr.mxu0 %v472
    %3798 = vmatpush1.msra.mxu0 %v471
    %3799 = vmatprep.subr.mxu0 %v468
    %3800 = vmatpush1.msra.mxu0 %v467
    %3801 = vmatprep.subr.mxu0 %v464
    %3802 = vmatpush1.msra.mxu0 %v463
    %3803 = vmatprep.subr.mxu0 %v460
    %3804 = vmatpush1.msra.mxu0 %v459
    %3805 = vmatprep.subr.mxu0 %v456
    %3806 = vmatpush1.msra.mxu0 %v455
    %3807 = vmatprep.subr.mxu0 %v452
    %3808 = vmatpush1.msra.mxu0 %v451
    %3809 = vmatprep.subr.mxu0 %v448
    %3810 = vmatpush1.msra.mxu0 %v447
    %3811 = vmatprep.subr.mxu0 %v444
    %3812 = vmatpush1.msra.mxu0 %v443
    %3813 = vmatprep.subr.mxu0 %v440
    %3814 = vmatpush1.msra.mxu0 %v439
    %3815 = vmatprep.subr.mxu0 %v436
    %3816 = vmatpush1.msra.mxu0 %v435
    %3817 = vmatprep.subr.mxu0 %v432
    %3818 = vmatpush1.msra.mxu0 %v431
    %3819 = vmatprep.subr.mxu0 %v428
    %3820 = vmatpush1.msra.mxu0 %v427
    %3821 = vmatprep.subr.mxu0 %v424
    %3822 = vmatpush1.msra.mxu0 %v423
    %3823 = vmatprep.subr.mxu0 %v420
    %3824 = vmatpush1.msra.mxu0 %v419
    %3825 = vmatprep.subr.mxu0 %v416
    %3826 = vmatpush1.msra.mxu0 %v415
    %3827 = vmatprep.subr.mxu0 %v412
    %3828 = vmatpush1.msra.mxu0 %v411
    %3829 = vmatprep.subr.mxu0 0.0
    %3830 = vmatpush2.msra.mxu0 0.0
    %3831 = vmatprep.subr.mxu0 0.0
    %3832 = vmatpush2.msra.mxu0 0.0
    %3833 = vmatprep.subr.mxu0 0.0
    %3834 = vmatpush2.msra.mxu0 0.0
    %3835 = vmatprep.subr.mxu0 0.0
    %3836 = vmatpush2.msra.mxu0 0.0
    %3837 = vmatprep.subr.mxu0 0.0
    %3838 = vmatpush2.msra.mxu0 0.0
    %3839 = vmatprep.subr.mxu0 0.0
    %3840 = vmatpush2.msra.mxu0 0.0
    %3841 = vmatprep.subr.mxu0 0.0
    %3842 = vmatpush2.msra.mxu0 0.0
    %3843 = vmatprep.subr.mxu0 0.0
    %3844 = vmatpush2.msra.mxu0 0.0
    %3845 = vmatprep.subr.mxu0 0.0
    %3846 = vmatpush2.msra.mxu0 0.0
    %3847 = vmatprep.subr.mxu0 0.0
    %3848 = vmatpush2.msra.mxu0 0.0
    %3849 = vmatprep.subr.mxu0 0.0
    %3850 = vmatpush2.msra.mxu0 0.0
    %3851 = vmatprep.subr.mxu0 0.0
    %3852 = vmatpush2.msra.mxu0 0.0
    %3853 = vmatprep.subr.mxu0 0.0
    %3854 = vmatpush2.msra.mxu0 0.0
    %3855 = vmatprep.subr.mxu0 0.0
    %3856 = vmatpush2.msra.mxu0 0.0
    %3857 = vmatprep.subr.mxu0 0.0
    %3858 = vmatpush2.msra.mxu0 0.0
    %3859 = vmatprep.subr.mxu0 0.0
    %3860 = vmatpush2.msra.mxu0 0.0
    %3861 = vmatprep.mubr.f32.mxu0 0.0
    %3862 = vmatmul.mubr.f32.gmra.mxu0 %v3795
    %v3863 = vpop.f32.mrf.mxu0
    %v3864 = vadd.f32 0.0, %v3863
    %v3865 = vpop.f32.mrf.mxu0
    %v3866 = vadd.f32 0.0, %v3865
    %3867 = vdwg.mxu0
    %3868 = vmatprep.subr.mxu0 %v474
    %3869 = vmatpush1.msra.mxu0 %v473
    %3870 = vmatprep.subr.mxu0 %v470
    %3871 = vmatpush1.msra.mxu0 %v469
    %3872 = vmatprep.subr.mxu0 %v466
    %3873 = vmatpush1.msra.mxu0 %v465
    %3874 = vmatprep.subr.mxu0 %v462
    %3875 = vmatpush1.msra.mxu0 %v461
    %3876 = vmatprep.subr.mxu0 %v458
    %3877 = vmatpush1.msra.mxu0 %v457
    %3878 = vmatprep.subr.mxu0 %v454
    %3879 = vmatpush1.msra.mxu0 %v453
    %3880 = vmatprep.subr.mxu0 %v450
    %3881 = vmatpush1.msra.mxu0 %v449
    %3882 = vmatprep.subr.mxu0 %v446
    %3883 = vmatpush1.msra.mxu0 %v445
    %3884 = vmatprep.subr.mxu0 %v442
    %3885 = vmatpush1.msra.mxu0 %v441
    %3886 = vmatprep.subr.mxu0 %v438
    %3887 = vmatpush1.msra.mxu0 %v437
    %3888 = vmatprep.subr.mxu0 %v434
    %3889 = vmatpush1.msra.mxu0 %v433
    %3890 = vmatprep.subr.mxu0 %v430
    %3891 = vmatpush1.msra.mxu0 %v429
    %3892 = vmatprep.subr.mxu0 %v426
    %3893 = vmatpush1.msra.mxu0 %v425
    %3894 = vmatprep.subr.mxu0 %v422
    %3895 = vmatpush1.msra.mxu0 %v421
    %3896 = vmatprep.subr.mxu0 %v418
    %3897 = vmatpush1.msra.mxu0 %v417
    %3898 = vmatprep.subr.mxu0 %v414
    %3899 = vmatpush1.msra.mxu0 %v413
    %3900 = vmatprep.subr.mxu0 0.0
    %3901 = vmatpush2.msra.mxu0 0.0
    %3902 = vmatprep.subr.mxu0 0.0
    %3903 = vmatpush2.msra.mxu0 0.0
    %3904 = vmatprep.subr.mxu0 0.0
    %3905 = vmatpush2.msra.mxu0 0.0
    %3906 = vmatprep.subr.mxu0 0.0
    %3907 = vmatpush2.msra.mxu0 0.0
    %3908 = vmatprep.subr.mxu0 0.0
    %3909 = vmatpush2.msra.mxu0 0.0
    %3910 = vmatprep.subr.mxu0 0.0
    %3911 = vmatpush2.msra.mxu0 0.0
    %3912 = vmatprep.subr.mxu0 0.0
    %3913 = vmatpush2.msra.mxu0 0.0
    %3914 = vmatprep.subr.mxu0 0.0
    %3915 = vmatpush2.msra.mxu0 0.0
    %3916 = vmatprep.subr.mxu0 0.0
    %3917 = vmatpush2.msra.mxu0 0.0
    %3918 = vmatprep.subr.mxu0 0.0
    %3919 = vmatpush2.msra.mxu0 0.0
    %3920 = vmatprep.subr.mxu0 0.0
    %3921 = vmatpush2.msra.mxu0 0.0
    %3922 = vmatprep.subr.mxu0 0.0
    %3923 = vmatpush2.msra.mxu0 0.0
    %3924 = vmatprep.subr.mxu0 0.0
    %3925 = vmatpush2.msra.mxu0 0.0
    %3926 = vmatprep.subr.mxu0 0.0
    %3927 = vmatpush2.msra.mxu0 0.0
    %3928 = vmatprep.subr.mxu0 0.0
    %3929 = vmatpush2.msra.mxu0 0.0
    %3930 = vmatprep.subr.mxu0 0.0
    %3931 = vmatpush2.msra.mxu0 0.0
    %3932 = vmatprep.mubr.f32.mxu0 0.0
    %3933 = vmatmul.mubr.f32.gmra.mxu0 %v3795
    %v3934 = vpop.f32.mrf.mxu0
    %v3935 = vadd.f32 0.0, %v3934
    %v3936 = vpop.f32.mrf.mxu0
    %v3937 = vadd.f32 0.0, %v3936
    %3938 = vdwg.mxu0
    %v3943 = vrot.slane %v3864, 1
    %v3944 = vrot.slane %v3866, 1
    %v3945 = vrot.slane %v3935, 1
    %v3946 = vrot.slane %v3937, 1
    %v3947 = vrot.slane %v3864, 2
    %v3948 = vrot.slane %v3866, 2
    %v3949 = vrot.slane %v3935, 2
    %v3950 = vrot.slane %v3937, 2
    %v3951 = vrot.slane %v3864, 3
    %v3952 = vrot.slane %v3866, 3
    %v3953 = vrot.slane %v3935, 3
    %v3954 = vrot.slane %v3937, 3
    %v3955 = vrot.slane %v3864, 4
    %v3956 = vrot.slane %v3866, 4
    %v3957 = vrot.slane %v3935, 4
    %v3958 = vrot.slane %v3937, 4
    %v3959 = vrot.slane %v3864, 5
    %v3960 = vrot.slane %v3866, 5
    %v3961 = vrot.slane %v3935, 5
    %v3962 = vrot.slane %v3937, 5
    %v3963 = vrot.slane %v3864, 6
    %v3964 = vrot.slane %v3866, 6
    %v3965 = vrot.slane %v3935, 6
    %v3966 = vrot.slane %v3937, 6
    %v3967 = vrot.slane %v3864, 7
    %v3968 = vrot.slane %v3866, 7
    %v3969 = vrot.slane %v3935, 7
    %v3970 = vrot.slane %v3937, 7
    %v4003 = vadd.f32 %v252, %v3943
    %v4004 = vadd.f32 %v254, %v3944
    %v4005 = vadd.f32 %v365, %v3945
    %v4006 = vadd.f32 %v367, %v3946
    %v4007 = vadd.f32 %v258, %v3947
    %v4008 = vadd.f32 %v260, %v3948
    %v4009 = vadd.f32 %v371, %v3949
    %v4010 = vadd.f32 %v373, %v3950
    %v4011 = vadd.f32 %v264, %v3951
    %v4012 = vadd.f32 %v266, %v3952
    %v4013 = vadd.f32 %v377, %v3953
    %v4014 = vadd.f32 %v379, %v3954
    %v4015 = vadd.f32 %v270, %v3955
    %v4016 = vadd.f32 %v272, %v3956
    %v4017 = vadd.f32 %v383, %v3957
    %v4018 = vadd.f32 %v385, %v3958
    %v4019 = vadd.f32 %v276, %v3959
    %v4020 = vadd.f32 %v278, %v3960
    %v4021 = vadd.f32 %v389, %v3961
    %v4022 = vadd.f32 %v391, %v3962
    %v4023 = vadd.f32 %v282, %v3963
    %v4024 = vadd.f32 %v284, %v3964
    %v4025 = vadd.f32 %v395, %v3965
    %v4026 = vadd.f32 %v397, %v3966
    %v4027 = vadd.f32 %v288, %v3967
    %v4028 = vadd.f32 %v290, %v3968
    %v4029 = vadd.f32 %v401, %v3969
    %v4030 = vadd.f32 %v403, %v3970
    %v4031 = vadd.f32 %v294, %v3864
    %v4032 = vadd.f32 %v296, %v3866
    %v4033 = vadd.f32 %v407, %v3935
    %v4034 = vadd.f32 %v409, %v3937
    %v4035 = vxor.u32 %v4003, 2147483648
    %v4036 = vxor.u32 %v4007, 2147483648
    %v4037 = vxor.u32 %v4011, 2147483648
    %v4038 = vxor.u32 %v4015, 2147483648
    %v4039 = vxor.u32 %v4019, 2147483648
    %v4040 = vxor.u32 %v4023, 2147483648
    %v4041 = vxor.u32 %v4027, 2147483648
    %v4042 = vxor.u32 %v4031, 2147483648
    %v4043 = vmul.f32 %v4035, 1.442695
    %v4044 = vpow.pop %v4043
    %v4045 = vmul.f32 %v4036, 1.442695
    %v4046 = vpow.pop %v4045
    %v4047 = vmul.f32 %v4037, 1.442695
    %v4048 = vpow.pop %v4047
    %v4049 = vmul.f32 %v4038, 1.442695
    %v4050 = vpow.pop %v4049
    %v4051 = vmul.f32 %v4039, 1.442695
    %v4052 = vpow.pop %v4051
    %v4053 = vmul.f32 %v4040, 1.442695
    %v4054 = vpow.pop %v4053
    %v4055 = vmul.f32 %v4041, 1.442695
    %v4056 = vpow.pop %v4055
    %v4057 = vmul.f32 %v4042, 1.442695
    %v4058 = vpow.pop %v4057
    %v4059 = vadd.f32 %v4044, 1.0
    %v4060 = vadd.f32 %v4046, 1.0
    %v4061 = vadd.f32 %v4048, 1.0
    %v4062 = vadd.f32 %v4050, 1.0
    %v4063 = vadd.f32 %v4052, 1.0
    %v4064 = vadd.f32 %v4054, 1.0
    %v4065 = vadd.f32 %v4056, 1.0
    %v4066 = vadd.f32 %v4058, 1.0
    %v4067 = vrcp.pop %v4059
    %v4068 = vmul.f32 1.0, %v4067
    %v4069 = vrcp.pop %v4060
    %v4070 = vmul.f32 1.0, %v4069
    %v4071 = vrcp.pop %v4061
    %v4072 = vmul.f32 1.0, %v4071
    %v4073 = vrcp.pop %v4062
    %v4074 = vmul.f32 1.0, %v4073
    %v4075 = vrcp.pop %v4063
    %v4076 = vmul.f32 1.0, %v4075
    %v4077 = vrcp.pop %v4064
    %v4078 = vmul.f32 1.0, %v4077
    %v4079 = vrcp.pop %v4065
    %v4080 = vmul.f32 1.0, %v4079
    %v4081 = vrcp.pop %v4066
    %v4082 = vmul.f32 1.0, %v4081
    %v4083 = vxor.u32 %v4004, 2147483648
    %v4084 = vxor.u32 %v4008, 2147483648
    %v4085 = vxor.u32 %v4012, 2147483648
    %v4086 = vxor.u32 %v4016, 2147483648
    %v4087 = vxor.u32 %v4020, 2147483648
    %v4088 = vxor.u32 %v4024, 2147483648
    %v4089 = vxor.u32 %v4028, 2147483648
    %v4090 = vxor.u32 %v4032, 2147483648
    %v4091 = vmul.f32 %v4083, 1.442695
    %v4092 = vpow.pop %v4091
    %v4093 = vmul.f32 %v4084, 1.442695
    %v4094 = vpow.pop %v4093
    %v4095 = vmul.f32 %v4085, 1.442695
    %v4096 = vpow.pop %v4095
    %v4097 = vmul.f32 %v4086, 1.442695
    %v4098 = vpow.pop %v4097
    %v4099 = vmul.f32 %v4087, 1.442695
    %v4100 = vpow.pop %v4099
    %v4101 = vmul.f32 %v4088, 1.442695
    %v4102 = vpow.pop %v4101
    %v4103 = vmul.f32 %v4089, 1.442695
    %v4104 = vpow.pop %v4103
    %v4105 = vmul.f32 %v4090, 1.442695
    %v4106 = vpow.pop %v4105
    %v4107 = vadd.f32 %v4092, 1.0
    %v4108 = vadd.f32 %v4094, 1.0
    %v4109 = vadd.f32 %v4096, 1.0
    %v4110 = vadd.f32 %v4098, 1.0
    %v4111 = vadd.f32 %v4100, 1.0
    %v4112 = vadd.f32 %v4102, 1.0
    %v4113 = vadd.f32 %v4104, 1.0
    %v4114 = vadd.f32 %v4106, 1.0
    %v4115 = vrcp.pop %v4107
    %v4116 = vmul.f32 1.0, %v4115
    %v4117 = vrcp.pop %v4108
    %v4118 = vmul.f32 1.0, %v4117
    %v4119 = vrcp.pop %v4109
    %v4120 = vmul.f32 1.0, %v4119
    %v4121 = vrcp.pop %v4110
    %v4122 = vmul.f32 1.0, %v4121
    %v4123 = vrcp.pop %v4111
    %v4124 = vmul.f32 1.0, %v4123
    %v4125 = vrcp.pop %v4112
    %v4126 = vmul.f32 1.0, %v4125
    %v4127 = vrcp.pop %v4113
    %v4128 = vmul.f32 1.0, %v4127
    %v4129 = vrcp.pop %v4114
    %v4130 = vmul.f32 1.0, %v4129
    %v4131 = vtanh.pop %v4005
    %v4132 = vtanh.pop %v4009
    %v4133 = vtanh.pop %v4013
    %v4134 = vtanh.pop %v4017
    %v4135 = vtanh.pop %v4021
    %v4136 = vtanh.pop %v4025
    %v4137 = vtanh.pop %v4029
    %v4138 = vtanh.pop %v4033
    %v4139 = vxor.u32 %v4006, 2147483648
    %v4140 = vxor.u32 %v4010, 2147483648
    %v4141 = vxor.u32 %v4014, 2147483648
    %v4142 = vxor.u32 %v4018, 2147483648
    %v4143 = vxor.u32 %v4022, 2147483648
    %v4144 = vxor.u32 %v4026, 2147483648
    %v4145 = vxor.u32 %v4030, 2147483648
    %v4146 = vxor.u32 %v4034, 2147483648
    %v4147 = vmul.f32 %v4139, 1.442695
    %v4148 = vpow.pop %v4147
    %v4149 = vmul.f32 %v4140, 1.442695
    %v4150 = vpow.pop %v4149
    %v4151 = vmul.f32 %v4141, 1.442695
    %v4152 = vpow.pop %v4151
    %v4153 = vmul.f32 %v4142, 1.442695
    %v4154 = vpow.pop %v4153
    %v4155 = vmul.f32 %v4143, 1.442695
    %v4156 = vpow.pop %v4155
    %v4157 = vmul.f32 %v4144, 1.442695
    %v4158 = vpow.pop %v4157
    %v4159 = vmul.f32 %v4145, 1.442695
    %v4160 = vpow.pop %v4159
    %v4161 = vmul.f32 %v4146, 1.442695
    %v4162 = vpow.pop %v4161
    %v4163 = vadd.f32 %v4148, 1.0
    %v4164 = vadd.f32 %v4150, 1.0
    %v4165 = vadd.f32 %v4152, 1.0
    %v4166 = vadd.f32 %v4154, 1.0
    %v4167 = vadd.f32 %v4156, 1.0
    %v4168 = vadd.f32 %v4158, 1.0
    %v4169 = vadd.f32 %v4160, 1.0
    %v4170 = vadd.f32 %v4162, 1.0
    %v4171 = vrcp.pop %v4163
    %v4172 = vmul.f32 1.0, %v4171
    %v4173 = vrcp.pop %v4164
    %v4174 = vmul.f32 1.0, %v4173
    %v4175 = vrcp.pop %v4165
    %v4176 = vmul.f32 1.0, %v4175
    %v4177 = vrcp.pop %v4166
    %v4178 = vmul.f32 1.0, %v4177
    %v4179 = vrcp.pop %v4167
    %v4180 = vmul.f32 1.0, %v4179
    %v4181 = vrcp.pop %v4168
    %v4182 = vmul.f32 1.0, %v4181
    %v4183 = vrcp.pop %v4169
    %v4184 = vmul.f32 1.0, %v4183
    %v4185 = vrcp.pop %v4170
    %v4186 = vmul.f32 1.0, %v4185
    %v4195 = vrot.slane %v3750, 7
    %v4196 = vrot.slane %v3751, 7
    %v4197 = vrot.slane %v3752, 7
    %v4198 = vrot.slane %v3753, 7
    %v4199 = vrot.slane %v3754, 7
    %v4200 = vrot.slane %v3755, 7
    %v4201 = vrot.slane %v3756, 7
    %v4202 = vrot.slane %v3757, 7
    %v4211 = vmul.f32 %v4116, %v4195
    %v4212 = vmul.f32 %v4118, %v4196
    %v4213 = vmul.f32 %v4120, %v4197
    %v4214 = vmul.f32 %v4122, %v4198
    %v4215 = vmul.f32 %v4124, %v4199
    %v4216 = vmul.f32 %v4126, %v4200
    %v4217 = vmul.f32 %v4128, %v4201
    %v4218 = vmul.f32 %v4130, %v4202
    %v4219 = vmul.f32 %v4068, %v4131
    %v4220 = vmul.f32 %v4070, %v4132
    %v4221 = vmul.f32 %v4072, %v4133
    %v4222 = vmul.f32 %v4074, %v4134
    %v4223 = vmul.f32 %v4076, %v4135
    %v4224 = vmul.f32 %v4078, %v4136
    %v4225 = vmul.f32 %v4080, %v4137
    %v4226 = vmul.f32 %v4082, %v4138
    %v4227 = vadd.f32 %v4211, %v4219
    %v4228 = vadd.f32 %v4212, %v4220
    %v4229 = vadd.f32 %v4213, %v4221
    %v4230 = vadd.f32 %v4214, %v4222
    %v4231 = vadd.f32 %v4215, %v4223
    %v4232 = vadd.f32 %v4216, %v4224
    %v4233 = vadd.f32 %v4217, %v4225
    %v4234 = vadd.f32 %v4218, %v4226
    %v4235 = vtanh.pop %v4227
    %v4236 = vtanh.pop %v4228
    %v4237 = vtanh.pop %v4229
    %v4238 = vtanh.pop %v4230
    %v4239 = vtanh.pop %v4231
    %v4240 = vtanh.pop %v4232
    %v4241 = vtanh.pop %v4233
    %v4242 = vtanh.pop %v4234
    %v4243 = vmul.f32 %v4172, %v4235
    %v4244 = vmul.f32 %v4174, %v4236
    %v4245 = vmul.f32 %v4176, %v4237
    %v4246 = vmul.f32 %v4178, %v4238
    %v4247 = vmul.f32 %v4180, %v4239
    %v4248 = vmul.f32 %v4182, %v4240
    %v4249 = vmul.f32 %v4184, %v4241
    %v4250 = vmul.f32 %v4186, %v4242
    %v4251 = vld [vmem:[#allocation8] sm:$0xff]
    %v4252 = vld [vmem:[#allocation8 + $0x8] sm:$0xff]
    %v4253 = vld [vmem:[#allocation8 + $0x10] sm:$0xff]
    %v4254 = vld [vmem:[#allocation8 + $0x18] sm:$0xff]
    %v4255 = vld [vmem:[#allocation8 + $0x20] sm:$0xff]
    %v4256 = vld [vmem:[#allocation8 + $0x28] sm:$0xff]
    %v4257 = vld [vmem:[#allocation8 + $0x30] sm:$0xff]
    %v4258 = vld [vmem:[#allocation8 + $0x38] sm:$0xff]
    %v4259 = vld [vmem:[#allocation8 + $0x40] sm:$0xff]
    %v4260 = vld [vmem:[#allocation8 + $0x48] sm:$0xff]
    %v4261 = vld [vmem:[#allocation8 + $0x50] sm:$0xff]
    %v4262 = vld [vmem:[#allocation8 + $0x58] sm:$0xff]
    %v4263 = vld [vmem:[#allocation8 + $0x60] sm:$0xff]
    %v4264 = vld [vmem:[#allocation8 + $0x68] sm:$0xff]
    %v4265 = vld [vmem:[#allocation8 + $0x70] sm:$0xff]
    %v4266 = vld [vmem:[#allocation8 + $0x78] sm:$0xff]
    %v4267 = vld [vmem:[%s5] sm:$0x1]
    %v4269 = vlaneseq
    %v4270 = vshrl.u32 %v4269, 7
    %v4271 = vsub.s32 0, %v4270
    %v4272 = vrot.slane %v4267, %v4271
    %v4282 = vrot.slane %v4243, 7
    %v4283 = vrot.slane %v4244, 6
    %v4284 = vsel %vm914, %v4283, %v4282
    %v4285 = vrot.slane %v4245, 5
    %v4286 = vsel %vm917, %v4285, %v4284
    %v4287 = vrot.slane %v4246, 4
    %v4288 = vsel %vm920, %v4287, %v4286
    %v4289 = vrot.slane %v4247, 3
    %v4290 = vsel %vm923, %v4289, %v4288
    %v4291 = vrot.slane %v4248, 2
    %v4292 = vsel %vm926, %v4291, %v4290
    %v4293 = vrot.slane %v4249, 1
    %v4294 = vsel %vm929, %v4293, %v4292
    %v4295 = vsel %vm932, %v4250, %v4294
    %4297 = vmatprep.subr.mxu0 0.0
    %4298 = vmatpush1.msra.mxu0 %v4266
    %4299 = vmatprep.subr.mxu0 0.0
    %4300 = vmatpush1.msra.mxu0 %v4265
    %4301 = vmatprep.subr.mxu0 0.0
    %4302 = vmatpush1.msra.mxu0 %v4264
    %4303 = vmatprep.subr.mxu0 0.0
    %4304 = vmatpush1.msra.mxu0 %v4263
    %4305 = vmatprep.subr.mxu0 0.0
    %4306 = vmatpush1.msra.mxu0 %v4262
    %4307 = vmatprep.subr.mxu0 0.0
    %4308 = vmatpush1.msra.mxu0 %v4261
    %4309 = vmatprep.subr.mxu0 0.0
    %4310 = vmatpush1.msra.mxu0 %v4260
    %4311 = vmatprep.subr.mxu0 0.0
    %4312 = vmatpush1.msra.mxu0 %v4259
    %4313 = vmatprep.subr.mxu0 0.0
    %4314 = vmatpush1.msra.mxu0 %v4258
    %4315 = vmatprep.subr.mxu0 0.0
    %4316 = vmatpush1.msra.mxu0 %v4257
    %4317 = vmatprep.subr.mxu0 0.0
    %4318 = vmatpush1.msra.mxu0 %v4256
    %4319 = vmatprep.subr.mxu0 0.0
    %4320 = vmatpush1.msra.mxu0 %v4255
    %4321 = vmatprep.subr.mxu0 0.0
    %4322 = vmatpush1.msra.mxu0 %v4254
    %4323 = vmatprep.subr.mxu0 0.0
    %4324 = vmatpush1.msra.mxu0 %v4253
    %4325 = vmatprep.subr.mxu0 0.0
    %4326 = vmatpush1.msra.mxu0 %v4252
    %4327 = vmatprep.subr.mxu0 0.0
    %4328 = vmatpush1.msra.mxu0 %v4251
    %4329 = vmatprep.subr.mxu0 0.0
    %4330 = vmatpush2.msra.mxu0 0.0
    %4331 = vmatprep.subr.mxu0 0.0
    %4332 = vmatpush2.msra.mxu0 0.0
    %4333 = vmatprep.subr.mxu0 0.0
    %4334 = vmatpush2.msra.mxu0 0.0
    %4335 = vmatprep.subr.mxu0 0.0
    %4336 = vmatpush2.msra.mxu0 0.0
    %4337 = vmatprep.subr.mxu0 0.0
    %4338 = vmatpush2.msra.mxu0 0.0
    %4339 = vmatprep.subr.mxu0 0.0
    %4340 = vmatpush2.msra.mxu0 0.0
    %4341 = vmatprep.subr.mxu0 0.0
    %4342 = vmatpush2.msra.mxu0 0.0
    %4343 = vmatprep.subr.mxu0 0.0
    %4344 = vmatpush2.msra.mxu0 0.0
    %4345 = vmatprep.subr.mxu0 0.0
    %4346 = vmatpush2.msra.mxu0 0.0
    %4347 = vmatprep.subr.mxu0 0.0
    %4348 = vmatpush2.msra.mxu0 0.0
    %4349 = vmatprep.subr.mxu0 0.0
    %4350 = vmatpush2.msra.mxu0 0.0
    %4351 = vmatprep.subr.mxu0 0.0
    %4352 = vmatpush2.msra.mxu0 0.0
    %4353 = vmatprep.subr.mxu0 0.0
    %4354 = vmatpush2.msra.mxu0 0.0
    %4355 = vmatprep.subr.mxu0 0.0
    %4356 = vmatpush2.msra.mxu0 0.0
    %4357 = vmatprep.subr.mxu0 0.0
    %4358 = vmatpush2.msra.mxu0 0.0
    %4359 = vmatprep.subr.mxu0 0.0
    %4360 = vmatpush2.msra.mxu0 0.0
    %4361 = vmatprep.mubr.f32.mxu0 0.0
    %4362 = vmatmul.mubr.f32.gmra.mxu0 %v4295
    %v4363 = vpop.f32.mrf.mxu0
    %v4364 = vadd.f32 %v4272, %v4363
    %v4365 = vpop.f32.mrf.mxu0
    %4366 = vdwg.mxu0
    %v4367 = vmax.f32 %v4364, 0.0
    %4368 = vmatprep.subr.mxu0 0.0
    %4369 = vmatpush1.msra.mxu0 %v4266
    %4370 = vmatprep.subr.mxu0 0.0
    %4371 = vmatpush1.msra.mxu0 %v4265
    %4372 = vmatprep.subr.mxu0 0.0
    %4373 = vmatpush1.msra.mxu0 %v4264
    %4374 = vmatprep.subr.mxu0 0.0
    %4375 = vmatpush1.msra.mxu0 %v4263
    %4376 = vmatprep.subr.mxu0 0.0
    %4377 = vmatpush1.msra.mxu0 %v4262
    %4378 = vmatprep.subr.mxu0 0.0
    %4379 = vmatpush1.msra.mxu0 %v4261
    %4380 = vmatprep.subr.mxu0 0.0
    %4381 = vmatpush1.msra.mxu0 %v4260
    %4382 = vmatprep.subr.mxu0 0.0
    %4383 = vmatpush1.msra.mxu0 %v4259
    %4384 = vmatprep.subr.mxu0 0.0
    %4385 = vmatpush1.msra.mxu0 %v4258
    %4386 = vmatprep.subr.mxu0 0.0
    %4387 = vmatpush1.msra.mxu0 %v4257
    %4388 = vmatprep.subr.mxu0 0.0
    %4389 = vmatpush1.msra.mxu0 %v4256
    %4390 = vmatprep.subr.mxu0 0.0
    %4391 = vmatpush1.msra.mxu0 %v4255
    %4392 = vmatprep.subr.mxu0 0.0
    %4393 = vmatpush1.msra.mxu0 %v4254
    %4394 = vmatprep.subr.mxu0 0.0
    %4395 = vmatpush1.msra.mxu0 %v4253
    %4396 = vmatprep.subr.mxu0 0.0
    %4397 = vmatpush1.msra.mxu0 %v4252
    %4398 = vmatprep.subr.mxu0 0.0
    %4399 = vmatpush1.msra.mxu0 %v4251
    %4400 = vmatprep.subr.mxu0 0.0
    %4401 = vmatpush2.msra.mxu0 0.0
    %4402 = vmatprep.subr.mxu0 0.0
    %4403 = vmatpush2.msra.mxu0 0.0
    %4404 = vmatprep.subr.mxu0 0.0
    %4405 = vmatpush2.msra.mxu0 0.0
    %4406 = vmatprep.subr.mxu0 0.0
    %4407 = vmatpush2.msra.mxu0 0.0
    %4408 = vmatprep.subr.mxu0 0.0
    %4409 = vmatpush2.msra.mxu0 0.0
    %4410 = vmatprep.subr.mxu0 0.0
    %4411 = vmatpush2.msra.mxu0 0.0
    %4412 = vmatprep.subr.mxu0 0.0
    %4413 = vmatpush2.msra.mxu0 0.0
    %4414 = vmatprep.subr.mxu0 0.0
    %4415 = vmatpush2.msra.mxu0 0.0
    %4416 = vmatprep.subr.mxu0 0.0
    %4417 = vmatpush2.msra.mxu0 0.0
    %4418 = vmatprep.subr.mxu0 0.0
    %4419 = vmatpush2.msra.mxu0 0.0
    %4420 = vmatprep.subr.mxu0 0.0
    %4421 = vmatpush2.msra.mxu0 0.0
    %4422 = vmatprep.subr.mxu0 0.0
    %4423 = vmatpush2.msra.mxu0 0.0
    %4424 = vmatprep.subr.mxu0 0.0
    %4425 = vmatpush2.msra.mxu0 0.0
    %4426 = vmatprep.subr.mxu0 0.0
    %4427 = vmatpush2.msra.mxu0 0.0
    %4428 = vmatprep.subr.mxu0 0.0
    %4429 = vmatpush2.msra.mxu0 0.0
    %4430 = vmatprep.subr.mxu0 0.0
    %4431 = vmatpush2.msra.mxu0 0.0
    %4432 = vmatprep.mubr.f32.mxu0 0.0
    %4433 = vmatmul.mubr.f32.gmra.mxu0 %v4367
    %v4434 = vpop.f32.mrf.mxu0
    %v4435 = vadd.f32 %v4272, %v4434
    %v4436 = vpop.f32.mrf.mxu0
    %4437 = vdwg.mxu0
    %v4438 = vld [vmem:[#allocation10] sm:$0xff]
    %v4439 = vld [vmem:[#allocation10 + $0x8] sm:$0xff]
    %v4440 = vld [vmem:[#allocation10 + $0x10] sm:$0xff]
    %v4441 = vld [vmem:[#allocation10 + $0x18] sm:$0xff]
    %v4442 = vld [vmem:[#allocation10 + $0x20] sm:$0xff]
    %v4443 = vld [vmem:[#allocation10 + $0x28] sm:$0xff]
    %v4444 = vld [vmem:[#allocation10 + $0x30] sm:$0xff]
    %v4445 = vld [vmem:[#allocation10 + $0x38] sm:$0xff]
    %v4446 = vld [vmem:[#allocation10 + $0x40] sm:$0xff]
    %v4447 = vld [vmem:[#allocation10 + $0x48] sm:$0xff]
    %v4448 = vld [vmem:[#allocation10 + $0x50] sm:$0xff]
    %v4449 = vld [vmem:[#allocation10 + $0x58] sm:$0xff]
    %v4450 = vld [vmem:[#allocation10 + $0x60] sm:$0xff]
    %v4451 = vld [vmem:[#allocation10 + $0x68] sm:$0xff]
    %v4452 = vld [vmem:[#allocation10 + $0x70] sm:$0xff]
    %v4453 = vld [vmem:[#allocation10 + $0x78] sm:$0xff]
    %v4454 = vld [vmem:[%s7] sm:$0x1]
    %v4456 = vlaneseq
    %v4457 = vshrl.u32 %v4456, 7
    %v4458 = vsub.s32 0, %v4457
    %v4459 = vrot.slane %v4454, %v4458
    %4461 = vmatprep.subr.mxu0 0.0
    %4462 = vmatpush1.msra.mxu0 %v4453
    %4463 = vmatprep.subr.mxu0 0.0
    %4464 = vmatpush1.msra.mxu0 %v4452
    %4465 = vmatprep.subr.mxu0 0.0
    %4466 = vmatpush1.msra.mxu0 %v4451
    %4467 = vmatprep.subr.mxu0 0.0
    %4468 = vmatpush1.msra.mxu0 %v4450
    %4469 = vmatprep.subr.mxu0 0.0
    %4470 = vmatpush1.msra.mxu0 %v4449
    %4471 = vmatprep.subr.mxu0 0.0
    %4472 = vmatpush1.msra.mxu0 %v4448
    %4473 = vmatprep.subr.mxu0 0.0
    %4474 = vmatpush1.msra.mxu0 %v4447
    %4475 = vmatprep.subr.mxu0 0.0
    %4476 = vmatpush1.msra.mxu0 %v4446
    %4477 = vmatprep.subr.mxu0 0.0
    %4478 = vmatpush1.msra.mxu0 %v4445
    %4479 = vmatprep.subr.mxu0 0.0
    %4480 = vmatpush1.msra.mxu0 %v4444
    %4481 = vmatprep.subr.mxu0 0.0
    %4482 = vmatpush1.msra.mxu0 %v4443
    %4483 = vmatprep.subr.mxu0 0.0
    %4484 = vmatpush1.msra.mxu0 %v4442
    %4485 = vmatprep.subr.mxu0 0.0
    %4486 = vmatpush1.msra.mxu0 %v4441
    %4487 = vmatprep.subr.mxu0 0.0
    %4488 = vmatpush1.msra.mxu0 %v4440
    %4489 = vmatprep.subr.mxu0 0.0
    %4490 = vmatpush1.msra.mxu0 %v4439
    %4491 = vmatprep.subr.mxu0 0.0
    %4492 = vmatpush1.msra.mxu0 %v4438
    %4493 = vmatprep.subr.mxu0 0.0
    %4494 = vmatpush2.msra.mxu0 0.0
    %4495 = vmatprep.subr.mxu0 0.0
    %4496 = vmatpush2.msra.mxu0 0.0
    %4497 = vmatprep.subr.mxu0 0.0
    %4498 = vmatpush2.msra.mxu0 0.0
    %4499 = vmatprep.subr.mxu0 0.0
    %4500 = vmatpush2.msra.mxu0 0.0
    %4501 = vmatprep.subr.mxu0 0.0
    %4502 = vmatpush2.msra.mxu0 0.0
    %4503 = vmatprep.subr.mxu0 0.0
    %4504 = vmatpush2.msra.mxu0 0.0
    %4505 = vmatprep.subr.mxu0 0.0
    %4506 = vmatpush2.msra.mxu0 0.0
    %4507 = vmatprep.subr.mxu0 0.0
    %4508 = vmatpush2.msra.mxu0 0.0
    %4509 = vmatprep.subr.mxu0 0.0
    %4510 = vmatpush2.msra.mxu0 0.0
    %4511 = vmatprep.subr.mxu0 0.0
    %4512 = vmatpush2.msra.mxu0 0.0
    %4513 = vmatprep.subr.mxu0 0.0
    %4514 = vmatpush2.msra.mxu0 0.0
    %4515 = vmatprep.subr.mxu0 0.0
    %4516 = vmatpush2.msra.mxu0 0.0
    %4517 = vmatprep.subr.mxu0 0.0
    %4518 = vmatpush2.msra.mxu0 0.0
    %4519 = vmatprep.subr.mxu0 0.0
    %4520 = vmatpush2.msra.mxu0 0.0
    %4521 = vmatprep.subr.mxu0 0.0
    %4522 = vmatpush2.msra.mxu0 0.0
    %4523 = vmatprep.subr.mxu0 0.0
    %4524 = vmatpush2.msra.mxu0 0.0
    %4525 = vmatprep.mubr.f32.mxu0 0.0
    %4526 = vmatmul.mubr.f32.gmra.mxu0 %v4435
    %v4527 = vpop.f32.mrf.mxu0
    %v4528 = vadd.f32 %v4459, %v4527
    %v4529 = vpop.f32.mrf.mxu0
    %4530 = vdwg.mxu0
    %4531 = vst [vmem:[#allocation11] sm:$0xff] %v4528
    // Predicated region
    $region54: #{tpu_custom_call.1} parent=1 // pred_check
      _
    $region55: #{tpu_custom_call.1} parent=1 // pred_check_branch
      %4533 = sbr.rel (0) target = $region57
    $region56: #{tpu_custom_call.1} parent=1 // pred_region
      %s4535 = ssub.s32 128, 128
      %4536 = vsyncadd [#allocation4], %s4535
      %s4538 = sshll.u32 [#allocation11], 4
      %s4539 = int_to_ptr.vmem [resolvable:$true] %s4538
      %4541 = dma.vmem_to_hbm [thread:$0]  %s4539, 128, %s8, [#allocation4]
    $region57: #{tpu_custom_call.1} parent=1 // pred_fallthru
      _
    // Predicated region
    $region58: #{tpu_custom_call.1} parent=1 // pred_check
      _
    $region59: #{tpu_custom_call.1} parent=1 // pred_check_branch
      %4543 = sbr.rel (0) target = $region61
    $region60: #{tpu_custom_call.1} parent=1 // pred_region
      %4544 = dma.done [#allocation4], 128
    $region61: #{tpu_custom_call.1} parent=1 // pred_fallthru
      _
    %4545 = vsyncpa [#allocation3], 1
    %4546 = vsyncpa [#allocation6], 1
    %4547 = vsyncpa [#allocation9], 1
    %4548 = vsyncpa [#allocation4], 1

</llo_original>
